<compile_context>
chip_gen: v6e
topology: v6e:2x2x1
jax: 0.10.0
libtpu: 0.0.40
codegen_flags: <defaults>
</compile_context>

<pallas_src>
import math
import functools

import jax
import jax.numpy as jnp
from jax.experimental import pallas as pl
from jax.experimental.pallas import tpu as pltpu


# ---------------------------------------------------------------------------
# Model hyper-parameters (match the PyTorch module constants; small batch/seq)
# ---------------------------------------------------------------------------
INPUT_DIM = 50        # vocab size
HID_DIM   = 128       # hidden size (lane aligned)
N_HEADS   = 8
HEAD_DIM  = HID_DIM // N_HEADS
N_LAYERS  = 3
PF_DIM    = 2048      # position-wise FFN inner dim (as in the module)
MAX_POS   = 1000
BATCH     = 2
SEQ       = 8
LN_EPS    = 1e-5


def _layer_norm(x, g, b):
    mu = jnp.mean(x, axis=-1, keepdims=True)
    xc = x - mu
    var = jnp.mean(xc * xc, axis=-1, keepdims=True)
    return xc * jax.lax.rsqrt(var + LN_EPS) * g + b


# ---------------------------------------------------------------------------
# Fused kernel: one grid step per encoder layer; step 0 also does embed combine
# ---------------------------------------------------------------------------
def _fused_encoder_kernel(tok_ref, pos_ref, bias_ref, kmask_ref, vmask_ref, seg_ref,
                          wqkv_ref, bqkv_ref, wo_ref, bo_ref,
                          w1_ref, b1_ref, w2_ref, b2_ref, lng_ref, lnb_ref,
                          out_ref, x_sc,
                          *, n_heads, emb_scale, inv_scale):
    l = pl.program_id(0)
    T, D = tok_ref.shape

    # ---- layer 0 only: embedding combine  x = tok * sqrt(D) + pos --------------
    @pl.when(l == 0)
    def _():
        x_sc[...] = tok_ref[...] * emb_scale + pos_ref[...]

    x = x_sc[...]                                          # (T, D) f32 carry

    # ============================ self-attention ================================
    wqkv = wqkv_ref[0]                                     # (D, 3D) bf16
    qkv = jnp.dot(x.astype(wqkv.dtype), wqkv,
                  preferred_element_type=jnp.float32) + bqkv_ref[0]   # (T, 3D) f32
    q = qkv[:, :D]
    k = qkv[:, D:2 * D]
    v = qkv[:, 2 * D:]

    # lane-dense scores: energy[t, h*T + s] = <q_h[t], k_h[s]> / sqrt(dh) + bias
    khat = jnp.tile(k, (n_heads, 1)).T * kmask_ref[...]    # (D, H*T)
    energy = (jnp.dot(q, khat, preferred_element_type=jnp.float32) * inv_scale
              + bias_ref[...])                             # (T, H*T)

    # Per-row max shift (constant per row => per-head-segment softmax unchanged);
    # masked lanes carry -1e10 so their exp is exactly 0, matching masked_fill.
    m = jnp.max(energy, axis=-1, keepdims=True)
    p = jnp.exp(energy - m)
    denom = jnp.dot(p, seg_ref[...], preferred_element_type=jnp.float32)  # per-segment sums
    attn = p * pl.reciprocal(denom, approx=True)
    # NOTE: a fully-padded sequence would make denom == 0 here (reference softmax
    # gives a uniform row instead); not reachable with these inputs.

    vhat = jnp.tile(v, (n_heads, 1)) * vmask_ref[...]      # (H*T, D)
    ctx = jnp.dot(attn, vhat, preferred_element_type=jnp.float32)  # (T, D) = (token, head*dh)

    wo = wo_ref[0]
    sa = jnp.dot(ctx.astype(wo.dtype), wo,
                 preferred_element_type=jnp.float32) + bo_ref[0]

    # TODO(synk): dropout on attention weights / sa / ff is identity (eval mode).
    g = lng_ref[0]
    bln = lnb_ref[0]
    x1 = _layer_norm(x + sa, g, bln)      # shared LN params (self.In), used twice

    # ======================== position-wise feed-forward ========================
    w1 = w1_ref[0]
    h = jnp.dot(x1.astype(w1.dtype), w1,
                preferred_element_type=jnp.float32) + b1_ref[0]
    h = jnp.maximum(h, 0.0)
    w2 = w2_ref[0]
    ff = jnp.dot(h.astype(w2.dtype), w2,
                 preferred_element_type=jnp.float32) + b2_ref[0]

    x2 = _layer_norm(x1 + ff, g, bln)

    x_sc[...] = x2                                         # carry to next layer
    @pl.when(l == pl.num_programs(0) - 1)
    def _():
        out_ref[...] = x2.astype(out_ref.dtype)


# ---------------------------------------------------------------------------
# Parameter init (deterministic): weights bf16, biases / LN params f32
# ---------------------------------------------------------------------------
def init_params(key):
    D, PF, L = HID_DIM, PF_DIM, N_LAYERS
    keys = jax.random.split(key, 2 + L * 6)

    def w(k, shape):
        return (jax.random.normal(k, shape, jnp.float32) * 0.02).astype(jnp.bfloat16)

    wqkv, wo, w1, w2 = [], [], [], []
    for l in range(L):
        k = keys[2 + l * 6: 2 + (l + 1) * 6]
        wq_ = jax.random.normal(k[0], (D, D), jnp.float32) * 0.02
        wk_ = jax.random.normal(k[1], (D, D), jnp.float32) * 0.02
        wv_ = jax.random.normal(k[2], (D, D), jnp.float32) * 0.02
        wqkv.append(jnp.concatenate([wq_, wk_, wv_], axis=1).astype(jnp.bfloat16))
        wo.append(w(k[3], (D, D)))
        w1.append(w(k[4], (D, PF)))
        w2.append(w(k[5], (PF, D)))

    return {
        'tok_emb': jax.random.normal(keys[0], (INPUT_DIM, D), jnp.float32) * 0.02,
        'pos_emb': jax.random.normal(keys[1], (MAX_POS, D), jnp.float32) * 0.02,
        'wqkv': jnp.stack(wqkv),                       # (L, D, 3D)  bf16
        'bqkv': jnp.zeros((L, 1, 3 * D), jnp.float32),
        'wo':   jnp.stack(wo),                         # (L, D, D)   bf16
        'bo':   jnp.zeros((L, 1, D), jnp.float32),
        'w1':   jnp.stack(w1),                         # (L, D, PF)  bf16
        'b1':   jnp.zeros((L, 1, PF), jnp.float32),
        'w2':   jnp.stack(w2),                         # (L, PF, D)  bf16
        'b2':   jnp.zeros((L, 1, D), jnp.float32),
        'ln_g': jnp.ones((L, 1, D), jnp.float32),
        'ln_b': jnp.zeros((L, 1, D), jnp.float32),
    }


# ---------------------------------------------------------------------------
# Forward wrapper: gathers + precomputed bias/masks are glue, one pallas_call
# ---------------------------------------------------------------------------
def encoder_forward(params, src_tokens, src_mask):
    B, S = src_tokens.shape
    D, H, PF, L = HID_DIM, N_HEADS, PF_DIM, N_LAYERS
    dh = D // H
    T = B * S
    HT = H * T

    # Embedding gathers (no clean BlockSpec gather at this size -> plain jnp glue)
    tok = jnp.take(params['tok_emb'], src_tokens.reshape(-1), axis=0)      # (T, D)
    pos = jnp.tile(params['pos_emb'][:S], (B, 1))                          # (T, D)

    # Additive attention bias, built ONCE for all layers/heads:
    #   0 where (same batch element) and (key not padded), else -1e10.
    keep = src_mask[:, 0, :].reshape(-1)                                   # (T,)
    bidx = jnp.repeat(jnp.arange(B), S)                                    # (T,)
    same = bidx[:, None] == bidx[None, :]
    bias_tt = jnp.where(same & (keep[None, :] > 0.0), 0.0, -1e10).astype(jnp.float32)
    attn_bias = jnp.tile(bias_tt, (1, H))                                  # (T, HT)

    # Structural block-diagonal masks for the lane-dense attention matmuls.
    feat_head = jnp.arange(D) // dh                                        # head of feature c
    col_head = jnp.arange(HT) // T                                         # head of score column
    kmask = (feat_head[:, None] == col_head[None, :]).astype(jnp.float32)  # (D, HT)
    vmask = kmask.T                                                        # (HT, D)
    segones = (col_head[:, None] == col_head[None, :]).astype(jnp.float32) # (HT, HT)

    kernel = functools.partial(
        _fused_encoder_kernel,
        n_heads=H,
        emb_scale=math.sqrt(float(D)),
        inv_scale=1.0 / math.sqrt(float(dh)),
    )

    def resident(shape):      # same block every layer step -> loaded once, stays in VMEM
        return pl.BlockSpec(shape, lambda l: (0, 0))

    def per_layer(a):         # stream layer l's slice (auto double-buffered prefetch)
        return pl.BlockSpec((1,) + a.shape[1:], lambda l: (l, 0, 0))

    out_flat = pl.pallas_call(
        kernel,
        out_shape=jax.ShapeDtypeStruct((T, D), jnp.float32),
        grid=(L,),
        in_specs=[
            resident((T, D)),          # tok
            resident((T, D)),          # pos
            resident((T, HT)),         # attn_bias
            resident((D, HT)),         # kmask
            resident((HT, D)),         # vmask
            resident((HT, HT)),        # segones
            per_layer(params['wqkv']), per_layer(params['bqkv']),
            per_layer(params['wo']),   per_layer(params['bo']),
            per_layer(params['w1']),   per_layer(params['b1']),
            per_layer(params['w2']),   per_layer(params['b2']),
            per_layer(params['ln_g']), per_layer(params['ln_b']),
        ],
        out_specs=pl.BlockSpec((T, D), lambda l: (0, 0)),
        scratch_shapes=[pltpu.VMEM((T, D), jnp.float32)],       # activation carry
        compiler_params=pltpu.CompilerParams(
            dimension_semantics=("arbitrary",)),                # layers are sequential
    )(tok, pos, attn_bias, kmask, vmask, segones,
      params['wqkv'], params['bqkv'], params['wo'], params['bo'],
      params['w1'], params['b1'], params['w2'], params['b2'],
      params['ln_g'], params['ln_b'])

    return out_flat.reshape(B, S, D)


# ---------------------------------------------------------------------------
if __name__ == "__main__":
    key = jax.random.PRNGKey(0)
    pkey, dkey = jax.random.split(key)

    params = init_params(pkey)

    src = jax.random.randint(dkey, (BATCH, SEQ), 0, INPUT_DIM, dtype=jnp.int32)
    # emulate a padding mask: last two positions of batch element 1 are padding
    mask = jnp.ones((BATCH, 1, SEQ), jnp.float32)
    mask = mask.at[1, 0, SEQ - 2:].set(0.0)

    fwd = jax.jit(encoder_forward)
    out = fwd(params, src, mask)
    out = jax.block_until_ready(out)

    assert out.shape == (BATCH, SEQ, HID_DIM)
    assert bool(jnp.all(jnp.isfinite(out)))
    print("KERNEL_OK")
</pallas_src>

<mosaic_0001>
module attributes {stable_mosaic.version = 11 : i64} {
  func.func @_fused_encoder_kernel(%arg0: i32, %arg1: memref<16x128xf32, #tpu.memory_space<vmem>>, %arg2: memref<16x128xf32, #tpu.memory_space<vmem>>, %arg3: memref<16x128xf32, #tpu.memory_space<vmem>>, %arg4: memref<128x128xf32, #tpu.memory_space<vmem>>, %arg5: memref<128x128xf32, #tpu.memory_space<vmem>>, %arg6: memref<128x128xf32, #tpu.memory_space<vmem>>, %arg7: memref<1x128x384xbf16, #tpu.memory_space<vmem>>, %arg8: memref<1x1x384xf32, #tpu.memory_space<vmem>>, %arg9: memref<1x128x128xbf16, #tpu.memory_space<vmem>>, %arg10: memref<1x1x128xf32, #tpu.memory_space<vmem>>, %arg11: memref<1x128x2048xbf16, #tpu.memory_space<vmem>>, %arg12: memref<1x1x2048xf32, #tpu.memory_space<vmem>>, %arg13: memref<1x2048x128xbf16, #tpu.memory_space<vmem>>, %arg14: memref<1x1x128xf32, #tpu.memory_space<vmem>>, %arg15: memref<1x1x128xf32, #tpu.memory_space<vmem>>, %arg16: memref<1x1x128xf32, #tpu.memory_space<vmem>>, %arg17: memref<16x128xf32, #tpu.memory_space<vmem>>, %arg18: memref<16x128xf32, #tpu.memory_space<vmem>>) attributes {dimension_semantics = [#tpu.dimension_semantics<arbitrary>], iteration_bounds = array<i64: 3>, scalar_prefetch = 0 : i64, scratch_operands = 1 : i64, tpu.core_type = #tpu.core_type<tc>, window_params = [{pipeline_mode = #tpu.pipeline_mode<synchronous>, transform_indices = @transform_0, window_bounds = array<i64: 16, 128>}, {pipeline_mode = #tpu.pipeline_mode<synchronous>, transform_indices = @transform_1, window_bounds = array<i64: 16, 128>}, {pipeline_mode = #tpu.pipeline_mode<synchronous>, transform_indices = @transform_2, window_bounds = array<i64: 16, 128>}, {pipeline_mode = #tpu.pipeline_mode<synchronous>, transform_indices = @transform_3, window_bounds = array<i64: 128, 128>}, {pipeline_mode = #tpu.pipeline_mode<synchronous>, transform_indices = @transform_4, window_bounds = array<i64: 128, 128>}, {pipeline_mode = #tpu.pipeline_mode<synchronous>, transform_indices = @transform_5, window_bounds = array<i64: 128, 128>}, {transform_indices = @transform_6, window_bounds = array<i64: 1, 128, 384>}, {transform_indices = @transform_7, window_bounds = array<i64: 1, 1, 384>}, {transform_indices = @transform_8, window_bounds = array<i64: 1, 128, 128>}, {transform_indices = @transform_9, window_bounds = array<i64: 1, 1, 128>}, {transform_indices = @transform_10, window_bounds = array<i64: 1, 128, 2048>}, {transform_indices = @transform_11, window_bounds = array<i64: 1, 1, 2048>}, {transform_indices = @transform_12, window_bounds = array<i64: 1, 2048, 128>}, {transform_indices = @transform_13, window_bounds = array<i64: 1, 1, 128>}, {transform_indices = @transform_14, window_bounds = array<i64: 1, 1, 128>}, {transform_indices = @transform_15, window_bounds = array<i64: 1, 1, 128>}, {pipeline_mode = #tpu.pipeline_mode<synchronous>, transform_indices = @transform_16, window_bounds = array<i64: 16, 128>}]} {
    %c0_i32 = arith.constant 0 : i32
    %0 = arith.cmpi eq, %arg0, %c0_i32 : i32
    %1 = arith.extui %0 : i1 to i32
    %c0_i32_0 = arith.constant 0 : i32
    %2 = arith.cmpi ne, %1, %c0_i32_0 : i32
    scf.if %2 {
      %c0_62 = arith.constant 0 : index
      %c0_63 = arith.constant 0 : index
      %113 = vector.load %arg1[%c0_62, %c0_63] : memref<16x128xf32, #tpu.memory_space<vmem>>, vector<16x128xf32>
      %cst_64 = arith.constant 11.3137083 : f32
      %114 = vector.broadcast %cst_64 : f32 to vector<16x128xf32>
      %115 = arith.mulf %113, %114 : vector<16x128xf32>
      %c0_65 = arith.constant 0 : index
      %c0_66 = arith.constant 0 : index
      %116 = vector.load %arg2[%c0_65, %c0_66] : memref<16x128xf32, #tpu.memory_space<vmem>>, vector<16x128xf32>
      %117 = arith.addf %115, %116 : vector<16x128xf32>
      %c0_67 = arith.constant 0 : index
      %c0_68 = arith.constant 0 : index
      %118 = vector.load %arg18[%c0_67, %c0_68] : memref<16x128xf32, #tpu.memory_space<vmem>>, vector<16x128xf32>
      tpu.vector_store %arg18[%c0_67, %c0_68], %117 {strides = array<i32>} : memref<16x128xf32, #tpu.memory_space<vmem>>, vector<16x128xf32>,
    } else {
    }
    %c0 = arith.constant 0 : index
    %c0_1 = arith.constant 0 : index
    %3 = vector.load %arg18[%c0, %c0_1] : memref<16x128xf32, #tpu.memory_space<vmem>>, vector<16x128xf32>
    %c0_2 = arith.constant 0 : index
    %c0_3 = arith.constant 0 : index
    %c0_4 = arith.constant 0 : index
    %4 = vector.load %arg7[%c0_2, %c0_3, %c0_4] : memref<1x128x384xbf16, #tpu.memory_space<vmem>>, vector<1x128x384xbf16>
    %5 = vector.shape_cast %4 : vector<1x128x384xbf16> to vector<128x384xbf16>
    %6 = arith.truncf %3 : vector<16x128xf32> to vector<16x128xbf16>
    %cst = arith.constant dense<0.000000e+00> : vector<16x384xf32>
    %7 = tpu.matmul %6, %5, %cst {dimension_numbers = #tpu.dot_dimension_numbers<[1], [0], [0], [1], [0, 0, 1, 1], [], []>} : vector<16x128xbf16>, vector<128x384xbf16>, vector<16x384xf32> -> vector<16x384xf32>
    %c0_5 = arith.constant 0 : index
    %c0_6 = arith.constant 0 : index
    %c0_7 = arith.constant 0 : index
    %8 = vector.load %arg8[%c0_5, %c0_6, %c0_7] : memref<1x1x384xf32, #tpu.memory_space<vmem>>, vector<1x1x384xf32>
    %9 = vector.shape_cast %8 : vector<1x1x384xf32> to vector<1x384xf32>
    %10 = vector.broadcast %9 : vector<1x384xf32> to vector<16x384xf32>
    %11 = arith.addf %7, %10 : vector<16x384xf32>
    %12 = vector.extract_strided_slice %11 {offsets = [0, 0], sizes = [16, 128], strides = [1, 1]} : vector<16x384xf32> to vector<16x128xf32>
    %13 = vector.extract_strided_slice %11 {offsets = [0, 128], sizes = [16, 128], strides = [1, 1]} : vector<16x384xf32> to vector<16x128xf32>
    %14 = vector.extract_strided_slice %11 {offsets = [0, 256], sizes = [16, 128], strides = [1, 1]} : vector<16x384xf32> to vector<16x128xf32>
    %15 = tpu.concatenate %13, %13, %13, %13, %13, %13, %13, %13 in 0 : vector<16x128xf32>, vector<16x128xf32>, vector<16x128xf32>, vector<16x128xf32>, vector<16x128xf32>, vector<16x128xf32>, vector<16x128xf32>, vector<16x128xf32> -> vector<128x128xf32>
    %16 = tpu.transpose %15, [1, 0] : vector<128x128xf32> -> vector<128x128xf32>
    %c0_8 = arith.constant 0 : index
    %c0_9 = arith.constant 0 : index
    %17 = vector.load %arg4[%c0_8, %c0_9] : memref<128x128xf32, #tpu.memory_space<vmem>>, vector<128x128xf32>
    %18 = arith.mulf %16, %17 : vector<128x128xf32>
    %cst_10 = arith.constant dense<0.000000e+00> : vector<16x128xf32>
    %19 = tpu.matmul %12, %18, %cst_10 {dimension_numbers = #tpu.dot_dimension_numbers<[1], [0], [0], [1], [0, 0, 1, 1], [], []>} : vector<16x128xf32>, vector<128x128xf32>, vector<16x128xf32> -> vector<16x128xf32>
    %cst_11 = arith.constant 2.500000e-01 : f32
    %20 = vector.broadcast %cst_11 : f32 to vector<16x128xf32>
    %21 = arith.mulf %19, %20 : vector<16x128xf32>
    %c0_12 = arith.constant 0 : index
    %c0_13 = arith.constant 0 : index
    %22 = vector.load %arg3[%c0_12, %c0_13] : memref<16x128xf32, #tpu.memory_space<vmem>>, vector<16x128xf32>
    %23 = arith.addf %21, %22 : vector<16x128xf32>
    %cst_14 = arith.constant dense<0xFF800000> : vector<16xf32>
    %24 = vector.multi_reduction <maximumf>, %23, %cst_14 [1] : vector<16x128xf32> to vector<16xf32>
    %25 = vector.shape_cast %24 : vector<16xf32> to vector<16x1xf32>
    %26 = vector.broadcast %25 : vector<16x1xf32> to vector<16x128xf32>
    %27 = arith.subf %23, %26 : vector<16x128xf32>
    %28 = math.exp %27 : vector<16x128xf32>
    %c0_15 = arith.constant 0 : index
    %c0_16 = arith.constant 0 : index
    %29 = vector.load %arg6[%c0_15, %c0_16] : memref<128x128xf32, #tpu.memory_space<vmem>>, vector<128x128xf32>
    %cst_17 = arith.constant dense<0.000000e+00> : vector<16x128xf32>
    %30 = tpu.matmul %28, %29, %cst_17 {dimension_numbers = #tpu.dot_dimension_numbers<[1], [0], [0], [1], [0, 0, 1, 1], [], []>} : vector<16x128xf32>, vector<128x128xf32>, vector<16x128xf32> -> vector<16x128xf32>
    %31 = tpu.reciprocal %30 {approx = true} : vector<16x128xf32> -> vector<16x128xf32>
    %32 = arith.mulf %28, %31 : vector<16x128xf32>
    %33 = tpu.concatenate %14, %14, %14, %14, %14, %14, %14, %14 in 0 : vector<16x128xf32>, vector<16x128xf32>, vector<16x128xf32>, vector<16x128xf32>, vector<16x128xf32>, vector<16x128xf32>, vector<16x128xf32>, vector<16x128xf32> -> vector<128x128xf32>
    %c0_18 = arith.constant 0 : index
    %c0_19 = arith.constant 0 : index
    %34 = vector.load %arg5[%c0_18, %c0_19] : memref<128x128xf32, #tpu.memory_space<vmem>>, vector<128x128xf32>
    %35 = arith.mulf %33, %34 : vector<128x128xf32>
    %cst_20 = arith.constant dense<0.000000e+00> : vector<16x128xf32>
    %36 = tpu.matmul %32, %35, %cst_20 {dimension_numbers = #tpu.dot_dimension_numbers<[1], [0], [0], [1], [0, 0, 1, 1], [], []>} : vector<16x128xf32>, vector<128x128xf32>, vector<16x128xf32> -> vector<16x128xf32>
    %c0_21 = arith.constant 0 : index
    %c0_22 = arith.constant 0 : index
    %c0_23 = arith.constant 0 : index
    %37 = vector.load %arg9[%c0_21, %c0_22, %c0_23] : memref<1x128x128xbf16, #tpu.memory_space<vmem>>, vector<1x128x128xbf16>
    %38 = vector.shape_cast %37 : vector<1x128x128xbf16> to vector<128x128xbf16>
    %39 = arith.truncf %36 : vector<16x128xf32> to vector<16x128xbf16>
    %cst_24 = arith.constant dense<0.000000e+00> : vector<16x128xf32>
    %40 = tpu.matmul %39, %38, %cst_24 {dimension_numbers = #tpu.dot_dimension_numbers<[1], [0], [0], [1], [0, 0, 1, 1], [], []>} : vector<16x128xbf16>, vector<128x128xbf16>, vector<16x128xf32> -> vector<16x128xf32>
    %c0_25 = arith.constant 0 : index
    %c0_26 = arith.constant 0 : index
    %c0_27 = arith.constant 0 : index
    %41 = vector.load %arg10[%c0_25, %c0_26, %c0_27] : memref<1x1x128xf32, #tpu.memory_space<vmem>>, vector<1x1x128xf32>
    %42 = vector.shape_cast %41 : vector<1x1x128xf32> to vector<1x128xf32>
    %43 = vector.broadcast %42 : vector<1x128xf32> to vector<16x128xf32>
    %44 = arith.addf %40, %43 : vector<16x128xf32>
    %c0_28 = arith.constant 0 : index
    %c0_29 = arith.constant 0 : index
    %c0_30 = arith.constant 0 : index
    %45 = vector.load %arg15[%c0_28, %c0_29, %c0_30] : memref<1x1x128xf32, #tpu.memory_space<vmem>>, vector<1x1x128xf32>
    %46 = vector.shape_cast %45 : vector<1x1x128xf32> to vector<1x128xf32>
    %c0_31 = arith.constant 0 : index
    %c0_32 = arith.constant 0 : index
    %c0_33 = arith.constant 0 : index
    %47 = vector.load %arg16[%c0_31, %c0_32, %c0_33] : memref<1x1x128xf32, #tpu.memory_space<vmem>>, vector<1x1x128xf32>
    %48 = vector.shape_cast %47 : vector<1x1x128xf32> to vector<1x128xf32>
    %49 = arith.addf %3, %44 : vector<16x128xf32>
    %cst_34 = arith.constant dense<0.000000e+00> : vector<16xf32>
    %50 = vector.multi_reduction <add>, %49, %cst_34 [1] : vector<16x128xf32> to vector<16xf32>
    %51 = vector.shape_cast %50 : vector<16xf32> to vector<16x1xf32>
    %cst_35 = arith.constant 1.280000e+02 : f32
    %52 = vector.broadcast %cst_35 : f32 to vector<16x1xf32>
    %53 = arith.divf %51, %52 : vector<16x1xf32>
    %54 = vector.broadcast %53 : vector<16x1xf32> to vector<16x128xf32>
    %55 = arith.subf %49, %54 : vector<16x128xf32>
    %56 = arith.mulf %55, %55 : vector<16x128xf32>
    %cst_36 = arith.constant dense<0.000000e+00> : vector<16xf32>
    %57 = vector.multi_reduction <add>, %56, %cst_36 [1] : vector<16x128xf32> to vector<16xf32>
    %58 = vector.shape_cast %57 : vector<16xf32> to vector<16x1xf32>
    %cst_37 = arith.constant 1.280000e+02 : f32
    %59 = vector.broadcast %cst_37 : f32 to vector<16x1xf32>
    %60 = arith.divf %58, %59 : vector<16x1xf32>
    %cst_38 = arith.constant 9.99999974E-6 : f32
    %61 = vector.broadcast %cst_38 : f32 to vector<16x1xf32>
    %62 = arith.addf %60, %61 : vector<16x1xf32>
    %63 = math.rsqrt %62 : vector<16x1xf32>
    %64 = vector.broadcast %63 : vector<16x1xf32> to vector<16x128xf32>
    %65 = arith.mulf %55, %64 : vector<16x128xf32>
    %66 = vector.broadcast %46 : vector<1x128xf32> to vector<16x128xf32>
    %67 = arith.mulf %65, %66 : vector<16x128xf32>
    %68 = vector.broadcast %48 : vector<1x128xf32> to vector<16x128xf32>
    %69 = arith.addf %67, %68 : vector<16x128xf32>
    %c0_39 = arith.constant 0 : index
    %c0_40 = arith.constant 0 : index
    %c0_41 = arith.constant 0 : index
    %70 = vector.load %arg11[%c0_39, %c0_40, %c0_41] : memref<1x128x2048xbf16, #tpu.memory_space<vmem>>, vector<1x128x2048xbf16>
    %71 = vector.shape_cast %70 : vector<1x128x2048xbf16> to vector<128x2048xbf16>
    %72 = arith.truncf %69 : vector<16x128xf32> to vector<16x128xbf16>
    %cst_42 = arith.constant dense<0.000000e+00> : vector<16x2048xf32>
    %73 = tpu.matmul %72, %71, %cst_42 {dimension_numbers = #tpu.dot_dimension_numbers<[1], [0], [0], [1], [0, 0, 1, 1], [], []>} : vector<16x128xbf16>, vector<128x2048xbf16>, vector<16x2048xf32> -> vector<16x2048xf32>
    %c0_43 = arith.constant 0 : index
    %c0_44 = arith.constant 0 : index
    %c0_45 = arith.constant 0 : index
    %74 = vector.load %arg12[%c0_43, %c0_44, %c0_45] : memref<1x1x2048xf32, #tpu.memory_space<vmem>>, vector<1x1x2048xf32>
    %75 = vector.shape_cast %74 : vector<1x1x2048xf32> to vector<1x2048xf32>
    %76 = vector.broadcast %75 : vector<1x2048xf32> to vector<16x2048xf32>
    %77 = arith.addf %73, %76 : vector<16x2048xf32>
    %cst_46 = arith.constant 0.000000e+00 : f32
    %78 = vector.broadcast %cst_46 : f32 to vector<16x2048xf32>
    %79 = arith.maximumf %77, %78 : vector<16x2048xf32>
    %c0_47 = arith.constant 0 : index
    %c0_48 = arith.constant 0 : index
    %c0_49 = arith.constant 0 : index
    %80 = vector.load %arg13[%c0_47, %c0_48, %c0_49] : memref<1x2048x128xbf16, #tpu.memory_space<vmem>>, vector<1x2048x128xbf16>
    %81 = vector.shape_cast %80 : vector<1x2048x128xbf16> to vector<2048x128xbf16>
    %82 = arith.truncf %79 : vector<16x2048xf32> to vector<16x2048xbf16>
    %cst_50 = arith.constant dense<0.000000e+00> : vector<16x128xf32>
    %83 = tpu.matmul %82, %81, %cst_50 {dimension_numbers = #tpu.dot_dimension_numbers<[1], [0], [0], [1], [0, 0, 1, 1], [], []>} : vector<16x2048xbf16>, vector<2048x128xbf16>, vector<16x128xf32> -> vector<16x128xf32>
    %c0_51 = arith.constant 0 : index
    %c0_52 = arith.constant 0 : index
    %c0_53 = arith.constant 0 : index
    %84 = vector.load %arg14[%c0_51, %c0_52, %c0_53] : memref<1x1x128xf32, #tpu.memory_space<vmem>>, vector<1x1x128xf32>
    %85 = vector.shape_cast %84 : vector<1x1x128xf32> to vector<1x128xf32>
    %86 = vector.broadcast %85 : vector<1x128xf32> to vector<16x128xf32>
    %87 = arith.addf %83, %86 : vector<16x128xf32>
    %88 = arith.addf %69, %87 : vector<16x128xf32>
    %cst_54 = arith.constant dense<0.000000e+00> : vector<16xf32>
    %89 = vector.multi_reduction <add>, %88, %cst_54 [1] : vector<16x128xf32> to vector<16xf32>
    %90 = vector.shape_cast %89 : vector<16xf32> to vector<16x1xf32>
    %cst_55 = arith.constant 1.280000e+02 : f32
    %91 = vector.broadcast %cst_55 : f32 to vector<16x1xf32>
    %92 = arith.divf %90, %91 : vector<16x1xf32>
    %93 = vector.broadcast %92 : vector<16x1xf32> to vector<16x128xf32>
    %94 = arith.subf %88, %93 : vector<16x128xf32>
    %95 = arith.mulf %94, %94 : vector<16x128xf32>
    %cst_56 = arith.constant dense<0.000000e+00> : vector<16xf32>
    %96 = vector.multi_reduction <add>, %95, %cst_56 [1] : vector<16x128xf32> to vector<16xf32>
    %97 = vector.shape_cast %96 : vector<16xf32> to vector<16x1xf32>
    %cst_57 = arith.constant 1.280000e+02 : f32
    %98 = vector.broadcast %cst_57 : f32 to vector<16x1xf32>
    %99 = arith.divf %97, %98 : vector<16x1xf32>
    %cst_58 = arith.constant 9.99999974E-6 : f32
    %100 = vector.broadcast %cst_58 : f32 to vector<16x1xf32>
    %101 = arith.addf %99, %100 : vector<16x1xf32>
    %102 = math.rsqrt %101 : vector<16x1xf32>
    %103 = vector.broadcast %102 : vector<16x1xf32> to vector<16x128xf32>
    %104 = arith.mulf %94, %103 : vector<16x128xf32>
    %105 = vector.broadcast %46 : vector<1x128xf32> to vector<16x128xf32>
    %106 = arith.mulf %104, %105 : vector<16x128xf32>
    %107 = vector.broadcast %48 : vector<1x128xf32> to vector<16x128xf32>
    %108 = arith.addf %106, %107 : vector<16x128xf32>
    %c0_59 = arith.constant 0 : index
    %c0_60 = arith.constant 0 : index
    %109 = vector.load %arg18[%c0_59, %c0_60] : memref<16x128xf32, #tpu.memory_space<vmem>>, vector<16x128xf32>
    tpu.vector_store %arg18[%c0_59, %c0_60], %108 {strides = array<i32>} : memref<16x128xf32, #tpu.memory_space<vmem>>, vector<16x128xf32>,
    %c2_i32 = arith.constant 2 : i32
    %110 = arith.cmpi eq, %arg0, %c2_i32 : i32
    %111 = arith.extui %110 : i1 to i32
    %c0_i32_61 = arith.constant 0 : i32
    %112 = arith.cmpi ne, %111, %c0_i32_61 : i32
    scf.if %112 {
      %c0_62 = arith.constant 0 : index
      %c0_63 = arith.constant 0 : index
      %113 = vector.load %arg17[%c0_62, %c0_63] : memref<16x128xf32, #tpu.memory_space<vmem>>, vector<16x128xf32>
      tpu.vector_store %arg17[%c0_62, %c0_63], %108 {strides = array<i32>} : memref<16x128xf32, #tpu.memory_space<vmem>>, vector<16x128xf32>,
    } else {
    }
    return
  }
  func.func @transform_0(%arg0: i32) -> (i32, i32) {
    %c0_i32 = arith.constant 0 : i32
    %c0_i32_0 = arith.constant 0 : i32
    %c0_i32_1 = arith.constant 0 : i32
    return %c0_i32, %c0_i32_0 : i32, i32
  }
  func.func @transform_1(%arg0: i32) -> (i32, i32) {
    %c0_i32 = arith.constant 0 : i32
    %c0_i32_0 = arith.constant 0 : i32
    %c0_i32_1 = arith.constant 0 : i32
    return %c0_i32, %c0_i32_0 : i32, i32
  }
  func.func @transform_2(%arg0: i32) -> (i32, i32) {
    %c0_i32 = arith.constant 0 : i32
    %c0_i32_0 = arith.constant 0 : i32
    %c0_i32_1 = arith.constant 0 : i32
    return %c0_i32, %c0_i32_0 : i32, i32
  }
  func.func @transform_3(%arg0: i32) -> (i32, i32) {
    %c0_i32 = arith.constant 0 : i32
    %c0_i32_0 = arith.constant 0 : i32
    %c0_i32_1 = arith.constant 0 : i32
    return %c0_i32, %c0_i32_0 : i32, i32
  }
  func.func @transform_4(%arg0: i32) -> (i32, i32) {
    %c0_i32 = arith.constant 0 : i32
    %c0_i32_0 = arith.constant 0 : i32
    %c0_i32_1 = arith.constant 0 : i32
    return %c0_i32, %c0_i32_0 : i32, i32
  }
  func.func @transform_5(%arg0: i32) -> (i32, i32) {
    %c0_i32 = arith.constant 0 : i32
    %c0_i32_0 = arith.constant 0 : i32
    %c0_i32_1 = arith.constant 0 : i32
    return %c0_i32, %c0_i32_0 : i32, i32
  }
  func.func @transform_6(%arg0: i32) -> (i32, i32, i32) {
    %c0_i32 = arith.constant 0 : i32
    %c0_i32_0 = arith.constant 0 : i32
    %c0_i32_1 = arith.constant 0 : i32
    return %arg0, %c0_i32, %c0_i32_0 : i32, i32, i32
  }
  func.func @transform_7(%arg0: i32) -> (i32, i32, i32) {
    %c0_i32 = arith.constant 0 : i32
    %c0_i32_0 = arith.constant 0 : i32
    %c0_i32_1 = arith.constant 0 : i32
    return %arg0, %c0_i32, %c0_i32_0 : i32, i32, i32
  }
  func.func @transform_8(%arg0: i32) -> (i32, i32, i32) {
    %c0_i32 = arith.constant 0 : i32
    %c0_i32_0 = arith.constant 0 : i32
    %c0_i32_1 = arith.constant 0 : i32
    return %arg0, %c0_i32, %c0_i32_0 : i32, i32, i32
  }
  func.func @transform_9(%arg0: i32) -> (i32, i32, i32) {
    %c0_i32 = arith.constant 0 : i32
    %c0_i32_0 = arith.constant 0 : i32
    %c0_i32_1 = arith.constant 0 : i32
    return %arg0, %c0_i32, %c0_i32_0 : i32, i32, i32
  }
  func.func @transform_10(%arg0: i32) -> (i32, i32, i32) {
    %c0_i32 = arith.constant 0 : i32
    %c0_i32_0 = arith.constant 0 : i32
    %c0_i32_1 = arith.constant 0 : i32
    return %arg0, %c0_i32, %c0_i32_0 : i32, i32, i32
  }
  func.func @transform_11(%arg0: i32) -> (i32, i32, i32) {
    %c0_i32 = arith.constant 0 : i32
    %c0_i32_0 = arith.constant 0 : i32
    %c0_i32_1 = arith.constant 0 : i32
    return %arg0, %c0_i32, %c0_i32_0 : i32, i32, i32
  }
  func.func @transform_12(%arg0: i32) -> (i32, i32, i32) {
    %c0_i32 = arith.constant 0 : i32
    %c0_i32_0 = arith.constant 0 : i32
    %c0_i32_1 = arith.constant 0 : i32
    return %arg0, %c0_i32, %c0_i32_0 : i32, i32, i32
  }
  func.func @transform_13(%arg0: i32) -> (i32, i32, i32) {
    %c0_i32 = arith.constant 0 : i32
    %c0_i32_0 = arith.constant 0 : i32
    %c0_i32_1 = arith.constant 0 : i32
    return %arg0, %c0_i32, %c0_i32_0 : i32, i32, i32
  }
  func.func @transform_14(%arg0: i32) -> (i32, i32, i32) {
    %c0_i32 = arith.constant 0 : i32
    %c0_i32_0 = arith.constant 0 : i32
    %c0_i32_1 = arith.constant 0 : i32
    return %arg0, %c0_i32, %c0_i32_0 : i32, i32, i32
  }
  func.func @transform_15(%arg0: i32) -> (i32, i32, i32) {
    %c0_i32 = arith.constant 0 : i32
    %c0_i32_0 = arith.constant 0 : i32
    %c0_i32_1 = arith.constant 0 : i32
    return %arg0, %c0_i32, %c0_i32_0 : i32, i32, i32
  }
  func.func @transform_16(%arg0: i32) -> (i32, i32) {
    %c0_i32 = arith.constant 0 : i32
    %c0_i32_0 = arith.constant 0 : i32
    %c0_i32_1 = arith.constant 0 : i32
    return %c0_i32, %c0_i32_0 : i32, i32
  }
}

</mosaic_0001>

<llo_original>
// kernel: tile.19
$region0: #{tile.19}
  %s0 = inlined_call_operand.vmem [shape: f32[16,8,16], index: 0, kind: input, shape index: {}]
  %s1 = inlined_call_operand.vmem [shape: f32[16,128], index: 1, kind: output, shape index: {}]
  %v2 = vld [vmem:[%s0] ss:$8 sm:$0xf]
  %v3 = vld [vmem:[%s0] ss:$8 sm:$0xf0]
  %vm4 = vcmask 1047556
  %v5 = vsel %vm4, %v3, %v2
  %vm6 = vcmask 130048
  %7 = vst.msk [vmem:[%s1] sm:$0xff] %vm6, %v5
  %s8 = scalar_lea.vmem %s0, 64
  %v9 = vld [vmem:[%s8] ss:$8 sm:$0xf]
  %s10 = scalar_lea.vmem %s0, 64
  %v11 = vld [vmem:[%s10] ss:$8 sm:$0xf0]
  %vm12 = vcmask 1047556
  %v13 = vsel %vm12, %v11, %v9
  %vm14 = vcmask 130048
  %s15 = scalar_lea.vmem %s1, 8
  %16 = vst.msk [vmem:[%s15] sm:$0xff] %vm14, %v13
  %s17 = scalar_lea.vmem %s0, 7
  %v18 = vld [vmem:[%s17] ss:$8 sm:$0xf]
  %s19 = scalar_lea.vmem %s0, 7
  %v20 = vld [vmem:[%s19] ss:$8 sm:$0xf0]
  %vm21 = vcmask 1047556
  %v22 = vsel %vm21, %v20, %v18
  %23 = vrot.lane.b32.xlu0 %v22, 112
  %v24 = vpop.permute.xlu0 %23
  %vm25 = vcmask 1048448
  %26 = vst.msk [vmem:[%s1] sm:$0xff] %vm25, %v24
  %s27 = scalar_lea.vmem %s0, 71
  %v28 = vld [vmem:[%s27] ss:$8 sm:$0xf]
  %s29 = scalar_lea.vmem %s0, 71
  %v30 = vld [vmem:[%s29] ss:$8 sm:$0xf0]
  %vm31 = vcmask 1047556
  %v32 = vsel %vm31, %v30, %v28
  %33 = vrot.lane.b32.xlu0 %v32, 112
  %v34 = vpop.permute.xlu0 %33
  %vm35 = vcmask 1048448
  %s36 = scalar_lea.vmem %s1, 8
  %37 = vst.msk [vmem:[%s36] sm:$0xff] %vm35, %v34
  %s38 = scalar_lea.vmem %s0, 6
  %v39 = vld [vmem:[%s38] ss:$8 sm:$0xf]
  %s40 = scalar_lea.vmem %s0, 6
  %v41 = vld [vmem:[%s40] ss:$8 sm:$0xf0]
  %vm42 = vcmask 1047556
  %v43 = vsel %vm42, %v41, %v39
  %44 = vrot.lane.b32.xlu0 %v43, 96
  %v45 = vpop.permute.xlu0 %44
  %vm46 = vcmask 917248
  %47 = vst.msk [vmem:[%s1] sm:$0xff] %vm46, %v45
  %s48 = scalar_lea.vmem %s0, 70
  %v49 = vld [vmem:[%s48] ss:$8 sm:$0xf]
  %s50 = scalar_lea.vmem %s0, 70
  %v51 = vld [vmem:[%s50] ss:$8 sm:$0xf0]
  %vm52 = vcmask 1047556
  %v53 = vsel %vm52, %v51, %v49
  %54 = vrot.lane.b32.xlu0 %v53, 96
  %v55 = vpop.permute.xlu0 %54
  %vm56 = vcmask 917248
  %s57 = scalar_lea.vmem %s1, 8
  %58 = vst.msk [vmem:[%s57] sm:$0xff] %vm56, %v55
  %s59 = scalar_lea.vmem %s0, 5
  %v60 = vld [vmem:[%s59] ss:$8 sm:$0xf]
  %s61 = scalar_lea.vmem %s0, 5
  %v62 = vld [vmem:[%s61] ss:$8 sm:$0xf0]
  %vm63 = vcmask 1047556
  %v64 = vsel %vm63, %v62, %v60
  %65 = vrot.lane.b32.xlu0 %v64, 80
  %v66 = vpop.permute.xlu0 %65
  %vm67 = vcmask 786048
  %68 = vst.msk [vmem:[%s1] sm:$0xff] %vm67, %v66
  %s69 = scalar_lea.vmem %s0, 69
  %v70 = vld [vmem:[%s69] ss:$8 sm:$0xf]
  %s71 = scalar_lea.vmem %s0, 69
  %v72 = vld [vmem:[%s71] ss:$8 sm:$0xf0]
  %vm73 = vcmask 1047556
  %v74 = vsel %vm73, %v72, %v70
  %75 = vrot.lane.b32.xlu0 %v74, 80
  %v76 = vpop.permute.xlu0 %75
  %vm77 = vcmask 786048
  %s78 = scalar_lea.vmem %s1, 8
  %79 = vst.msk [vmem:[%s78] sm:$0xff] %vm77, %v76
  %s80 = scalar_lea.vmem %s0, 4
  %v81 = vld [vmem:[%s80] ss:$8 sm:$0xf]
  %s82 = scalar_lea.vmem %s0, 4
  %v83 = vld [vmem:[%s82] ss:$8 sm:$0xf0]
  %vm84 = vcmask 1047556
  %v85 = vsel %vm84, %v83, %v81
  %86 = vrot.lane.b32.xlu0 %v85, 64
  %v87 = vpop.permute.xlu0 %86
  %vm88 = vcmask 654848
  %89 = vst.msk [vmem:[%s1] sm:$0xff] %vm88, %v87
  %s90 = scalar_lea.vmem %s0, 68
  %v91 = vld [vmem:[%s90] ss:$8 sm:$0xf]
  %s92 = scalar_lea.vmem %s0, 68
  %v93 = vld [vmem:[%s92] ss:$8 sm:$0xf0]
  %vm94 = vcmask 1047556
  %v95 = vsel %vm94, %v93, %v91
  %96 = vrot.lane.b32.xlu0 %v95, 64
  %v97 = vpop.permute.xlu0 %96
  %vm98 = vcmask 654848
  %s99 = scalar_lea.vmem %s1, 8
  %100 = vst.msk [vmem:[%s99] sm:$0xff] %vm98, %v97
  %s101 = scalar_lea.vmem %s0, 3
  %v102 = vld [vmem:[%s101] ss:$8 sm:$0xf]
  %s103 = scalar_lea.vmem %s0, 3
  %v104 = vld [vmem:[%s103] ss:$8 sm:$0xf0]
  %vm105 = vcmask 1047556
  %v106 = vsel %vm105, %v104, %v102
  %107 = vrot.lane.b32.xlu0 %v106, 48
  %v108 = vpop.permute.xlu0 %107
  %vm109 = vcmask 523648
  %110 = vst.msk [vmem:[%s1] sm:$0xff] %vm109, %v108
  %s111 = scalar_lea.vmem %s0, 67
  %v112 = vld [vmem:[%s111] ss:$8 sm:$0xf]
  %s113 = scalar_lea.vmem %s0, 67
  %v114 = vld [vmem:[%s113] ss:$8 sm:$0xf0]
  %vm115 = vcmask 1047556
  %v116 = vsel %vm115, %v114, %v112
  %117 = vrot.lane.b32.xlu0 %v116, 48
  %v118 = vpop.permute.xlu0 %117
  %vm119 = vcmask 523648
  %s120 = scalar_lea.vmem %s1, 8
  %121 = vst.msk [vmem:[%s120] sm:$0xff] %vm119, %v118
  %s122 = scalar_lea.vmem %s0, 2
  %v123 = vld [vmem:[%s122] ss:$8 sm:$0xf]
  %s124 = scalar_lea.vmem %s0, 2
  %v125 = vld [vmem:[%s124] ss:$8 sm:$0xf0]
  %vm126 = vcmask 1047556
  %v127 = vsel %vm126, %v125, %v123
  %128 = vrot.lane.b32.xlu0 %v127, 32
  %v129 = vpop.permute.xlu0 %128
  %vm130 = vcmask 392448
  %131 = vst.msk [vmem:[%s1] sm:$0xff] %vm130, %v129
  %s132 = scalar_lea.vmem %s0, 66
  %v133 = vld [vmem:[%s132] ss:$8 sm:$0xf]
  %s134 = scalar_lea.vmem %s0, 66
  %v135 = vld [vmem:[%s134] ss:$8 sm:$0xf0]
  %vm136 = vcmask 1047556
  %v137 = vsel %vm136, %v135, %v133
  %138 = vrot.lane.b32.xlu0 %v137, 32
  %v139 = vpop.permute.xlu0 %138
  %vm140 = vcmask 392448
  %s141 = scalar_lea.vmem %s1, 8
  %142 = vst.msk [vmem:[%s141] sm:$0xff] %vm140, %v139
  %s143 = scalar_lea.vmem %s0, 1
  %v144 = vld [vmem:[%s143] ss:$8 sm:$0xf]
  %s145 = scalar_lea.vmem %s0, 1
  %v146 = vld [vmem:[%s145] ss:$8 sm:$0xf0]
  %vm147 = vcmask 1047556
  %v148 = vsel %vm147, %v146, %v144
  %149 = vrot.lane.b32.xlu0 %v148, 16
  %v150 = vpop.permute.xlu0 %149
  %vm151 = vcmask 261248
  %152 = vst.msk [vmem:[%s1] sm:$0xff] %vm151, %v150
  %s153 = scalar_lea.vmem %s0, 65
  %v154 = vld [vmem:[%s153] ss:$8 sm:$0xf]
  %s155 = scalar_lea.vmem %s0, 65
  %v156 = vld [vmem:[%s155] ss:$8 sm:$0xf0]
  %vm157 = vcmask 1047556
  %v158 = vsel %vm157, %v156, %v154
  %159 = vrot.lane.b32.xlu0 %v158, 16
  %v160 = vpop.permute.xlu0 %159
  %vm161 = vcmask 261248
  %s162 = scalar_lea.vmem %s1, 8
  %163 = vst.msk [vmem:[%s162] sm:$0xff] %vm161, %v160

// kernel: encoder_forward.1
$region0: #{encoder_forward.1}
  #allocation0 [shape = 'u32[]', space=smem, size = 0x4, offset = 0x4, fixed_abs, tag = 'smem constant byte address 0x4 - core index']
  #allocation1 [shape = 'u32[144,128]{1,0:T(1,128)}', space=vmem, size = 0x12000, scoped, tag = 'internal scratch']
  #allocation2 [shape = 'f32[16,128]{1,0:T(8,128)}', space=vmem, size = 0x2000, scoped, tag = 'scratch operand']
  %s0 = inlined_call_operand.vmem [shape: f32[16,128], index: 0, kind: input, shape index: {}]
  %s1 = inlined_call_operand.vmem [shape: f32[16,128], index: 1, kind: input, shape index: {}]
  %s2 = inlined_call_operand.vmem [shape: f32[16,128], index: 2, kind: input, shape index: {}]
  %s3 = inlined_call_operand.vmem [shape: f32[128,128], index: 3, kind: input, shape index: {}, may-alias: {3,5}]
  %s4 = inlined_call_operand.vmem [shape: f32[128,128], index: 4, kind: input, shape index: {}]
  %s5 = inlined_call_operand.vmem [shape: f32[128,128], index: 5, kind: input, shape index: {}, may-alias: {3,5}]
  %s6 = inlined_call_operand.hbm [shape: bf16[3,128,384], index: 6, kind: input, shape index: {}]
  %s7 = inlined_call_operand.hbm [shape: f32[3,1,384], index: 7, kind: input, shape index: {}]
  %s8 = inlined_call_operand.hbm [shape: bf16[3,128,128], index: 8, kind: input, shape index: {}]
  %s9 = inlined_call_operand.hbm [shape: f32[3,1,128], index: 9, kind: input, shape index: {}]
  %s10 = inlined_call_operand.hbm [shape: bf16[3,128,2048], index: 10, kind: input, shape index: {}]
  %s11 = inlined_call_operand.hbm [shape: f32[3,1,2048], index: 11, kind: input, shape index: {}]
  %s12 = inlined_call_operand.hbm [shape: bf16[3,2048,128], index: 12, kind: input, shape index: {}]
  %s13 = inlined_call_operand.hbm [shape: f32[3,1,128], index: 13, kind: input, shape index: {}]
  %s14 = inlined_call_operand.hbm [shape: f32[3,1,128], index: 14, kind: input, shape index: {}]
  %s15 = inlined_call_operand.hbm [shape: f32[3,1,128], index: 15, kind: input, shape index: {}]
  %s16 = inlined_call_operand.hbm [shape: f32[16,128], index: 16, kind: output, shape index: {}]
  %s17 = sld [smem:[#allocation0]]
  $region145: #{encoder_forward.1} parent=0
    _
  %s19 = ssub.s32 1, %s17
  %s20 = scalar_select 0, %s19, %s17
  $region1: #{encoder_forward.1} parent=0
    #allocation3 [shape = 'u8[196608]{0}', space=vmem, size = 0x30000, scoped, tag = 'input window, operand 6']
    #allocation4 [shape = 's32[2]{0}', space=sflag, size = 0x8, scoped, tag = 'scoped memory for encoder_forward.1']
    #allocation5 [shape = 's32[2]{0}', space=sflag, size = 0x8, scoped, tag = 'scoped memory for encoder_forward.1']
    #allocation6 [shape = 'u8[3072]{0}', space=vmem, size = 0xc00, scoped, tag = 'input window, operand 7']
    #allocation7 [shape = 's32[2]{0}', space=sflag, size = 0x8, scoped, tag = 'scoped memory for encoder_forward.1']
    #allocation8 [shape = 'u8[65536]{0}', space=vmem, size = 0x10000, scoped, tag = 'input window, operand 8']
    #allocation9 [shape = 'u8[1024]{0}', space=vmem, size = 0x400, scoped, tag = 'input window, operand 9']
    #allocation10 [shape = 's32[2]{0}', space=sflag, size = 0x8, scoped, tag = 'scoped memory for encoder_forward.1']
    #allocation11 [shape = 'u8[1048576]{0}', space=vmem, size = 0x100000, scoped, tag = 'input window, operand 10']
    #allocation12 [shape = 'u8[16384]{0}', space=vmem, size = 0x4000, scoped, tag = 'input window, operand 11']
    #allocation13 [shape = 's32[2]{0}', space=sflag, size = 0x8, scoped, tag = 'scoped memory for encoder_forward.1']
    #allocation14 [shape = 'u8[1048576]{0}', space=vmem, size = 0x100000, scoped, tag = 'input window, operand 12']
    #allocation15 [shape = 'u8[1024]{0}', space=vmem, size = 0x400, scoped, tag = 'input window, operand 13']
    #allocation16 [shape = 's32[2]{0}', space=sflag, size = 0x8, scoped, tag = 'scoped memory for encoder_forward.1']
    #allocation17 [shape = 'u8[1024]{0}', space=vmem, size = 0x400, scoped, tag = 'input window, operand 14']
    #allocation18 [shape = 'u8[1024]{0}', space=vmem, size = 0x400, scoped, tag = 'input window, operand 15']
    #allocation19 [shape = 's32[2]{0}', space=sflag, size = 0x8, scoped, tag = 'scoped memory for encoder_forward.1']
    #allocation20 [shape = 'u8[8192]{0}', space=vmem, size = 0x2000, scoped, tag = 'output window, operand 0, single buffered']
    %21 = vsyncpa [#allocation4], 0
    %s22 = scalar_lea.sflag [#allocation4], 1
    %23 = vsyncpa %s22, 0
    %24 = vsyncpa [#allocation7], 0
    %s25 = scalar_lea.sflag [#allocation7], 1
    %26 = vsyncpa %s25, 0
    %27 = vsyncpa [#allocation10], 0
    %s28 = scalar_lea.sflag [#allocation10], 1
    %29 = vsyncpa %s28, 0
    %30 = vsyncpa [#allocation13], 0
    %s31 = scalar_lea.sflag [#allocation13], 1
    %32 = vsyncpa %s31, 0
    %33 = vsyncpa [#allocation16], 0
    %s34 = scalar_lea.sflag [#allocation16], 1
    %35 = vsyncpa %s34, 0
    %36 = vsyncpa [#allocation19], 0
    %s37 = scalar_lea.sflag [#allocation19], 1
    %38 = vsyncpa %s37, 0
    %39 = vsyncpa [#allocation5], 0
    loop: start=0, step=1, limit=5
    $region2: #{encoder_forward.1} parent=1 // loop_pre_header
      _
    $region3: #{encoder_forward.1} parent=1 // loop_header
      %s41 = sphi 0, %s45
      %p42 = scmp.ge.s32.totalorder %s41, 5
      %s49 = sphi 0, %s49
      %s51 = sphi 0, %s49
      %s52 = sphi 0, %s51
      %s66 = sphi 0, %s52
      %s70 = sphi 0, %s70
      %s72 = sphi 0, %s70
      %s73 = sphi 0, %s72
      %s87 = sphi 0, %s73
      %s91 = sphi 0, %s91
      %s93 = sphi 0, %s91
      %s94 = sphi 0, %s93
      %s108 = sphi 0, %s94
      %s112 = sphi 0, %s112
      %s114 = sphi 0, %s112
      %s115 = sphi 0, %s114
      %s129 = sphi 0, %s115
      %s133 = sphi 0, %s133
      %s135 = sphi 0, %s133
      %s136 = sphi 0, %s135
      %s150 = sphi 0, %s136
      %s154 = sphi 0, %s154
      %s156 = sphi 0, %s154
      %s157 = sphi 0, %s156
      %s171 = sphi 0, %s157
      %s177 = sphi 0, %s179
      %s180 = sphi 0, %s177
      %s181 = sphi 0, %s180
      %s197 = sphi 0, %s181
      %s203 = sphi 0, %s205
      %s206 = sphi 0, %s203
      %s207 = sphi 0, %s206
      %s223 = sphi 0, %s207
      %s229 = sphi 0, %s231
      %s232 = sphi 0, %s229
      %s233 = sphi 0, %s232
      %s249 = sphi 0, %s233
      %s255 = sphi 0, %s257
      %s258 = sphi 0, %s255
      %s259 = sphi 0, %s258
      %s275 = sphi 0, %s259
      %s281 = sphi 0, %s283
      %s284 = sphi 0, %s281
      %s285 = sphi 0, %s284
      %s301 = sphi 0, %s285
      %s307 = sphi 0, %s309
      %s310 = sphi 0, %s307
      %s311 = sphi 0, %s310
      %s327 = sphi 0, %s311
      %s333 = sphi 0, %s335
      %s336 = sphi 0, %s333
      %s337 = sphi 0, %s336
      %s353 = sphi 0, %s337
      %s359 = sphi 0, %s361
      %s362 = sphi 0, %s359
      %s363 = sphi 0, %s362
      %s379 = sphi 0, %s363
      %s385 = sphi 0, %s387
      %s388 = sphi 0, %s385
      %s389 = sphi 0, %s388
      %s405 = sphi 0, %s389
      %s411 = sphi 0, %s413
      %s414 = sphi 0, %s411
      %s415 = sphi 0, %s414
      %s431 = sphi 0, %s415
      %s435 = sphi 0, %s435
      %s437 = sphi 0, %s435
      %s438 = sphi 0, %s437
      %s452 = sphi 0, %s438
    $region4: #{encoder_forward.1} parent=1 // loop_header_branch
      %44 = sbr.rel (%p42) target = $region8
    $region5: #{encoder_forward.1} parent=1 // loop_body
      %s46 = ssub.s32 %s41, 1
      %s47 = ssub.s32 %s41, 2
      %s48 = sadd.s32 %s41, 1
      %s50 = sadd.s32 %s49, 1
      %p53 = scmp.eq.s32.totalorder %s41, 2
      %p54 = scmp.ne.s32.totalorder %s49, %s51
      %p55 = scmp.eq.s32.totalorder %s41, 0
      %p56 = por %p54, %p55
      %p57 = scmp.ne.s32.totalorder %s49, %s51
      %p58 = scmp.eq.s32.totalorder %s46, 2
      %p59 = por %p57, %p58
      %p60 = scmp.ne.s32.totalorder %s51, %s52
      %p61 = scmp.eq.s32.totalorder %s46, 0
      %p62 = por %p60, %p61
      %p63 = scmp.ne.s32.totalorder %s51, %s52
      %p64 = scmp.eq.s32.totalorder %s47, 2
      %p65 = por %p63, %p64
      %p67 = scmp.ne.s32.totalorder %s52, %s66
      %p68 = scmp.eq.s32.totalorder %s47, 0
      %p69 = por %p67, %p68
      %s71 = sadd.s32 %s70, 1
      %p74 = scmp.eq.s32.totalorder %s41, 2
      %p75 = scmp.ne.s32.totalorder %s70, %s72
      %p76 = scmp.eq.s32.totalorder %s41, 0
      %p77 = por %p75, %p76
      %p78 = scmp.ne.s32.totalorder %s70, %s72
      %p79 = scmp.eq.s32.totalorder %s46, 2
      %p80 = por %p78, %p79
      %p81 = scmp.ne.s32.totalorder %s72, %s73
      %p82 = scmp.eq.s32.totalorder %s46, 0
      %p83 = por %p81, %p82
      %p84 = scmp.ne.s32.totalorder %s72, %s73
      %p85 = scmp.eq.s32.totalorder %s47, 2
      %p86 = por %p84, %p85
      %p88 = scmp.ne.s32.totalorder %s73, %s87
      %p89 = scmp.eq.s32.totalorder %s47, 0
      %p90 = por %p88, %p89
      %s92 = sadd.s32 %s91, 1
      %p95 = scmp.eq.s32.totalorder %s41, 2
      %p96 = scmp.ne.s32.totalorder %s91, %s93
      %p97 = scmp.eq.s32.totalorder %s41, 0
      %p98 = por %p96, %p97
      %p99 = scmp.ne.s32.totalorder %s91, %s93
      %p100 = scmp.eq.s32.totalorder %s46, 2
      %p101 = por %p99, %p100
      %p102 = scmp.ne.s32.totalorder %s93, %s94
      %p103 = scmp.eq.s32.totalorder %s46, 0
      %p104 = por %p102, %p103
      %p105 = scmp.ne.s32.totalorder %s93, %s94
      %p106 = scmp.eq.s32.totalorder %s47, 2
      %p107 = por %p105, %p106
      %p109 = scmp.ne.s32.totalorder %s94, %s108
      %p110 = scmp.eq.s32.totalorder %s47, 0
      %p111 = por %p109, %p110
      %s113 = sadd.s32 %s112, 1
      %p116 = scmp.eq.s32.totalorder %s41, 2
      %p117 = scmp.ne.s32.totalorder %s112, %s114
      %p118 = scmp.eq.s32.totalorder %s41, 0
      %p119 = por %p117, %p118
      %p120 = scmp.ne.s32.totalorder %s112, %s114
      %p121 = scmp.eq.s32.totalorder %s46, 2
      %p122 = por %p120, %p121
      %p123 = scmp.ne.s32.totalorder %s114, %s115
      %p124 = scmp.eq.s32.totalorder %s46, 0
      %p125 = por %p123, %p124
      %p126 = scmp.ne.s32.totalorder %s114, %s115
      %p127 = scmp.eq.s32.totalorder %s47, 2
      %p128 = por %p126, %p127
      %p130 = scmp.ne.s32.totalorder %s115, %s129
      %p131 = scmp.eq.s32.totalorder %s47, 0
      %p132 = por %p130, %p131
      %s134 = sadd.s32 %s133, 1
      %p137 = scmp.eq.s32.totalorder %s41, 2
      %p138 = scmp.ne.s32.totalorder %s133, %s135
      %p139 = scmp.eq.s32.totalorder %s41, 0
      %p140 = por %p138, %p139
      %p141 = scmp.ne.s32.totalorder %s133, %s135
      %p142 = scmp.eq.s32.totalorder %s46, 2
      %p143 = por %p141, %p142
      %p144 = scmp.ne.s32.totalorder %s135, %s136
      %p145 = scmp.eq.s32.totalorder %s46, 0
      %p146 = por %p144, %p145
      %p147 = scmp.ne.s32.totalorder %s135, %s136
      %p148 = scmp.eq.s32.totalorder %s47, 2
      %p149 = por %p147, %p148
      %p151 = scmp.ne.s32.totalorder %s136, %s150
      %p152 = scmp.eq.s32.totalorder %s47, 0
      %p153 = por %p151, %p152
      %s155 = sadd.s32 %s154, 1
      %p158 = scmp.eq.s32.totalorder %s41, 2
      %p159 = scmp.ne.s32.totalorder %s154, %s156
      %p160 = scmp.eq.s32.totalorder %s41, 0
      %p161 = por %p159, %p160
      %p162 = scmp.ne.s32.totalorder %s154, %s156
      %p163 = scmp.eq.s32.totalorder %s46, 2
      %p164 = por %p162, %p163
      %p165 = scmp.ne.s32.totalorder %s156, %s157
      %p166 = scmp.eq.s32.totalorder %s46, 0
      %p167 = por %p165, %p166
      %p168 = scmp.ne.s32.totalorder %s156, %s157
      %p169 = scmp.eq.s32.totalorder %s47, 2
      %p170 = por %p168, %p169
      %p172 = scmp.ne.s32.totalorder %s157, %s171
      %p173 = scmp.eq.s32.totalorder %s47, 0
      %p174 = por %p172, %p173
      %s175 = ssub.s32 %s41, %s48
      %p176 = scmp.eq.s32.totalorder %s175, 0
      %s178 = sadd.s32 %s177, 1
      %s179 = scalar_select %p176, %s177, %s178
      %p182 = pneg %p176
      %p183 = scmp.eq.s32.totalorder %s41, 2
      %p184 = por %p182, %p183
      %p185 = scmp.ne.s32.totalorder %s177, %s180
      %p186 = scmp.eq.s32.totalorder %s41, 0
      %p187 = por %p185, %p186
      %p188 = scmp.ne.s32.totalorder %s177, %s180
      %p189 = scmp.eq.s32.totalorder %s46, 2
      %p190 = por %p188, %p189
      %p191 = scmp.ne.s32.totalorder %s180, %s181
      %p192 = scmp.eq.s32.totalorder %s46, 0
      %p193 = por %p191, %p192
      %p194 = scmp.ne.s32.totalorder %s180, %s181
      %p195 = scmp.eq.s32.totalorder %s47, 2
      %p196 = por %p194, %p195
      %p198 = scmp.ne.s32.totalorder %s181, %s197
      %p199 = scmp.eq.s32.totalorder %s47, 0
      %p200 = por %p198, %p199
      %s201 = ssub.s32 %s41, %s48
      %p202 = scmp.eq.s32.totalorder %s201, 0
      %s204 = sadd.s32 %s203, 1
      %s205 = scalar_select %p202, %s203, %s204
      %p208 = pneg %p202
      %p209 = scmp.eq.s32.totalorder %s41, 2
      %p210 = por %p208, %p209
      %p211 = scmp.ne.s32.totalorder %s203, %s206
      %p212 = scmp.eq.s32.totalorder %s41, 0
      %p213 = por %p211, %p212
      %p214 = scmp.ne.s32.totalorder %s203, %s206
      %p215 = scmp.eq.s32.totalorder %s46, 2
      %p216 = por %p214, %p215
      %p217 = scmp.ne.s32.totalorder %s206, %s207
      %p218 = scmp.eq.s32.totalorder %s46, 0
      %p219 = por %p217, %p218
      %p220 = scmp.ne.s32.totalorder %s206, %s207
      %p221 = scmp.eq.s32.totalorder %s47, 2
      %p222 = por %p220, %p221
      %p224 = scmp.ne.s32.totalorder %s207, %s223
      %p225 = scmp.eq.s32.totalorder %s47, 0
      %p226 = por %p224, %p225
      %s227 = ssub.s32 %s41, %s48
      %p228 = scmp.eq.s32.totalorder %s227, 0
      %s230 = sadd.s32 %s229, 1
      %s231 = scalar_select %p228, %s229, %s230
      %p234 = pneg %p228
      %p235 = scmp.eq.s32.totalorder %s41, 2
      %p236 = por %p234, %p235
      %p237 = scmp.ne.s32.totalorder %s229, %s232
      %p238 = scmp.eq.s32.totalorder %s41, 0
      %p239 = por %p237, %p238
      %p240 = scmp.ne.s32.totalorder %s229, %s232
      %p241 = scmp.eq.s32.totalorder %s46, 2
      %p242 = por %p240, %p241
      %p243 = scmp.ne.s32.totalorder %s232, %s233
      %p244 = scmp.eq.s32.totalorder %s46, 0
      %p245 = por %p243, %p244
      %p246 = scmp.ne.s32.totalorder %s232, %s233
      %p247 = scmp.eq.s32.totalorder %s47, 2
      %p248 = por %p246, %p247
      %p250 = scmp.ne.s32.totalorder %s233, %s249
      %p251 = scmp.eq.s32.totalorder %s47, 0
      %p252 = por %p250, %p251
      %s253 = ssub.s32 %s41, %s48
      %p254 = scmp.eq.s32.totalorder %s253, 0
      %s256 = sadd.s32 %s255, 1
      %s257 = scalar_select %p254, %s255, %s256
      %p260 = pneg %p254
      %p261 = scmp.eq.s32.totalorder %s41, 2
      %p262 = por %p260, %p261
      %p263 = scmp.ne.s32.totalorder %s255, %s258
      %p264 = scmp.eq.s32.totalorder %s41, 0
      %p265 = por %p263, %p264
      %p266 = scmp.ne.s32.totalorder %s255, %s258
      %p267 = scmp.eq.s32.totalorder %s46, 2
      %p268 = por %p266, %p267
      %p269 = scmp.ne.s32.totalorder %s258, %s259
      %p270 = scmp.eq.s32.totalorder %s46, 0
      %p271 = por %p269, %p270
      %p272 = scmp.ne.s32.totalorder %s258, %s259
      %p273 = scmp.eq.s32.totalorder %s47, 2
      %p274 = por %p272, %p273
      %p276 = scmp.ne.s32.totalorder %s259, %s275
      %p277 = scmp.eq.s32.totalorder %s47, 0
      %p278 = por %p276, %p277
      %s279 = ssub.s32 %s41, %s48
      %p280 = scmp.eq.s32.totalorder %s279, 0
      %s282 = sadd.s32 %s281, 1
      %s283 = scalar_select %p280, %s281, %s282
      %p286 = pneg %p280
      %p287 = scmp.eq.s32.totalorder %s41, 2
      %p288 = por %p286, %p287
      %p289 = scmp.ne.s32.totalorder %s281, %s284
      %p290 = scmp.eq.s32.totalorder %s41, 0
      %p291 = por %p289, %p290
      %p292 = scmp.ne.s32.totalorder %s281, %s284
      %p293 = scmp.eq.s32.totalorder %s46, 2
      %p294 = por %p292, %p293
      %p295 = scmp.ne.s32.totalorder %s284, %s285
      %p296 = scmp.eq.s32.totalorder %s46, 0
      %p297 = por %p295, %p296
      %p298 = scmp.ne.s32.totalorder %s284, %s285
      %p299 = scmp.eq.s32.totalorder %s47, 2
      %p300 = por %p298, %p299
      %p302 = scmp.ne.s32.totalorder %s285, %s301
      %p303 = scmp.eq.s32.totalorder %s47, 0
      %p304 = por %p302, %p303
      %s305 = ssub.s32 %s41, %s48
      %p306 = scmp.eq.s32.totalorder %s305, 0
      %s308 = sadd.s32 %s307, 1
      %s309 = scalar_select %p306, %s307, %s308
      %p312 = pneg %p306
      %p313 = scmp.eq.s32.totalorder %s41, 2
      %p314 = por %p312, %p313
      %p315 = scmp.ne.s32.totalorder %s307, %s310
      %p316 = scmp.eq.s32.totalorder %s41, 0
      %p317 = por %p315, %p316
      %p318 = scmp.ne.s32.totalorder %s307, %s310
      %p319 = scmp.eq.s32.totalorder %s46, 2
      %p320 = por %p318, %p319
      %p321 = scmp.ne.s32.totalorder %s310, %s311
      %p322 = scmp.eq.s32.totalorder %s46, 0
      %p323 = por %p321, %p322
      %p324 = scmp.ne.s32.totalorder %s310, %s311
      %p325 = scmp.eq.s32.totalorder %s47, 2
      %p326 = por %p324, %p325
      %p328 = scmp.ne.s32.totalorder %s311, %s327
      %p329 = scmp.eq.s32.totalorder %s47, 0
      %p330 = por %p328, %p329
      %s331 = ssub.s32 %s41, %s48
      %p332 = scmp.eq.s32.totalorder %s331, 0
      %s334 = sadd.s32 %s333, 1
      %s335 = scalar_select %p332, %s333, %s334
      %p338 = pneg %p332
      %p339 = scmp.eq.s32.totalorder %s41, 2
      %p340 = por %p338, %p339
      %p341 = scmp.ne.s32.totalorder %s333, %s336
      %p342 = scmp.eq.s32.totalorder %s41, 0
      %p343 = por %p341, %p342
      %p344 = scmp.ne.s32.totalorder %s333, %s336
      %p345 = scmp.eq.s32.totalorder %s46, 2
      %p346 = por %p344, %p345
      %p347 = scmp.ne.s32.totalorder %s336, %s337
      %p348 = scmp.eq.s32.totalorder %s46, 0
      %p349 = por %p347, %p348
      %p350 = scmp.ne.s32.totalorder %s336, %s337
      %p351 = scmp.eq.s32.totalorder %s47, 2
      %p352 = por %p350, %p351
      %p354 = scmp.ne.s32.totalorder %s337, %s353
      %p355 = scmp.eq.s32.totalorder %s47, 0
      %p356 = por %p354, %p355
      %s357 = ssub.s32 %s41, %s48
      %p358 = scmp.eq.s32.totalorder %s357, 0
      %s360 = sadd.s32 %s359, 1
      %s361 = scalar_select %p358, %s359, %s360
      %p364 = pneg %p358
      %p365 = scmp.eq.s32.totalorder %s41, 2
      %p366 = por %p364, %p365
      %p367 = scmp.ne.s32.totalorder %s359, %s362
      %p368 = scmp.eq.s32.totalorder %s41, 0
      %p369 = por %p367, %p368
      %p370 = scmp.ne.s32.totalorder %s359, %s362
      %p371 = scmp.eq.s32.totalorder %s46, 2
      %p372 = por %p370, %p371
      %p373 = scmp.ne.s32.totalorder %s362, %s363
      %p374 = scmp.eq.s32.totalorder %s46, 0
      %p375 = por %p373, %p374
      %p376 = scmp.ne.s32.totalorder %s362, %s363
      %p377 = scmp.eq.s32.totalorder %s47, 2
      %p378 = por %p376, %p377
      %p380 = scmp.ne.s32.totalorder %s363, %s379
      %p381 = scmp.eq.s32.totalorder %s47, 0
      %p382 = por %p380, %p381
      %s383 = ssub.s32 %s41, %s48
      %p384 = scmp.eq.s32.totalorder %s383, 0
      %s386 = sadd.s32 %s385, 1
      %s387 = scalar_select %p384, %s385, %s386
      %p390 = pneg %p384
      %p391 = scmp.eq.s32.totalorder %s41, 2
      %p392 = por %p390, %p391
      %p393 = scmp.ne.s32.totalorder %s385, %s388
      %p394 = scmp.eq.s32.totalorder %s41, 0
      %p395 = por %p393, %p394
      %p396 = scmp.ne.s32.totalorder %s385, %s388
      %p397 = scmp.eq.s32.totalorder %s46, 2
      %p398 = por %p396, %p397
      %p399 = scmp.ne.s32.totalorder %s388, %s389
      %p400 = scmp.eq.s32.totalorder %s46, 0
      %p401 = por %p399, %p400
      %p402 = scmp.ne.s32.totalorder %s388, %s389
      %p403 = scmp.eq.s32.totalorder %s47, 2
      %p404 = por %p402, %p403
      %p406 = scmp.ne.s32.totalorder %s389, %s405
      %p407 = scmp.eq.s32.totalorder %s47, 0
      %p408 = por %p406, %p407
      %s409 = ssub.s32 %s41, %s48
      %p410 = scmp.eq.s32.totalorder %s409, 0
      %s412 = sadd.s32 %s411, 1
      %s413 = scalar_select %p410, %s411, %s412
      %p416 = pneg %p410
      %p417 = scmp.eq.s32.totalorder %s41, 2
      %p418 = por %p416, %p417
      %p419 = scmp.ne.s32.totalorder %s411, %s414
      %p420 = scmp.eq.s32.totalorder %s41, 0
      %p421 = por %p419, %p420
      %p422 = scmp.ne.s32.totalorder %s411, %s414
      %p423 = scmp.eq.s32.totalorder %s46, 2
      %p424 = por %p422, %p423
      %p425 = scmp.ne.s32.totalorder %s414, %s415
      %p426 = scmp.eq.s32.totalorder %s46, 0
      %p427 = por %p425, %p426
      %p428 = scmp.ne.s32.totalorder %s414, %s415
      %p429 = scmp.eq.s32.totalorder %s47, 2
      %p430 = por %p428, %p429
      %p432 = scmp.ne.s32.totalorder %s415, %s431
      %p433 = scmp.eq.s32.totalorder %s47, 0
      %p434 = por %p432, %p433
      %s436 = sadd.s32 %s435, 1
      %p439 = scmp.eq.s32.totalorder %s41, 2
      %p440 = scmp.ne.s32.totalorder %s435, %s437
      %p441 = scmp.eq.s32.totalorder %s41, 0
      %p442 = por %p440, %p441
      %p443 = scmp.ne.s32.totalorder %s435, %s437
      %p444 = scmp.eq.s32.totalorder %s46, 2
      %p445 = por %p443, %p444
      %p446 = scmp.ne.s32.totalorder %s437, %s438
      %p447 = scmp.eq.s32.totalorder %s46, 0
      %p448 = por %p446, %p447
      %p449 = scmp.ne.s32.totalorder %s437, %s438
      %p450 = scmp.eq.s32.totalorder %s47, 2
      %p451 = por %p449, %p450
      %p453 = scmp.ne.s32.totalorder %s438, %s452
      %p454 = scmp.eq.s32.totalorder %s47, 0
      %p455 = por %p453, %p454
      %p456 = scmp.le.s32.totalorder 1, %s41
      %p457 = scmp.lt.s32.totalorder %s41, 4
      %p458 = pnand %p456, %p457
      %p459 = pneg %p458
      // Predicated region
      $region9: #{encoder_forward.1} parent=5 // pred_check
        _
      $region10: #{encoder_forward.1} parent=5 // pred_check_branch
        %461 = sbr.rel (%p458) target = $region12
      $region11: #{encoder_forward.1} parent=5 // pred_region
        %s462 = ssub.s32 %s41, 1
        // Predicated region
        $region13: #{encoder_forward.1} parent=11 // pred_check
          %p463 = pneg %p62
        $region14: #{encoder_forward.1} parent=11 // pred_check_branch
          %465 = sbr.rel (%p463) target = $region16
        $region15: #{encoder_forward.1} parent=11 // pred_region
          _
        $region16: #{encoder_forward.1} parent=11 // pred_fallthru
          _
        // Predicated region
        $region17: #{encoder_forward.1} parent=11 // pred_check
          %p466 = pneg %p83
        $region18: #{encoder_forward.1} parent=11 // pred_check_branch
          %468 = sbr.rel (%p466) target = $region20
        $region19: #{encoder_forward.1} parent=11 // pred_region
          _
        $region20: #{encoder_forward.1} parent=11 // pred_fallthru
          _
        // Predicated region
        $region21: #{encoder_forward.1} parent=11 // pred_check
          %p469 = pneg %p104
        $region22: #{encoder_forward.1} parent=11 // pred_check_branch
          %471 = sbr.rel (%p469) target = $region24
        $region23: #{encoder_forward.1} parent=11 // pred_region
          _
        $region24: #{encoder_forward.1} parent=11 // pred_fallthru
          _
        // Predicated region
        $region25: #{encoder_forward.1} parent=11 // pred_check
          %p472 = pneg %p125
        $region26: #{encoder_forward.1} parent=11 // pred_check_branch
          %474 = sbr.rel (%p472) target = $region28
        $region27: #{encoder_forward.1} parent=11 // pred_region
          _
        $region28: #{encoder_forward.1} parent=11 // pred_fallthru
          _
        // Predicated region
        $region29: #{encoder_forward.1} parent=11 // pred_check
          %p475 = pneg %p146
        $region30: #{encoder_forward.1} parent=11 // pred_check_branch
          %477 = sbr.rel (%p475) target = $region32
        $region31: #{encoder_forward.1} parent=11 // pred_region
          _
        $region32: #{encoder_forward.1} parent=11 // pred_fallthru
          _
        // Predicated region
        $region33: #{encoder_forward.1} parent=11 // pred_check
          %p478 = pneg %p167
        $region34: #{encoder_forward.1} parent=11 // pred_check_branch
          %480 = sbr.rel (%p478) target = $region36
        $region35: #{encoder_forward.1} parent=11 // pred_region
          _
        $region36: #{encoder_forward.1} parent=11 // pred_fallthru
          _
      $region12: #{encoder_forward.1} parent=5 // pred_fallthru
        _
      %p481 = scmp.lt.s32.totalorder %s41, 3
      // Predicated region
      $region37: #{encoder_forward.1} parent=5 // pred_check
        %p482 = pneg %p481
      $region38: #{encoder_forward.1} parent=5 // pred_check_branch
        %484 = sbr.rel (%p482) target = $region40
      $region39: #{encoder_forward.1} parent=5 // pred_region
        // Predicated region
        $region41: #{encoder_forward.1} parent=39 // pred_check
          %p485 = pneg %p187
        $region42: #{encoder_forward.1} parent=39 // pred_check_branch
          %487 = sbr.rel (%p485) target = $region44
        $region43: #{encoder_forward.1} parent=39 // pred_region
          %s488 = sand.u32 %s177, 1
          %s489 = scalar_lea.sflag [#allocation4], %s488
          %s490 = sand.u32 %s177, 1
          %s491 = smul.addr %s490, 192
          %s492 = scalar_lea.vmem [#allocation3], %s491
          %s494 = ssub.s32 3072, 3072
          %495 = vsyncadd %s489, %s494
          %s496 = smul.addr %s41, 48
          %s497 = smul.addr %s496, 64
          %s498 = scalar_lea.hbm %s6, %s497
          %s499 = sshll.u32 %s492, 4
          %s500 = int_to_ptr.vmem [resolvable:$true] %s499
          %505 = dma.hbm_to_vmem [thread:$0]  %s498, 3072, %s500, %s489, 192, 192, 12
        $region44: #{encoder_forward.1} parent=39 // pred_fallthru
          _
        // Predicated region
        $region45: #{encoder_forward.1} parent=39 // pred_check
          %p506 = pneg %p213
        $region46: #{encoder_forward.1} parent=39 // pred_check_branch
          %508 = sbr.rel (%p506) target = $region48
        $region47: #{encoder_forward.1} parent=39 // pred_region
          %s509 = sand.u32 %s41, 1
          %s510 = scalar_lea.sflag [#allocation7], %s509
          %s511 = sand.u32 %s203, 1
          %s512 = smul.addr %s511, 3
          %s513 = scalar_lea.vmem [#allocation6], %s512
          %s515 = ssub.s32 48, 48
          %516 = vsyncadd %s510, %s515
          %s517 = smul.addr %s41, 3
          %s518 = smul.addr %s517, 16
          %s519 = scalar_lea.hbm %s7, %s518
          %s521 = sshll.u32 %s513, 4
          %s522 = int_to_ptr.vmem [resolvable:$true] %s521
          %524 = dma.hbm_to_vmem [thread:$0]  %s519, 48, %s522, %s510
        $region48: #{encoder_forward.1} parent=39 // pred_fallthru
          _
        // Predicated region
        $region49: #{encoder_forward.1} parent=39 // pred_check
          %p525 = pneg %p239
        $region50: #{encoder_forward.1} parent=39 // pred_check_branch
          %527 = sbr.rel (%p525) target = $region52
        $region51: #{encoder_forward.1} parent=39 // pred_region
          %s528 = sand.u32 %s41, 1
          %s529 = scalar_lea.sflag [#allocation7], %s528
          %s530 = sand.u32 %s229, 1
          %s531 = smul.addr %s530, 64
          %s532 = scalar_lea.vmem [#allocation8], %s531
          %s534 = ssub.s32 1024, 1024
          %535 = vsyncadd %s529, %s534
          %s536 = smul.addr %s41, 16
          %s537 = smul.addr %s536, 64
          %s538 = scalar_lea.hbm %s8, %s537
          %s539 = sshll.u32 %s532, 4
          %s540 = int_to_ptr.vmem [resolvable:$true] %s539
          %545 = dma.hbm_to_vmem [thread:$0]  %s538, 1024, %s540, %s529, 64, 64, 4
        $region52: #{encoder_forward.1} parent=39 // pred_fallthru
          _
        // Predicated region
        $region53: #{encoder_forward.1} parent=39 // pred_check
          %p546 = pneg %p265
        $region54: #{encoder_forward.1} parent=39 // pred_check_branch
          %548 = sbr.rel (%p546) target = $region56
        $region55: #{encoder_forward.1} parent=39 // pred_region
          %s549 = sand.u32 %s41, 1
          %s550 = scalar_lea.sflag [#allocation10], %s549
          %s551 = sand.u32 %s255, 1
          %s552 = scalar_lea.vmem [#allocation9], %s551
          %s554 = ssub.s32 16, 16
          %555 = vsyncadd %s550, %s554
          %s556 = smul.addr %s41, 16
          %s557 = scalar_lea.hbm %s9, %s556
          %s559 = sshll.u32 %s552, 4
          %s560 = int_to_ptr.vmem [resolvable:$true] %s559
          %562 = dma.hbm_to_vmem [thread:$0]  %s557, 16, %s560, %s550
        $region56: #{encoder_forward.1} parent=39 // pred_fallthru
          _
        // Predicated region
        $region57: #{encoder_forward.1} parent=39 // pred_check
          %p563 = pneg %p291
        $region58: #{encoder_forward.1} parent=39 // pred_check_branch
          %565 = sbr.rel (%p563) target = $region60
        $region59: #{encoder_forward.1} parent=39 // pred_region
          %s566 = sand.u32 %s41, 1
          %s567 = scalar_lea.sflag [#allocation10], %s566
          %s568 = sand.u32 %s281, 1
          %s569 = smul.addr %s568, 1024
          %s570 = scalar_lea.vmem [#allocation11], %s569
          %s572 = ssub.s32 16384, 16384
          %573 = vsyncadd %s567, %s572
          %s574 = smul.addr %s41, 256
          %s575 = smul.addr %s574, 64
          %s576 = scalar_lea.hbm %s10, %s575
          %s577 = sshll.u32 %s570, 4
          %s578 = int_to_ptr.vmem [resolvable:$true] %s577
          %583 = dma.hbm_to_vmem [thread:$0]  %s576, 16384, %s578, %s567, 1024, 1024, 64
        $region60: #{encoder_forward.1} parent=39 // pred_fallthru
          _
        // Predicated region
        $region61: #{encoder_forward.1} parent=39 // pred_check
          %p584 = pneg %p317
        $region62: #{encoder_forward.1} parent=39 // pred_check_branch
          %586 = sbr.rel (%p584) target = $region64
        $region63: #{encoder_forward.1} parent=39 // pred_region
          %s587 = sand.u32 %s41, 1
          %s588 = scalar_lea.sflag [#allocation13], %s587
          %s589 = sand.u32 %s307, 1
          %s590 = smul.addr %s589, 16
          %s591 = scalar_lea.vmem [#allocation12], %s590
          %s593 = ssub.s32 256, 256
          %594 = vsyncadd %s588, %s593
          %s595 = smul.addr %s41, 16
          %s596 = smul.addr %s595, 16
          %s597 = scalar_lea.hbm %s11, %s596
          %s599 = sshll.u32 %s591, 4
          %s600 = int_to_ptr.vmem [resolvable:$true] %s599
          %602 = dma.hbm_to_vmem [thread:$0]  %s597, 256, %s600, %s588
        $region64: #{encoder_forward.1} parent=39 // pred_fallthru
          _
        // Predicated region
        $region65: #{encoder_forward.1} parent=39 // pred_check
          %p603 = pneg %p343
        $region66: #{encoder_forward.1} parent=39 // pred_check_branch
          %605 = sbr.rel (%p603) target = $region68
        $region67: #{encoder_forward.1} parent=39 // pred_region
          %s606 = sand.u32 %s41, 1
          %s607 = scalar_lea.sflag [#allocation13], %s606
          %s608 = sand.u32 %s333, 1
          %s609 = smul.addr %s608, 1024
          %s610 = scalar_lea.vmem [#allocation14], %s609
          %s612 = ssub.s32 16384, 16384
          %613 = vsyncadd %s607, %s612
          %s614 = smul.addr %s41, 256
          %s615 = smul.addr %s614, 64
          %s616 = scalar_lea.hbm %s12, %s615
          %s617 = sshll.u32 %s610, 4
          %s618 = int_to_ptr.vmem [resolvable:$true] %s617
          %623 = dma.hbm_to_vmem [thread:$0]  %s616, 16384, %s618, %s607, 64, 64, 4
        $region68: #{encoder_forward.1} parent=39 // pred_fallthru
          _
        // Predicated region
        $region69: #{encoder_forward.1} parent=39 // pred_check
          %p624 = pneg %p369
        $region70: #{encoder_forward.1} parent=39 // pred_check_branch
          %626 = sbr.rel (%p624) target = $region72
        $region71: #{encoder_forward.1} parent=39 // pred_region
          %s627 = sand.u32 %s41, 1
          %s628 = scalar_lea.sflag [#allocation16], %s627
          %s629 = sand.u32 %s359, 1
          %s630 = scalar_lea.vmem [#allocation15], %s629
          %s632 = ssub.s32 16, 16
          %633 = vsyncadd %s628, %s632
          %s634 = smul.addr %s41, 16
          %s635 = scalar_lea.hbm %s13, %s634
          %s637 = sshll.u32 %s630, 4
          %s638 = int_to_ptr.vmem [resolvable:$true] %s637
          %640 = dma.hbm_to_vmem [thread:$0]  %s635, 16, %s638, %s628
        $region72: #{encoder_forward.1} parent=39 // pred_fallthru
          _
        // Predicated region
        $region73: #{encoder_forward.1} parent=39 // pred_check
          %p641 = pneg %p395
        $region74: #{encoder_forward.1} parent=39 // pred_check_branch
          %643 = sbr.rel (%p641) target = $region76
        $region75: #{encoder_forward.1} parent=39 // pred_region
          %s644 = sand.u32 %s41, 1
          %s645 = scalar_lea.sflag [#allocation16], %s644
          %s646 = sand.u32 %s385, 1
          %s647 = scalar_lea.vmem [#allocation17], %s646
          %s649 = ssub.s32 16, 16
          %650 = vsyncadd %s645, %s649
          %s651 = smul.addr %s41, 16
          %s652 = scalar_lea.hbm %s14, %s651
          %s654 = sshll.u32 %s647, 4
          %s655 = int_to_ptr.vmem [resolvable:$true] %s654
          %657 = dma.hbm_to_vmem [thread:$0]  %s652, 16, %s655, %s645
        $region76: #{encoder_forward.1} parent=39 // pred_fallthru
          _
        // Predicated region
        $region77: #{encoder_forward.1} parent=39 // pred_check
          %p658 = pneg %p421
        $region78: #{encoder_forward.1} parent=39 // pred_check_branch
          %660 = sbr.rel (%p658) target = $region80
        $region79: #{encoder_forward.1} parent=39 // pred_region
          %s661 = sand.u32 %s411, 1
          %s662 = scalar_lea.sflag [#allocation19], %s661
          %s663 = sand.u32 %s411, 1
          %s664 = scalar_lea.vmem [#allocation18], %s663
          %s666 = ssub.s32 16, 16
          %667 = vsyncadd %s662, %s666
          %s668 = smul.addr %s41, 16
          %s669 = scalar_lea.hbm %s15, %s668
          %s671 = sshll.u32 %s664, 4
          %s672 = int_to_ptr.vmem [resolvable:$true] %s671
          %674 = dma.hbm_to_vmem [thread:$0]  %s669, 16, %s672, %s662
        $region80: #{encoder_forward.1} parent=39 // pred_fallthru
          _
      $region40: #{encoder_forward.1} parent=5 // pred_fallthru
        _
      %p675 = scmp.le.s32.totalorder 1, %s41
      %p676 = scmp.lt.s32.totalorder %s41, 4
      %p677 = pnand %p675, %p676
      %p678 = pneg %p677
      // Predicated region
      $region81: #{encoder_forward.1} parent=5 // pred_check
        _
      $region82: #{encoder_forward.1} parent=5 // pred_check_branch
        %680 = sbr.rel (%p677) target = $region84
      $region83: #{encoder_forward.1} parent=5 // pred_region
        %s681 = ssub.s32 %s41, 1
        %s682 = sand.u32 %s180, 1
        %s683 = scalar_lea.sflag [#allocation4], %s682
        %s684 = sand.u32 %s180, 1
        %s685 = smul.addr %s684, 192
        %s686 = scalar_lea.vmem [#allocation3], %s685
        // Predicated region
        $region85: #{encoder_forward.1} parent=83 // pred_check
          %p687 = pneg %p193
        $region86: #{encoder_forward.1} parent=83 // pred_check_branch
          %689 = sbr.rel (%p687) target = $region88
        $region87: #{encoder_forward.1} parent=83 // pred_region
          %690 = dma.done %s683, 3072
        $region88: #{encoder_forward.1} parent=83 // pred_fallthru
          _
        %s691 = sand.u32 %s46, 1
        %s692 = scalar_lea.sflag [#allocation7], %s691
        %s693 = sand.u32 %s206, 1
        %s694 = smul.addr %s693, 3
        %s695 = scalar_lea.vmem [#allocation6], %s694
        // Predicated region
        $region89: #{encoder_forward.1} parent=83 // pred_check
          %p696 = pneg %p219
        $region90: #{encoder_forward.1} parent=83 // pred_check_branch
          %698 = sbr.rel (%p696) target = $region92
        $region91: #{encoder_forward.1} parent=83 // pred_region
          %699 = dma.done %s692, 48
        $region92: #{encoder_forward.1} parent=83 // pred_fallthru
          _
        %s700 = sand.u32 %s46, 1
        %s701 = scalar_lea.sflag [#allocation7], %s700
        %s702 = sand.u32 %s232, 1
        %s703 = smul.addr %s702, 64
        %s704 = scalar_lea.vmem [#allocation8], %s703
        // Predicated region
        $region93: #{encoder_forward.1} parent=83 // pred_check
          %p705 = pneg %p245
        $region94: #{encoder_forward.1} parent=83 // pred_check_branch
          %707 = sbr.rel (%p705) target = $region96
        $region95: #{encoder_forward.1} parent=83 // pred_region
          %708 = dma.done %s701, 1024
        $region96: #{encoder_forward.1} parent=83 // pred_fallthru
          _
        %s709 = sand.u32 %s46, 1
        %s710 = scalar_lea.sflag [#allocation10], %s709
        %s711 = sand.u32 %s258, 1
        %s712 = scalar_lea.vmem [#allocation9], %s711
        // Predicated region
        $region97: #{encoder_forward.1} parent=83 // pred_check
          %p713 = pneg %p271
        $region98: #{encoder_forward.1} parent=83 // pred_check_branch
          %715 = sbr.rel (%p713) target = $region100
        $region99: #{encoder_forward.1} parent=83 // pred_region
          %716 = dma.done %s710, 16
        $region100: #{encoder_forward.1} parent=83 // pred_fallthru
          _
        %s717 = sand.u32 %s46, 1
        %s718 = scalar_lea.sflag [#allocation10], %s717
        %s719 = sand.u32 %s284, 1
        %s720 = smul.addr %s719, 1024
        %s721 = scalar_lea.vmem [#allocation11], %s720
        // Predicated region
        $region101: #{encoder_forward.1} parent=83 // pred_check
          %p722 = pneg %p297
        $region102: #{encoder_forward.1} parent=83 // pred_check_branch
          %724 = sbr.rel (%p722) target = $region104
        $region103: #{encoder_forward.1} parent=83 // pred_region
          %725 = dma.done %s718, 16384
        $region104: #{encoder_forward.1} parent=83 // pred_fallthru
          _
        %s726 = sand.u32 %s46, 1
        %s727 = scalar_lea.sflag [#allocation13], %s726
        %s728 = sand.u32 %s310, 1
        %s729 = smul.addr %s728, 16
        %s730 = scalar_lea.vmem [#allocation12], %s729
        // Predicated region
        $region105: #{encoder_forward.1} parent=83 // pred_check
          %p731 = pneg %p323
        $region106: #{encoder_forward.1} parent=83 // pred_check_branch
          %733 = sbr.rel (%p731) target = $region108
        $region107: #{encoder_forward.1} parent=83 // pred_region
          %734 = dma.done %s727, 256
        $region108: #{encoder_forward.1} parent=83 // pred_fallthru
          _
        %s735 = sand.u32 %s46, 1
        %s736 = scalar_lea.sflag [#allocation13], %s735
        %s737 = sand.u32 %s336, 1
        %s738 = smul.addr %s737, 1024
        %s739 = scalar_lea.vmem [#allocation14], %s738
        // Predicated region
        $region109: #{encoder_forward.1} parent=83 // pred_check
          %p740 = pneg %p349
        $region110: #{encoder_forward.1} parent=83 // pred_check_branch
          %742 = sbr.rel (%p740) target = $region112
        $region111: #{encoder_forward.1} parent=83 // pred_region
          %743 = dma.done %s736, 16384
        $region112: #{encoder_forward.1} parent=83 // pred_fallthru
          _
        %s744 = sand.u32 %s46, 1
        %s745 = scalar_lea.sflag [#allocation16], %s744
        %s746 = sand.u32 %s362, 1
        %s747 = scalar_lea.vmem [#allocation15], %s746
        // Predicated region
        $region113: #{encoder_forward.1} parent=83 // pred_check
          %p748 = pneg %p375
        $region114: #{encoder_forward.1} parent=83 // pred_check_branch
          %750 = sbr.rel (%p748) target = $region116
        $region115: #{encoder_forward.1} parent=83 // pred_region
          %751 = dma.done %s745, 16
        $region116: #{encoder_forward.1} parent=83 // pred_fallthru
          _
        %s752 = sand.u32 %s46, 1
        %s753 = scalar_lea.sflag [#allocation16], %s752
        %s754 = sand.u32 %s388, 1
        %s755 = scalar_lea.vmem [#allocation17], %s754
        // Predicated region
        $region117: #{encoder_forward.1} parent=83 // pred_check
          %p756 = pneg %p401
        $region118: #{encoder_forward.1} parent=83 // pred_check_branch
          %758 = sbr.rel (%p756) target = $region120
        $region119: #{encoder_forward.1} parent=83 // pred_region
          %759 = dma.done %s753, 16
        $region120: #{encoder_forward.1} parent=83 // pred_fallthru
          _
        %s760 = sand.u32 %s414, 1
        %s761 = scalar_lea.sflag [#allocation19], %s760
        %s762 = sand.u32 %s414, 1
        %s763 = scalar_lea.vmem [#allocation18], %s762
        // Predicated region
        $region121: #{encoder_forward.1} parent=83 // pred_check
          %p764 = pneg %p427
        $region122: #{encoder_forward.1} parent=83 // pred_check_branch
          %766 = sbr.rel (%p764) target = $region124
        $region123: #{encoder_forward.1} parent=83 // pred_region
          %767 = dma.done %s761, 16
        $region124: #{encoder_forward.1} parent=83 // pred_fallthru
          _
        %p768 = pneg %p62
        %p769 = pneg %p59
        %p770 = pneg %p83
        %p771 = pneg %p80
        %p772 = pneg %p104
        %p773 = pneg %p101
        %p774 = pneg %p125
        %p775 = pneg %p122
        %p776 = pneg %p146
        %p777 = pneg %p143
        %p778 = pneg %p167
        %p779 = pneg %p164
        %s780 = sand.u32 %s180, 1
        %s781 = scalar_lea.sflag [#allocation4], %s780
        %s782 = sand.u32 %s180, 1
        %s783 = smul.addr %s782, 192
        %s784 = scalar_lea.vmem [#allocation3], %s783
        %p785 = pneg %p193
        %p786 = pneg %p190
        %s787 = sand.u32 %s46, 1
        %s788 = scalar_lea.sflag [#allocation7], %s787
        %s789 = sand.u32 %s206, 1
        %s790 = smul.addr %s789, 3
        %s791 = scalar_lea.vmem [#allocation6], %s790
        %p792 = pneg %p219
        %p793 = pneg %p216
        %s794 = sand.u32 %s46, 1
        %s795 = scalar_lea.sflag [#allocation7], %s794
        %s796 = sand.u32 %s232, 1
        %s797 = smul.addr %s796, 64
        %s798 = scalar_lea.vmem [#allocation8], %s797
        %p799 = pneg %p245
        %p800 = pneg %p242
        %s801 = sand.u32 %s46, 1
        %s802 = scalar_lea.sflag [#allocation10], %s801
        %s803 = sand.u32 %s258, 1
        %s804 = scalar_lea.vmem [#allocation9], %s803
        %p805 = pneg %p271
        %p806 = pneg %p268
        %s807 = sand.u32 %s46, 1
        %s808 = scalar_lea.sflag [#allocation10], %s807
        %s809 = sand.u32 %s284, 1
        %s810 = smul.addr %s809, 1024
        %s811 = scalar_lea.vmem [#allocation11], %s810
        %p812 = pneg %p297
        %p813 = pneg %p294
        %s814 = sand.u32 %s46, 1
        %s815 = scalar_lea.sflag [#allocation13], %s814
        %s816 = sand.u32 %s310, 1
        %s817 = smul.addr %s816, 16
        %s818 = scalar_lea.vmem [#allocation12], %s817
        %p819 = pneg %p323
        %p820 = pneg %p320
        %s821 = sand.u32 %s46, 1
        %s822 = scalar_lea.sflag [#allocation13], %s821
        %s823 = sand.u32 %s336, 1
        %s824 = smul.addr %s823, 1024
        %s825 = scalar_lea.vmem [#allocation14], %s824
        %p826 = pneg %p349
        %p827 = pneg %p346
        %s828 = sand.u32 %s46, 1
        %s829 = scalar_lea.sflag [#allocation16], %s828
        %s830 = sand.u32 %s362, 1
        %s831 = scalar_lea.vmem [#allocation15], %s830
        %p832 = pneg %p375
        %p833 = pneg %p372
        %s834 = sand.u32 %s46, 1
        %s835 = scalar_lea.sflag [#allocation16], %s834
        %s836 = sand.u32 %s388, 1
        %s837 = scalar_lea.vmem [#allocation17], %s836
        %p838 = pneg %p401
        %p839 = pneg %p398
        %s840 = sand.u32 %s414, 1
        %s841 = scalar_lea.sflag [#allocation19], %s840
        %s842 = sand.u32 %s414, 1
        %s843 = scalar_lea.vmem [#allocation18], %s842
        %p844 = pneg %p427
        %p845 = pneg %p424
        %p846 = pneg %p448
        %p847 = pneg %p445
        %p849 = scmp.eq.s32.totalorder %s46, 0
        // Predicated region
        $region125: #{encoder_forward.1} parent=83 // pred_check
          %p850 = pneg %p849
        $region126: #{encoder_forward.1} parent=83 // pred_check_branch
          %852 = sbr.rel (%p850) target = $region128
        $region127: #{encoder_forward.1} parent=83 // pred_region
          %v853 = vld [vmem:[%s0] sm:$0xff]
          %v854 = vld [vmem:[%s0 + $0x8] sm:$0xff]
          %v855 = vmul.f32 %v853, 11.313708
          %v856 = vmul.f32 %v854, 11.313708
          %v857 = vld [vmem:[%s1] sm:$0xff]
          %v858 = vld [vmem:[%s1 + $0x8] sm:$0xff]
          %v859 = vadd.f32 %v855, %v857
          %v860 = vadd.f32 %v856, %v858
          %861 = vst [vmem:[#allocation2] sm:$0xff] %v859
          %862 = vst [vmem:[#allocation2 + $0x8] sm:$0xff] %v860
        $region128: #{encoder_forward.1} parent=83 // pred_fallthru
          _
        %v863 = vld [vmem:[#allocation2] sm:$0xff]
        %v864 = vld [vmem:[#allocation2 + $0x8] sm:$0xff]
        %v865 = vld [vmem:[%s686] sm:$0xff]
        %v866 = vld [vmem:[%s686 + $0x8] sm:$0xf]
        %v867 = vld [vmem:[%s686 + $0xc] sm:$0xff]
        %v868 = vld [vmem:[%s686 + $0x14] sm:$0xf]
        %v869 = vld [vmem:[%s686 + $0x18] sm:$0xff]
        %v870 = vld [vmem:[%s686 + $0x20] sm:$0xf]
        %v871 = vld [vmem:[%s686 + $0x24] sm:$0xff]
        %v872 = vld [vmem:[%s686 + $0x2c] sm:$0xf]
        %v873 = vld [vmem:[%s686 + $0x30] sm:$0xff]
        %v874 = vld [vmem:[%s686 + $0x38] sm:$0xf]
        %v875 = vld [vmem:[%s686 + $0x3c] sm:$0xff]
        %v876 = vld [vmem:[%s686 + $0x44] sm:$0xf]
        %v877 = vld [vmem:[%s686 + $0x48] sm:$0xff]
        %v878 = vld [vmem:[%s686 + $0x50] sm:$0xf]
        %v879 = vld [vmem:[%s686 + $0x54] sm:$0xff]
        %v880 = vld [vmem:[%s686 + $0x5c] sm:$0xf]
        %v881 = vld [vmem:[%s686 + $0x60] sm:$0xff]
        %v882 = vld [vmem:[%s686 + $0x68] sm:$0xf]
        %v883 = vld [vmem:[%s686 + $0x6c] sm:$0xff]
        %v884 = vld [vmem:[%s686 + $0x74] sm:$0xf]
        %v885 = vld [vmem:[%s686 + $0x78] sm:$0xff]
        %v886 = vld [vmem:[%s686 + $0x80] sm:$0xf]
        %v887 = vld [vmem:[%s686 + $0x84] sm:$0xff]
        %v888 = vld [vmem:[%s686 + $0x8c] sm:$0xf]
        %v889 = vld [vmem:[%s686 + $0x90] sm:$0xff]
        %v890 = vld [vmem:[%s686 + $0x98] sm:$0xf]
        %v891 = vld [vmem:[%s686 + $0x9c] sm:$0xff]
        %v892 = vld [vmem:[%s686 + $0xa4] sm:$0xf]
        %v893 = vld [vmem:[%s686 + $0xa8] sm:$0xff]
        %v894 = vld [vmem:[%s686 + $0xb0] sm:$0xf]
        %v895 = vld [vmem:[%s686 + $0xb4] sm:$0xff]
        %v896 = vld [vmem:[%s686 + $0xbc] sm:$0xf]
        %v897 = vpack.c.bf16 %v864, %v863
        %v898 = vld [vmem:[%s695] sm:$0x7]
        %v900 = vlaneseq
        %v901 = vshrl.u32 %v900, 7
        %v902 = vsub.s32 0, %v901
        %v903 = vrot.slane %v898, %v902
        %v904 = vlaneseq
        %v905 = vshrl.u32 %v904, 7
        %v906 = vsub.s32 1, %v905
        %v907 = vrot.slane %v898, %v906
        %v908 = vlaneseq
        %v909 = vshrl.u32 %v908, 7
        %v910 = vsub.s32 2, %v909
        %v911 = vrot.slane %v898, %v910
        %v947 = vunpack.c.l.b16 %v865
        %v948 = vunpack.c.h.b16 %v865
        %v949 = vunpack.c.l.b16 %v866
        %v950 = vunpack.c.l.b16 %v867
        %v951 = vunpack.c.h.b16 %v867
        %v952 = vunpack.c.l.b16 %v868
        %v953 = vunpack.c.l.b16 %v869
        %v954 = vunpack.c.h.b16 %v869
        %v955 = vunpack.c.l.b16 %v870
        %v956 = vunpack.c.l.b16 %v871
        %v957 = vunpack.c.h.b16 %v871
        %v958 = vunpack.c.l.b16 %v872
        %v959 = vunpack.c.l.b16 %v873
        %v960 = vunpack.c.h.b16 %v873
        %v961 = vunpack.c.l.b16 %v874
        %v962 = vunpack.c.l.b16 %v875
        %v963 = vunpack.c.h.b16 %v875
        %v964 = vunpack.c.l.b16 %v876
        %v965 = vunpack.c.l.b16 %v877
        %v966 = vunpack.c.h.b16 %v877
        %v967 = vunpack.c.l.b16 %v878
        %v968 = vunpack.c.l.b16 %v879
        %v969 = vunpack.c.h.b16 %v879
        %v970 = vunpack.c.l.b16 %v880
        %v971 = vunpack.c.l.b16 %v881
        %v972 = vunpack.c.h.b16 %v881
        %v973 = vunpack.c.l.b16 %v882
        %v974 = vunpack.c.l.b16 %v883
        %v975 = vunpack.c.h.b16 %v883
        %v976 = vunpack.c.l.b16 %v884
        %v977 = vunpack.c.l.b16 %v885
        %v978 = vunpack.c.h.b16 %v885
        %v979 = vunpack.c.l.b16 %v886
        %v980 = vunpack.c.l.b16 %v887
        %v981 = vunpack.c.h.b16 %v887
        %v982 = vunpack.c.l.b16 %v888
        %v983 = vunpack.c.l.b16 %v889
        %v984 = vunpack.c.h.b16 %v889
        %v985 = vunpack.c.l.b16 %v890
        %v986 = vunpack.c.l.b16 %v891
        %v987 = vunpack.c.h.b16 %v891
        %v988 = vunpack.c.l.b16 %v892
        %v989 = vunpack.c.l.b16 %v893
        %v990 = vunpack.c.h.b16 %v893
        %v991 = vunpack.c.l.b16 %v894
        %v992 = vunpack.c.l.b16 %v895
        %v993 = vunpack.c.h.b16 %v895
        %v994 = vunpack.c.l.b16 %v896
        %v995 = vpack.c.b16 %v950, %v947
        %v996 = vpack.c.b16 %v951, %v948
        %v997 = vpack.c.b16 %v952, %v949
        %v998 = vpack.c.b16 %v956, %v953
        %v999 = vpack.c.b16 %v957, %v954
        %v1000 = vpack.c.b16 %v958, %v955
        %v1001 = vpack.c.b16 %v962, %v959
        %v1002 = vpack.c.b16 %v963, %v960
        %v1003 = vpack.c.b16 %v964, %v961
        %v1004 = vpack.c.b16 %v968, %v965
        %v1005 = vpack.c.b16 %v969, %v966
        %v1006 = vpack.c.b16 %v970, %v967
        %v1007 = vpack.c.b16 %v974, %v971
        %v1008 = vpack.c.b16 %v975, %v972
        %v1009 = vpack.c.b16 %v976, %v973
        %v1010 = vpack.c.b16 %v980, %v977
        %v1011 = vpack.c.b16 %v981, %v978
        %v1012 = vpack.c.b16 %v982, %v979
        %v1013 = vpack.c.b16 %v986, %v983
        %v1014 = vpack.c.b16 %v987, %v984
        %v1015 = vpack.c.b16 %v988, %v985
        %v1016 = vpack.c.b16 %v992, %v989
        %v1017 = vpack.c.b16 %v993, %v990
        %v1018 = vpack.c.b16 %v994, %v991
        %1043 = vmatprep.subr.bf16.mxu0 %v1017
        %1044 = vmatpush1.bf16.msra.mxu0 %v1016
        %1045 = vmatprep.subr.bf16.mxu0 %v1014
        %1046 = vmatpush1.bf16.msra.mxu0 %v1013
        %1047 = vmatprep.subr.bf16.mxu0 %v1011
        %1048 = vmatpush1.bf16.msra.mxu0 %v1010
        %1049 = vmatprep.subr.bf16.mxu0 %v1008
        %1050 = vmatpush1.bf16.msra.mxu0 %v1007
        %1051 = vmatprep.subr.bf16.mxu0 %v1005
        %1052 = vmatpush1.bf16.msra.mxu0 %v1004
        %1053 = vmatprep.subr.bf16.mxu0 %v1002
        %1054 = vmatpush1.bf16.msra.mxu0 %v1001
        %1055 = vmatprep.subr.bf16.mxu0 %v999
        %1056 = vmatpush1.bf16.msra.mxu0 %v998
        %1057 = vmatprep.subr.bf16.mxu0 %v996
        %1058 = vmatpush1.bf16.msra.mxu0 %v995
        %1059 = vmatprep.subr.bf16.mxu0 0
        %1060 = vmatpush2.bf16.msra.mxu0 0
        %1061 = vmatprep.subr.bf16.mxu0 0
        %1062 = vmatpush2.bf16.msra.mxu0 0
        %1063 = vmatprep.subr.bf16.mxu0 0
        %1064 = vmatpush2.bf16.msra.mxu0 0
        %1065 = vmatprep.subr.bf16.mxu0 0
        %1066 = vmatpush2.bf16.msra.mxu0 0
        %1067 = vmatprep.subr.bf16.mxu0 0
        %1068 = vmatpush2.bf16.msra.mxu0 0
        %1069 = vmatprep.subr.bf16.mxu0 0
        %1070 = vmatpush2.bf16.msra.mxu0 0
        %1071 = vmatprep.subr.bf16.mxu0 0
        %1072 = vmatpush2.bf16.msra.mxu0 0
        %1073 = vmatprep.subr.bf16.mxu0 0
        %1074 = vmatpush2.bf16.msra.mxu0 0
        %1075 = vmatprep.mubr.bf16.mxu0 0
        %1076 = vmatmul.mubr.bf16.gmra.mxu0 %v897
        %v1077 = vpop.f32.mrf.mxu0
        %v1078 = vadd.f32 %v903, %v1077
        %v1079 = vpop.f32.mrf.mxu0
        %v1080 = vadd.f32 %v907, %v1079
        %v1081 = vpop.f32.mrf.mxu0
        %v1082 = vadd.f32 %v903, %v1081
        %v1083 = vpop.f32.mrf.mxu0
        %v1084 = vadd.f32 %v907, %v1083
        %1085 = vdwg.mxu0
        %1086 = vmatprep.subr.bf16.mxu0 0
        %1087 = vmatpush1.bf16.msra.mxu0 %v1018
        %1088 = vmatprep.subr.bf16.mxu0 0
        %1089 = vmatpush1.bf16.msra.mxu0 %v1015
        %1090 = vmatprep.subr.bf16.mxu0 0
        %1091 = vmatpush1.bf16.msra.mxu0 %v1012
        %1092 = vmatprep.subr.bf16.mxu0 0
        %1093 = vmatpush1.bf16.msra.mxu0 %v1009
        %1094 = vmatprep.subr.bf16.mxu0 0
        %1095 = vmatpush1.bf16.msra.mxu0 %v1006
        %1096 = vmatprep.subr.bf16.mxu0 0
        %1097 = vmatpush1.bf16.msra.mxu0 %v1003
        %1098 = vmatprep.subr.bf16.mxu0 0
        %1099 = vmatpush1.bf16.msra.mxu0 %v1000
        %1100 = vmatprep.subr.bf16.mxu0 0
        %1101 = vmatpush1.bf16.msra.mxu0 %v997
        %1102 = vmatprep.subr.bf16.mxu0 0
        %1103 = vmatpush2.bf16.msra.mxu0 0
        %1104 = vmatprep.subr.bf16.mxu0 0
        %1105 = vmatpush2.bf16.msra.mxu0 0
        %1106 = vmatprep.subr.bf16.mxu0 0
        %1107 = vmatpush2.bf16.msra.mxu0 0
        %1108 = vmatprep.subr.bf16.mxu0 0
        %1109 = vmatpush2.bf16.msra.mxu0 0
        %1110 = vmatprep.subr.bf16.mxu0 0
        %1111 = vmatpush2.bf16.msra.mxu0 0
        %1112 = vmatprep.subr.bf16.mxu0 0
        %1113 = vmatpush2.bf16.msra.mxu0 0
        %1114 = vmatprep.subr.bf16.mxu0 0
        %1115 = vmatpush2.bf16.msra.mxu0 0
        %1116 = vmatprep.subr.bf16.mxu0 0
        %1117 = vmatpush2.bf16.msra.mxu0 0
        %1118 = vmatprep.mubr.bf16.mxu0 0
        %1119 = vmatmul.mubr.bf16.gmra.mxu0 %v897
        %v1120 = vpop.f32.mrf.mxu0
        %v1121 = vadd.f32 %v911, %v1120
        %v1122 = vpop.f32.mrf.mxu0
        %v1123 = vpop.f32.mrf.mxu0
        %v1124 = vadd.f32 %v911, %v1123
        %v1125 = vpop.f32.mrf.mxu0
        %1126 = vdwg.mxu0
        %1127 = vxpose.xlu0.b32.start [1/16] %v1080, 128
        %1128 = vxpose.xlu0.b32.cont [2/16] %v1084, 128
        %1129 = vxpose.xlu0.b32.cont [3/16] %v1080, 128
        %1130 = vxpose.xlu0.b32.cont [4/16] %v1084, 128
        %1131 = vxpose.xlu0.b32.cont [5/16] %v1080, 128
        %1132 = vxpose.xlu0.b32.cont [6/16] %v1084, 128
        %1133 = vxpose.xlu0.b32.cont [7/16] %v1080, 128
        %1134 = vxpose.xlu0.b32.cont [8/16] %v1084, 128
        %1135 = vxpose.xlu0.b32.cont [9/16] %v1080, 128
        %1136 = vxpose.xlu0.b32.cont [10/16] %v1084, 128
        %1137 = vxpose.xlu0.b32.cont [11/16] %v1080, 128
        %1138 = vxpose.xlu0.b32.cont [12/16] %v1084, 128
        %1139 = vxpose.xlu0.b32.cont [13/16] %v1080, 128
        %1140 = vxpose.xlu0.b32.cont [14/16] %v1084, 128
        %1141 = vxpose.xlu0.b32.cont [15/16] %v1080, 128
        %1142 = vxpose.xlu0.b32.end [16/16] %v1084, 128
        %v1143 = vpop.trf.xlu0
        %v1144 = vpop.trf.xlu0
        %v1145 = vpop.trf.xlu0
        %v1146 = vpop.trf.xlu0
        %v1147 = vpop.trf.xlu0
        %v1148 = vpop.trf.xlu0
        %v1149 = vpop.trf.xlu0
        %v1150 = vpop.trf.xlu0
        %v1151 = vpop.trf.xlu0
        %v1152 = vpop.trf.xlu0
        %v1153 = vpop.trf.xlu0
        %v1154 = vpop.trf.xlu0
        %v1155 = vpop.trf.xlu0
        %v1156 = vpop.trf.xlu0
        %v1157 = vpop.trf.xlu0
        %v1158 = vpop.trf.xlu0
        %v1159 = vld [vmem:[%s3] sm:$0xff]
        %v1160 = vld [vmem:[%s3 + $0x8] sm:$0xff]
        %v1161 = vld [vmem:[%s3 + $0x10] sm:$0xff]
        %v1162 = vld [vmem:[%s3 + $0x18] sm:$0xff]
        %v1163 = vld [vmem:[%s3 + $0x20] sm:$0xff]
        %v1164 = vld [vmem:[%s3 + $0x28] sm:$0xff]
        %v1165 = vld [vmem:[%s3 + $0x30] sm:$0xff]
        %v1166 = vld [vmem:[%s3 + $0x38] sm:$0xff]
        %v1167 = vld [vmem:[%s3 + $0x40] sm:$0xff]
        %v1168 = vld [vmem:[%s3 + $0x48] sm:$0xff]
        %v1169 = vld [vmem:[%s3 + $0x50] sm:$0xff]
        %v1170 = vld [vmem:[%s3 + $0x58] sm:$0xff]
        %v1171 = vld [vmem:[%s3 + $0x60] sm:$0xff]
        %v1172 = vld [vmem:[%s3 + $0x68] sm:$0xff]
        %v1173 = vld [vmem:[%s3 + $0x70] sm:$0xff]
        %v1174 = vld [vmem:[%s3 + $0x78] sm:$0xff]
        %v1175 = vmul.f32 %v1143, %v1159
        %v1176 = vmul.f32 %v1144, %v1160
        %v1177 = vmul.f32 %v1145, %v1161
        %v1178 = vmul.f32 %v1146, %v1162
        %v1179 = vmul.f32 %v1147, %v1163
        %v1180 = vmul.f32 %v1148, %v1164
        %v1181 = vmul.f32 %v1149, %v1165
        %v1182 = vmul.f32 %v1150, %v1166
        %v1183 = vmul.f32 %v1151, %v1167
        %v1184 = vmul.f32 %v1152, %v1168
        %v1185 = vmul.f32 %v1153, %v1169
        %v1186 = vmul.f32 %v1154, %v1170
        %v1187 = vmul.f32 %v1155, %v1171
        %v1188 = vmul.f32 %v1156, %v1172
        %v1189 = vmul.f32 %v1157, %v1173
        %v1190 = vmul.f32 %v1158, %v1174
        %1191 = vmatprep.subr.mxu0 0.0
        %1192 = vmatpush1.msra.mxu0 %v1190
        %1193 = vmatprep.subr.mxu0 0.0
        %1194 = vmatpush1.msra.mxu0 %v1189
        %1195 = vmatprep.subr.mxu0 0.0
        %1196 = vmatpush1.msra.mxu0 %v1188
        %1197 = vmatprep.subr.mxu0 0.0
        %1198 = vmatpush1.msra.mxu0 %v1187
        %1199 = vmatprep.subr.mxu0 0.0
        %1200 = vmatpush1.msra.mxu0 %v1186
        %1201 = vmatprep.subr.mxu0 0.0
        %1202 = vmatpush1.msra.mxu0 %v1185
        %1203 = vmatprep.subr.mxu0 0.0
        %1204 = vmatpush1.msra.mxu0 %v1184
        %1205 = vmatprep.subr.mxu0 0.0
        %1206 = vmatpush1.msra.mxu0 %v1183
        %1207 = vmatprep.subr.mxu0 0.0
        %1208 = vmatpush1.msra.mxu0 %v1182
        %1209 = vmatprep.subr.mxu0 0.0
        %1210 = vmatpush1.msra.mxu0 %v1181
        %1211 = vmatprep.subr.mxu0 0.0
        %1212 = vmatpush1.msra.mxu0 %v1180
        %1213 = vmatprep.subr.mxu0 0.0
        %1214 = vmatpush1.msra.mxu0 %v1179
        %1215 = vmatprep.subr.mxu0 0.0
        %1216 = vmatpush1.msra.mxu0 %v1178
        %1217 = vmatprep.subr.mxu0 0.0
        %1218 = vmatpush1.msra.mxu0 %v1177
        %1219 = vmatprep.subr.mxu0 0.0
        %1220 = vmatpush1.msra.mxu0 %v1176
        %1221 = vmatprep.subr.mxu0 0.0
        %1222 = vmatpush1.msra.mxu0 %v1175
        %1223 = vmatprep.subr.mxu0 0.0
        %1224 = vmatpush2.msra.mxu0 0.0
        %1225 = vmatprep.subr.mxu0 0.0
        %1226 = vmatpush2.msra.mxu0 0.0
        %1227 = vmatprep.subr.mxu0 0.0
        %1228 = vmatpush2.msra.mxu0 0.0
        %1229 = vmatprep.subr.mxu0 0.0
        %1230 = vmatpush2.msra.mxu0 0.0
        %1231 = vmatprep.subr.mxu0 0.0
        %1232 = vmatpush2.msra.mxu0 0.0
        %1233 = vmatprep.subr.mxu0 0.0
        %1234 = vmatpush2.msra.mxu0 0.0
        %1235 = vmatprep.subr.mxu0 0.0
        %1236 = vmatpush2.msra.mxu0 0.0
        %1237 = vmatprep.subr.mxu0 0.0
        %1238 = vmatpush2.msra.mxu0 0.0
        %1239 = vmatprep.subr.mxu0 0.0
        %1240 = vmatpush2.msra.mxu0 0.0
        %1241 = vmatprep.subr.mxu0 0.0
        %1242 = vmatpush2.msra.mxu0 0.0
        %1243 = vmatprep.subr.mxu0 0.0
        %1244 = vmatpush2.msra.mxu0 0.0
        %1245 = vmatprep.subr.mxu0 0.0
        %1246 = vmatpush2.msra.mxu0 0.0
        %1247 = vmatprep.subr.mxu0 0.0
        %1248 = vmatpush2.msra.mxu0 0.0
        %1249 = vmatprep.subr.mxu0 0.0
        %1250 = vmatpush2.msra.mxu0 0.0
        %1251 = vmatprep.subr.mxu0 0.0
        %1252 = vmatpush2.msra.mxu0 0.0
        %1253 = vmatprep.subr.mxu0 0.0
        %1254 = vmatpush2.msra.mxu0 0.0
        %1255 = vmatprep.mubr.f32.mxu0 0.0
        %1256 = vmatmul.mubr.f32.gmra.mxu0 %v1078
        %v1257 = vpop.f32.mrf.mxu0
        %v1258 = vadd.f32 0.0, %v1257
        %v1259 = vpop.f32.mrf.mxu0
        %1260 = vmatprep.mubr.f32.mxu0 0.0
        %1261 = vmatmul.mubr.f32.gmra.mxu0 %v1082
        %v1262 = vpop.f32.mrf.mxu0
        %v1263 = vadd.f32 0.0, %v1262
        %v1264 = vpop.f32.mrf.mxu0
        %1265 = vdwg.mxu0
        %v1266 = vmul.f32 %v1258, 0.25
        %v1267 = vmul.f32 %v1263, 0.25
        %v1268 = vld [vmem:[%s2] sm:$0xff]
        %v1269 = vld [vmem:[%s2 + $0x8] sm:$0xff]
        %v1270 = vadd.f32 %v1266, %v1268
        %v1271 = vadd.f32 %v1267, %v1269
        %1272 = vmax.xlane.f32.xlu0 %v1270
        %v1273 = vpop.xlane.xlu0 %1272
        %1274 = vmax.xlane.f32.xlu0 %v1271
        %v1275 = vpop.xlane.xlu0 %1274
        %v1276 = vsub.f32 %v1270, %v1273
        %v1277 = vsub.f32 %v1271, %v1275
        %v1278 = vmul.f32 %v1276, 1.442695
        %v1279 = vpow.pop %v1278
        %v1280 = vmul.f32 %v1277, 1.442695
        %v1281 = vpow.pop %v1280
        %v1282 = vld [vmem:[%s5] sm:$0xff]
        %v1283 = vld [vmem:[%s5 + $0x8] sm:$0xff]
        %v1284 = vld [vmem:[%s5 + $0x10] sm:$0xff]
        %v1285 = vld [vmem:[%s5 + $0x18] sm:$0xff]
        %v1286 = vld [vmem:[%s5 + $0x20] sm:$0xff]
        %v1287 = vld [vmem:[%s5 + $0x28] sm:$0xff]
        %v1288 = vld [vmem:[%s5 + $0x30] sm:$0xff]
        %v1289 = vld [vmem:[%s5 + $0x38] sm:$0xff]
        %v1290 = vld [vmem:[%s5 + $0x40] sm:$0xff]
        %v1291 = vld [vmem:[%s5 + $0x48] sm:$0xff]
        %v1292 = vld [vmem:[%s5 + $0x50] sm:$0xff]
        %v1293 = vld [vmem:[%s5 + $0x58] sm:$0xff]
        %v1294 = vld [vmem:[%s5 + $0x60] sm:$0xff]
        %v1295 = vld [vmem:[%s5 + $0x68] sm:$0xff]
        %v1296 = vld [vmem:[%s5 + $0x70] sm:$0xff]
        %v1297 = vld [vmem:[%s5 + $0x78] sm:$0xff]
        %1298 = vmatprep.subr.mxu0 0.0
        %1299 = vmatpush1.msra.mxu0 %v1297
        %1300 = vmatprep.subr.mxu0 0.0
        %1301 = vmatpush1.msra.mxu0 %v1296
        %1302 = vmatprep.subr.mxu0 0.0
        %1303 = vmatpush1.msra.mxu0 %v1295
        %1304 = vmatprep.subr.mxu0 0.0
        %1305 = vmatpush1.msra.mxu0 %v1294
        %1306 = vmatprep.subr.mxu0 0.0
        %1307 = vmatpush1.msra.mxu0 %v1293
        %1308 = vmatprep.subr.mxu0 0.0
        %1309 = vmatpush1.msra.mxu0 %v1292
        %1310 = vmatprep.subr.mxu0 0.0
        %1311 = vmatpush1.msra.mxu0 %v1291
        %1312 = vmatprep.subr.mxu0 0.0
        %1313 = vmatpush1.msra.mxu0 %v1290
        %1314 = vmatprep.subr.mxu0 0.0
        %1315 = vmatpush1.msra.mxu0 %v1289
        %1316 = vmatprep.subr.mxu0 0.0
        %1317 = vmatpush1.msra.mxu0 %v1288
        %1318 = vmatprep.subr.mxu0 0.0
        %1319 = vmatpush1.msra.mxu0 %v1287
        %1320 = vmatprep.subr.mxu0 0.0
        %1321 = vmatpush1.msra.mxu0 %v1286
        %1322 = vmatprep.subr.mxu0 0.0
        %1323 = vmatpush1.msra.mxu0 %v1285
        %1324 = vmatprep.subr.mxu0 0.0
        %1325 = vmatpush1.msra.mxu0 %v1284
        %1326 = vmatprep.subr.mxu0 0.0
        %1327 = vmatpush1.msra.mxu0 %v1283
        %1328 = vmatprep.subr.mxu0 0.0
        %1329 = vmatpush1.msra.mxu0 %v1282
        %1330 = vmatprep.subr.mxu0 0.0
        %1331 = vmatpush2.msra.mxu0 0.0
        %1332 = vmatprep.subr.mxu0 0.0
        %1333 = vmatpush2.msra.mxu0 0.0
        %1334 = vmatprep.subr.mxu0 0.0
        %1335 = vmatpush2.msra.mxu0 0.0
        %1336 = vmatprep.subr.mxu0 0.0
        %1337 = vmatpush2.msra.mxu0 0.0
        %1338 = vmatprep.subr.mxu0 0.0
        %1339 = vmatpush2.msra.mxu0 0.0
        %1340 = vmatprep.subr.mxu0 0.0
        %1341 = vmatpush2.msra.mxu0 0.0
        %1342 = vmatprep.subr.mxu0 0.0
        %1343 = vmatpush2.msra.mxu0 0.0
        %1344 = vmatprep.subr.mxu0 0.0
        %1345 = vmatpush2.msra.mxu0 0.0
        %1346 = vmatprep.subr.mxu0 0.0
        %1347 = vmatpush2.msra.mxu0 0.0
        %1348 = vmatprep.subr.mxu0 0.0
        %1349 = vmatpush2.msra.mxu0 0.0
        %1350 = vmatprep.subr.mxu0 0.0
        %1351 = vmatpush2.msra.mxu0 0.0
        %1352 = vmatprep.subr.mxu0 0.0
        %1353 = vmatpush2.msra.mxu0 0.0
        %1354 = vmatprep.subr.mxu0 0.0
        %1355 = vmatpush2.msra.mxu0 0.0
        %1356 = vmatprep.subr.mxu0 0.0
        %1357 = vmatpush2.msra.mxu0 0.0
        %1358 = vmatprep.subr.mxu0 0.0
        %1359 = vmatpush2.msra.mxu0 0.0
        %1360 = vmatprep.subr.mxu0 0.0
        %1361 = vmatpush2.msra.mxu0 0.0
        %1362 = vmatprep.mubr.f32.mxu0 0.0
        %1363 = vmatmul.mubr.f32.gmra.mxu0 %v1279
        %v1364 = vpop.f32.mrf.mxu0
        %v1365 = vadd.f32 0.0, %v1364
        %v1366 = vpop.f32.mrf.mxu0
        %1367 = vmatprep.mubr.f32.mxu0 0.0
        %1368 = vmatmul.mubr.f32.gmra.mxu0 %v1281
        %v1369 = vpop.f32.mrf.mxu0
        %v1370 = vadd.f32 0.0, %v1369
        %v1371 = vpop.f32.mrf.mxu0
        %1372 = vdwg.mxu0
        %v1373 = vrcp.pop %v1365
        %v1374 = vrcp.pop %v1370
        %v1375 = vmul.f32 %v1279, %v1373
        %v1376 = vmul.f32 %v1281, %v1374
        %v1377 = vld [vmem:[%s4] sm:$0xff]
        %v1378 = vld [vmem:[%s4 + $0x8] sm:$0xff]
        %v1379 = vld [vmem:[%s4 + $0x10] sm:$0xff]
        %v1380 = vld [vmem:[%s4 + $0x18] sm:$0xff]
        %v1381 = vld [vmem:[%s4 + $0x20] sm:$0xff]
        %v1382 = vld [vmem:[%s4 + $0x28] sm:$0xff]
        %v1383 = vld [vmem:[%s4 + $0x30] sm:$0xff]
        %v1384 = vld [vmem:[%s4 + $0x38] sm:$0xff]
        %v1385 = vld [vmem:[%s4 + $0x40] sm:$0xff]
        %v1386 = vld [vmem:[%s4 + $0x48] sm:$0xff]
        %v1387 = vld [vmem:[%s4 + $0x50] sm:$0xff]
        %v1388 = vld [vmem:[%s4 + $0x58] sm:$0xff]
        %v1389 = vld [vmem:[%s4 + $0x60] sm:$0xff]
        %v1390 = vld [vmem:[%s4 + $0x68] sm:$0xff]
        %v1391 = vld [vmem:[%s4 + $0x70] sm:$0xff]
        %v1392 = vld [vmem:[%s4 + $0x78] sm:$0xff]
        %v1393 = vmul.f32 %v1121, %v1377
        %v1394 = vmul.f32 %v1124, %v1378
        %v1395 = vmul.f32 %v1121, %v1379
        %v1396 = vmul.f32 %v1124, %v1380
        %v1397 = vmul.f32 %v1121, %v1381
        %v1398 = vmul.f32 %v1124, %v1382
        %v1399 = vmul.f32 %v1121, %v1383
        %v1400 = vmul.f32 %v1124, %v1384
        %v1401 = vmul.f32 %v1121, %v1385
        %v1402 = vmul.f32 %v1124, %v1386
        %v1403 = vmul.f32 %v1121, %v1387
        %v1404 = vmul.f32 %v1124, %v1388
        %v1405 = vmul.f32 %v1121, %v1389
        %v1406 = vmul.f32 %v1124, %v1390
        %v1407 = vmul.f32 %v1121, %v1391
        %v1408 = vmul.f32 %v1124, %v1392
        %1409 = vmatprep.subr.mxu0 0.0
        %1410 = vmatpush1.msra.mxu0 %v1408
        %1411 = vmatprep.subr.mxu0 0.0
        %1412 = vmatpush1.msra.mxu0 %v1407
        %1413 = vmatprep.subr.mxu0 0.0
        %1414 = vmatpush1.msra.mxu0 %v1406
        %1415 = vmatprep.subr.mxu0 0.0
        %1416 = vmatpush1.msra.mxu0 %v1405
        %1417 = vmatprep.subr.mxu0 0.0
        %1418 = vmatpush1.msra.mxu0 %v1404
        %1419 = vmatprep.subr.mxu0 0.0
        %1420 = vmatpush1.msra.mxu0 %v1403
        %1421 = vmatprep.subr.mxu0 0.0
        %1422 = vmatpush1.msra.mxu0 %v1402
        %1423 = vmatprep.subr.mxu0 0.0
        %1424 = vmatpush1.msra.mxu0 %v1401
        %1425 = vmatprep.subr.mxu0 0.0
        %1426 = vmatpush1.msra.mxu0 %v1400
        %1427 = vmatprep.subr.mxu0 0.0
        %1428 = vmatpush1.msra.mxu0 %v1399
        %1429 = vmatprep.subr.mxu0 0.0
        %1430 = vmatpush1.msra.mxu0 %v1398
        %1431 = vmatprep.subr.mxu0 0.0
        %1432 = vmatpush1.msra.mxu0 %v1397
        %1433 = vmatprep.subr.mxu0 0.0
        %1434 = vmatpush1.msra.mxu0 %v1396
        %1435 = vmatprep.subr.mxu0 0.0
        %1436 = vmatpush1.msra.mxu0 %v1395
        %1437 = vmatprep.subr.mxu0 0.0
        %1438 = vmatpush1.msra.mxu0 %v1394
        %1439 = vmatprep.subr.mxu0 0.0
        %1440 = vmatpush1.msra.mxu0 %v1393
        %1441 = vmatprep.subr.mxu0 0.0
        %1442 = vmatpush2.msra.mxu0 0.0
        %1443 = vmatprep.subr.mxu0 0.0
        %1444 = vmatpush2.msra.mxu0 0.0
        %1445 = vmatprep.subr.mxu0 0.0
        %1446 = vmatpush2.msra.mxu0 0.0
        %1447 = vmatprep.subr.mxu0 0.0
        %1448 = vmatpush2.msra.mxu0 0.0
        %1449 = vmatprep.subr.mxu0 0.0
        %1450 = vmatpush2.msra.mxu0 0.0
        %1451 = vmatprep.subr.mxu0 0.0
        %1452 = vmatpush2.msra.mxu0 0.0
        %1453 = vmatprep.subr.mxu0 0.0
        %1454 = vmatpush2.msra.mxu0 0.0
        %1455 = vmatprep.subr.mxu0 0.0
        %1456 = vmatpush2.msra.mxu0 0.0
        %1457 = vmatprep.subr.mxu0 0.0
        %1458 = vmatpush2.msra.mxu0 0.0
        %1459 = vmatprep.subr.mxu0 0.0
        %1460 = vmatpush2.msra.mxu0 0.0
        %1461 = vmatprep.subr.mxu0 0.0
        %1462 = vmatpush2.msra.mxu0 0.0
        %1463 = vmatprep.subr.mxu0 0.0
        %1464 = vmatpush2.msra.mxu0 0.0
        %1465 = vmatprep.subr.mxu0 0.0
        %1466 = vmatpush2.msra.mxu0 0.0
        %1467 = vmatprep.subr.mxu0 0.0
        %1468 = vmatpush2.msra.mxu0 0.0
        %1469 = vmatprep.subr.mxu0 0.0
        %1470 = vmatpush2.msra.mxu0 0.0
        %1471 = vmatprep.subr.mxu0 0.0
        %1472 = vmatpush2.msra.mxu0 0.0
        %1473 = vmatprep.mubr.f32.mxu0 0.0
        %1474 = vmatmul.mubr.f32.gmra.mxu0 %v1375
        %v1475 = vpop.f32.mrf.mxu0
        %v1476 = vadd.f32 0.0, %v1475
        %v1477 = vpop.f32.mrf.mxu0
        %1478 = vmatprep.mubr.f32.mxu0 0.0
        %1479 = vmatmul.mubr.f32.gmra.mxu0 %v1376
        %v1480 = vpop.f32.mrf.mxu0
        %v1481 = vadd.f32 0.0, %v1480
        %v1482 = vpop.f32.mrf.mxu0
        %1483 = vdwg.mxu0
        %v1484 = vld [vmem:[%s704] sm:$0xf]
        %v1485 = vld [vmem:[%s704 + $0x4] sm:$0xf]
        %v1486 = vld [vmem:[%s704 + $0x8] sm:$0xf]
        %v1487 = vld [vmem:[%s704 + $0xc] sm:$0xf]
        %v1488 = vld [vmem:[%s704 + $0x10] sm:$0xf]
        %v1489 = vld [vmem:[%s704 + $0x14] sm:$0xf]
        %v1490 = vld [vmem:[%s704 + $0x18] sm:$0xf]
        %v1491 = vld [vmem:[%s704 + $0x1c] sm:$0xf]
        %v1492 = vld [vmem:[%s704 + $0x20] sm:$0xf]
        %v1493 = vld [vmem:[%s704 + $0x24] sm:$0xf]
        %v1494 = vld [vmem:[%s704 + $0x28] sm:$0xf]
        %v1495 = vld [vmem:[%s704 + $0x2c] sm:$0xf]
        %v1496 = vld [vmem:[%s704 + $0x30] sm:$0xf]
        %v1497 = vld [vmem:[%s704 + $0x34] sm:$0xf]
        %v1498 = vld [vmem:[%s704 + $0x38] sm:$0xf]
        %v1499 = vld [vmem:[%s704 + $0x3c] sm:$0xf]
        %v1500 = vpack.c.bf16 %v1481, %v1476
        %v1501 = vld [vmem:[%s712] sm:$0x1]
        %v1503 = vlaneseq
        %v1504 = vshrl.u32 %v1503, 7
        %v1505 = vsub.s32 0, %v1504
        %v1506 = vrot.slane %v1501, %v1505
        %v1524 = vunpack.c.l.b16 %v1484
        %v1525 = vunpack.c.l.b16 %v1485
        %v1526 = vunpack.c.l.b16 %v1486
        %v1527 = vunpack.c.l.b16 %v1487
        %v1528 = vunpack.c.l.b16 %v1488
        %v1529 = vunpack.c.l.b16 %v1489
        %v1530 = vunpack.c.l.b16 %v1490
        %v1531 = vunpack.c.l.b16 %v1491
        %v1532 = vunpack.c.l.b16 %v1492
        %v1533 = vunpack.c.l.b16 %v1493
        %v1534 = vunpack.c.l.b16 %v1494
        %v1535 = vunpack.c.l.b16 %v1495
        %v1536 = vunpack.c.l.b16 %v1496
        %v1537 = vunpack.c.l.b16 %v1497
        %v1538 = vunpack.c.l.b16 %v1498
        %v1539 = vunpack.c.l.b16 %v1499
        %v1540 = vpack.c.b16 %v1525, %v1524
        %v1541 = vpack.c.b16 %v1527, %v1526
        %v1542 = vpack.c.b16 %v1529, %v1528
        %v1543 = vpack.c.b16 %v1531, %v1530
        %v1544 = vpack.c.b16 %v1533, %v1532
        %v1545 = vpack.c.b16 %v1535, %v1534
        %v1546 = vpack.c.b16 %v1537, %v1536
        %v1547 = vpack.c.b16 %v1539, %v1538
        %1556 = vmatprep.subr.bf16.mxu0 0
        %1557 = vmatpush1.bf16.msra.mxu0 %v1547
        %1558 = vmatprep.subr.bf16.mxu0 0
        %1559 = vmatpush1.bf16.msra.mxu0 %v1546
        %1560 = vmatprep.subr.bf16.mxu0 0
        %1561 = vmatpush1.bf16.msra.mxu0 %v1545
        %1562 = vmatprep.subr.bf16.mxu0 0
        %1563 = vmatpush1.bf16.msra.mxu0 %v1544
        %1564 = vmatprep.subr.bf16.mxu0 0
        %1565 = vmatpush1.bf16.msra.mxu0 %v1543
        %1566 = vmatprep.subr.bf16.mxu0 0
        %1567 = vmatpush1.bf16.msra.mxu0 %v1542
        %1568 = vmatprep.subr.bf16.mxu0 0
        %1569 = vmatpush1.bf16.msra.mxu0 %v1541
        %1570 = vmatprep.subr.bf16.mxu0 0
        %1571 = vmatpush1.bf16.msra.mxu0 %v1540
        %1572 = vmatprep.subr.bf16.mxu0 0
        %1573 = vmatpush2.bf16.msra.mxu0 0
        %1574 = vmatprep.subr.bf16.mxu0 0
        %1575 = vmatpush2.bf16.msra.mxu0 0
        %1576 = vmatprep.subr.bf16.mxu0 0
        %1577 = vmatpush2.bf16.msra.mxu0 0
        %1578 = vmatprep.subr.bf16.mxu0 0
        %1579 = vmatpush2.bf16.msra.mxu0 0
        %1580 = vmatprep.subr.bf16.mxu0 0
        %1581 = vmatpush2.bf16.msra.mxu0 0
        %1582 = vmatprep.subr.bf16.mxu0 0
        %1583 = vmatpush2.bf16.msra.mxu0 0
        %1584 = vmatprep.subr.bf16.mxu0 0
        %1585 = vmatpush2.bf16.msra.mxu0 0
        %1586 = vmatprep.subr.bf16.mxu0 0
        %1587 = vmatpush2.bf16.msra.mxu0 0
        %1588 = vmatprep.mubr.bf16.mxu0 0
        %1589 = vmatmul.mubr.bf16.gmra.mxu0 %v1500
        %v1590 = vpop.f32.mrf.mxu0
        %v1591 = vadd.f32 %v1506, %v1590
        %v1592 = vpop.f32.mrf.mxu0
        %v1593 = vpop.f32.mrf.mxu0
        %v1594 = vadd.f32 %v1506, %v1593
        %v1595 = vpop.f32.mrf.mxu0
        %1596 = vdwg.mxu0
        %v1597 = vld [vmem:[%s755] sm:$0x1]
        %v1598 = vld [vmem:[%s763] sm:$0x1]
        %v1599 = vadd.f32 %v863, %v1591
        %v1600 = vadd.f32 %v864, %v1594
        %1601 = vadd.xlane.f32.xlu0 %v1599
        %v1602 = vpop.xlane.xlu0 %1601
        %1603 = vadd.xlane.f32.xlu0 %v1600
        %v1604 = vpop.xlane.xlu0 %1603
        %v1605 = vrcp.pop 128.0
        %v1606 = vmul.f32 %v1602, %v1605
        %v1607 = vmul.f32 %v1604, %v1605
        %v1608 = vsub.f32 %v1599, %v1606
        %v1609 = vsub.f32 %v1600, %v1607
        %v1610 = vmul.f32 %v1608, %v1608
        %v1611 = vmul.f32 %v1609, %v1609
        %1612 = vadd.xlane.f32.xlu0 %v1610
        %v1613 = vpop.xlane.xlu0 %1612
        %1614 = vadd.xlane.f32.xlu0 %v1611
        %v1615 = vpop.xlane.xlu0 %1614
        %v1616 = vmul.f32 %v1613, %v1605
        %v1617 = vmul.f32 %v1615, %v1605
        %v1618 = vadd.f32 %v1616, 1e-05
        %v1619 = vadd.f32 %v1617, 1e-05
        %v1620 = vrsqrt.pop %v1618
        %v1621 = vrsqrt.pop %v1619
        %v1622 = vmul.f32 %v1608, %v1620
        %v1623 = vmul.f32 %v1609, %v1621
        %v1625 = vlaneseq
        %v1626 = vshrl.u32 %v1625, 7
        %v1627 = vsub.s32 0, %v1626
        %v1628 = vrot.slane %v1597, %v1627
        %v1630 = vmul.f32 %v1622, %v1628
        %v1631 = vmul.f32 %v1623, %v1628
        %v1633 = vlaneseq
        %v1634 = vshrl.u32 %v1633, 7
        %v1635 = vsub.s32 0, %v1634
        %v1636 = vrot.slane %v1598, %v1635
        %v1638 = vadd.f32 %v1630, %v1636
        %v1639 = vadd.f32 %v1631, %v1636
        %v1640 = vld [vmem:[%s721] sm:$0xff]
        %v1641 = vld [vmem:[%s721 + $0x8] sm:$0xff]
        %v1642 = vld [vmem:[%s721 + $0x10] sm:$0xff]
        %v1643 = vld [vmem:[%s721 + $0x18] sm:$0xff]
        %v1644 = vld [vmem:[%s721 + $0x20] sm:$0xff]
        %v1645 = vld [vmem:[%s721 + $0x28] sm:$0xff]
        %v1646 = vld [vmem:[%s721 + $0x30] sm:$0xff]
        %v1647 = vld [vmem:[%s721 + $0x38] sm:$0xff]
        %v1648 = vld [vmem:[%s721 + $0x40] sm:$0xff]
        %v1649 = vld [vmem:[%s721 + $0x48] sm:$0xff]
        %v1650 = vld [vmem:[%s721 + $0x50] sm:$0xff]
        %v1651 = vld [vmem:[%s721 + $0x58] sm:$0xff]
        %v1652 = vld [vmem:[%s721 + $0x60] sm:$0xff]
        %v1653 = vld [vmem:[%s721 + $0x68] sm:$0xff]
        %v1654 = vld [vmem:[%s721 + $0x70] sm:$0xff]
        %v1655 = vld [vmem:[%s721 + $0x78] sm:$0xff]
        %v1656 = vld [vmem:[%s721 + $0x80] sm:$0xff]
        %v1657 = vld [vmem:[%s721 + $0x88] sm:$0xff]
        %v1658 = vld [vmem:[%s721 + $0x90] sm:$0xff]
        %v1659 = vld [vmem:[%s721 + $0x98] sm:$0xff]
        %v1660 = vld [vmem:[%s721 + $0xa0] sm:$0xff]
        %v1661 = vld [vmem:[%s721 + $0xa8] sm:$0xff]
        %v1662 = vld [vmem:[%s721 + $0xb0] sm:$0xff]
        %v1663 = vld [vmem:[%s721 + $0xb8] sm:$0xff]
        %v1664 = vld [vmem:[%s721 + $0xc0] sm:$0xff]
        %v1665 = vld [vmem:[%s721 + $0xc8] sm:$0xff]
        %v1666 = vld [vmem:[%s721 + $0xd0] sm:$0xff]
        %v1667 = vld [vmem:[%s721 + $0xd8] sm:$0xff]
        %v1668 = vld [vmem:[%s721 + $0xe0] sm:$0xff]
        %v1669 = vld [vmem:[%s721 + $0xe8] sm:$0xff]
        %v1670 = vld [vmem:[%s721 + $0xf0] sm:$0xff]
        %v1671 = vld [vmem:[%s721 + $0xf8] sm:$0xff]
        %v1672 = vld [vmem:[%s721 + $0x100] sm:$0xff]
        %v1673 = vld [vmem:[%s721 + $0x108] sm:$0xff]
        %v1674 = vld [vmem:[%s721 + $0x110] sm:$0xff]
        %v1675 = vld [vmem:[%s721 + $0x118] sm:$0xff]
        %v1676 = vld [vmem:[%s721 + $0x120] sm:$0xff]
        %v1677 = vld [vmem:[%s721 + $0x128] sm:$0xff]
        %v1678 = vld [vmem:[%s721 + $0x130] sm:$0xff]
        %v1679 = vld [vmem:[%s721 + $0x138] sm:$0xff]
        %v1680 = vld [vmem:[%s721 + $0x140] sm:$0xff]
        %v1681 = vld [vmem:[%s721 + $0x148] sm:$0xff]
        %v1682 = vld [vmem:[%s721 + $0x150] sm:$0xff]
        %v1683 = vld [vmem:[%s721 + $0x158] sm:$0xff]
        %v1684 = vld [vmem:[%s721 + $0x160] sm:$0xff]
        %v1685 = vld [vmem:[%s721 + $0x168] sm:$0xff]
        %v1686 = vld [vmem:[%s721 + $0x170] sm:$0xff]
        %v1687 = vld [vmem:[%s721 + $0x178] sm:$0xff]
        %v1688 = vld [vmem:[%s721 + $0x180] sm:$0xff]
        %v1689 = vld [vmem:[%s721 + $0x188] sm:$0xff]
        %v1690 = vld [vmem:[%s721 + $0x190] sm:$0xff]
        %v1691 = vld [vmem:[%s721 + $0x198] sm:$0xff]
        %v1692 = vld [vmem:[%s721 + $0x1a0] sm:$0xff]
        %v1693 = vld [vmem:[%s721 + $0x1a8] sm:$0xff]
        %v1694 = vld [vmem:[%s721 + $0x1b0] sm:$0xff]
        %v1695 = vld [vmem:[%s721 + $0x1b8] sm:$0xff]
        %v1696 = vld [vmem:[%s721 + $0x1c0] sm:$0xff]
        %v1697 = vld [vmem:[%s721 + $0x1c8] sm:$0xff]
        %v1698 = vld [vmem:[%s721 + $0x1d0] sm:$0xff]
        %v1699 = vld [vmem:[%s721 + $0x1d8] sm:$0xff]
        %v1700 = vld [vmem:[%s721 + $0x1e0] sm:$0xff]
        %v1701 = vld [vmem:[%s721 + $0x1e8] sm:$0xff]
        %v1702 = vld [vmem:[%s721 + $0x1f0] sm:$0xff]
        %v1703 = vld [vmem:[%s721 + $0x1f8] sm:$0xff]
        %v1704 = vld [vmem:[%s721 + $0x200] sm:$0xff]
        %v1705 = vld [vmem:[%s721 + $0x208] sm:$0xff]
        %v1706 = vld [vmem:[%s721 + $0x210] sm:$0xff]
        %v1707 = vld [vmem:[%s721 + $0x218] sm:$0xff]
        %v1708 = vld [vmem:[%s721 + $0x220] sm:$0xff]
        %v1709 = vld [vmem:[%s721 + $0x228] sm:$0xff]
        %v1710 = vld [vmem:[%s721 + $0x230] sm:$0xff]
        %v1711 = vld [vmem:[%s721 + $0x238] sm:$0xff]
        %v1712 = vld [vmem:[%s721 + $0x240] sm:$0xff]
        %v1713 = vld [vmem:[%s721 + $0x248] sm:$0xff]
        %v1714 = vld [vmem:[%s721 + $0x250] sm:$0xff]
        %v1715 = vld [vmem:[%s721 + $0x258] sm:$0xff]
        %v1716 = vld [vmem:[%s721 + $0x260] sm:$0xff]
        %v1717 = vld [vmem:[%s721 + $0x268] sm:$0xff]
        %v1718 = vld [vmem:[%s721 + $0x270] sm:$0xff]
        %v1719 = vld [vmem:[%s721 + $0x278] sm:$0xff]
        %v1720 = vld [vmem:[%s721 + $0x280] sm:$0xff]
        %v1721 = vld [vmem:[%s721 + $0x288] sm:$0xff]
        %v1722 = vld [vmem:[%s721 + $0x290] sm:$0xff]
        %v1723 = vld [vmem:[%s721 + $0x298] sm:$0xff]
        %v1724 = vld [vmem:[%s721 + $0x2a0] sm:$0xff]
        %v1725 = vld [vmem:[%s721 + $0x2a8] sm:$0xff]
        %v1726 = vld [vmem:[%s721 + $0x2b0] sm:$0xff]
        %v1727 = vld [vmem:[%s721 + $0x2b8] sm:$0xff]
        %v1728 = vld [vmem:[%s721 + $0x2c0] sm:$0xff]
        %v1729 = vld [vmem:[%s721 + $0x2c8] sm:$0xff]
        %v1730 = vld [vmem:[%s721 + $0x2d0] sm:$0xff]
        %v1731 = vld [vmem:[%s721 + $0x2d8] sm:$0xff]
        %v1732 = vld [vmem:[%s721 + $0x2e0] sm:$0xff]
        %v1733 = vld [vmem:[%s721 + $0x2e8] sm:$0xff]
        %v1734 = vld [vmem:[%s721 + $0x2f0] sm:$0xff]
        %v1735 = vld [vmem:[%s721 + $0x2f8] sm:$0xff]
        %v1736 = vld [vmem:[%s721 + $0x300] sm:$0xff]
        %v1737 = vld [vmem:[%s721 + $0x308] sm:$0xff]
        %v1738 = vld [vmem:[%s721 + $0x310] sm:$0xff]
        %v1739 = vld [vmem:[%s721 + $0x318] sm:$0xff]
        %v1740 = vld [vmem:[%s721 + $0x320] sm:$0xff]
        %v1741 = vld [vmem:[%s721 + $0x328] sm:$0xff]
        %v1742 = vld [vmem:[%s721 + $0x330] sm:$0xff]
        %v1743 = vld [vmem:[%s721 + $0x338] sm:$0xff]
        %v1744 = vld [vmem:[%s721 + $0x340] sm:$0xff]
        %v1745 = vld [vmem:[%s721 + $0x348] sm:$0xff]
        %v1746 = vld [vmem:[%s721 + $0x350] sm:$0xff]
        %v1747 = vld [vmem:[%s721 + $0x358] sm:$0xff]
        %v1748 = vld [vmem:[%s721 + $0x360] sm:$0xff]
        %v1749 = vld [vmem:[%s721 + $0x368] sm:$0xff]
        %v1750 = vld [vmem:[%s721 + $0x370] sm:$0xff]
        %v1751 = vld [vmem:[%s721 + $0x378] sm:$0xff]
        %v1752 = vld [vmem:[%s721 + $0x380] sm:$0xff]
        %v1753 = vld [vmem:[%s721 + $0x388] sm:$0xff]
        %v1754 = vld [vmem:[%s721 + $0x390] sm:$0xff]
        %v1755 = vld [vmem:[%s721 + $0x398] sm:$0xff]
        %v1756 = vld [vmem:[%s721 + $0x3a0] sm:$0xff]
        %v1757 = vld [vmem:[%s721 + $0x3a8] sm:$0xff]
        %v1758 = vld [vmem:[%s721 + $0x3b0] sm:$0xff]
        %v1759 = vld [vmem:[%s721 + $0x3b8] sm:$0xff]
        %v1760 = vld [vmem:[%s721 + $0x3c0] sm:$0xff]
        %v1761 = vld [vmem:[%s721 + $0x3c8] sm:$0xff]
        %v1762 = vld [vmem:[%s721 + $0x3d0] sm:$0xff]
        %v1763 = vld [vmem:[%s721 + $0x3d8] sm:$0xff]
        %v1764 = vld [vmem:[%s721 + $0x3e0] sm:$0xff]
        %v1765 = vld [vmem:[%s721 + $0x3e8] sm:$0xff]
        %v1766 = vld [vmem:[%s721 + $0x3f0] sm:$0xff]
        %v1767 = vld [vmem:[%s721 + $0x3f8] sm:$0xff]
        %v1768 = vpack.c.bf16 %v1639, %v1638
        %v1769 = vld [vmem:[%s730] sm:$0xff]
        %v1770 = vld [vmem:[%s730 + $0x8] sm:$0xff]
        %v1773 = vlaneseq
        %v1774 = vshrl.u32 %v1773, 7
        %v1775 = vsub.s32 0, %v1774
        %v1776 = vrot.slane %v1769, %v1775
        %v1777 = vlaneseq
        %v1778 = vshrl.u32 %v1777, 7
        %v1779 = vsub.s32 1, %v1778
        %v1780 = vrot.slane %v1769, %v1779
        %v1781 = vlaneseq
        %v1782 = vshrl.u32 %v1781, 7
        %v1783 = vsub.s32 2, %v1782
        %v1784 = vrot.slane %v1769, %v1783
        %v1785 = vlaneseq
        %v1786 = vshrl.u32 %v1785, 7
        %v1787 = vsub.s32 3, %v1786
        %v1788 = vrot.slane %v1769, %v1787
        %v1789 = vlaneseq
        %v1790 = vshrl.u32 %v1789, 7
        %v1791 = vsub.s32 4, %v1790
        %v1792 = vrot.slane %v1769, %v1791
        %v1793 = vlaneseq
        %v1794 = vshrl.u32 %v1793, 7
        %v1795 = vsub.s32 5, %v1794
        %v1796 = vrot.slane %v1769, %v1795
        %v1797 = vlaneseq
        %v1798 = vshrl.u32 %v1797, 7
        %v1799 = vsub.s32 6, %v1798
        %v1800 = vrot.slane %v1769, %v1799
        %v1801 = vlaneseq
        %v1802 = vshrl.u32 %v1801, 7
        %v1803 = vsub.s32 7, %v1802
        %v1804 = vrot.slane %v1769, %v1803
        %v1805 = vlaneseq
        %v1806 = vshrl.u32 %v1805, 7
        %v1807 = vsub.s32 0, %v1806
        %v1808 = vrot.slane %v1770, %v1807
        %v1809 = vlaneseq
        %v1810 = vshrl.u32 %v1809, 7
        %v1811 = vsub.s32 1, %v1810
        %v1812 = vrot.slane %v1770, %v1811
        %v1813 = vlaneseq
        %v1814 = vshrl.u32 %v1813, 7
        %v1815 = vsub.s32 2, %v1814
        %v1816 = vrot.slane %v1770, %v1815
        %v1817 = vlaneseq
        %v1818 = vshrl.u32 %v1817, 7
        %v1819 = vsub.s32 3, %v1818
        %v1820 = vrot.slane %v1770, %v1819
        %v1821 = vlaneseq
        %v1822 = vshrl.u32 %v1821, 7
        %v1823 = vsub.s32 4, %v1822
        %v1824 = vrot.slane %v1770, %v1823
        %v1825 = vlaneseq
        %v1826 = vshrl.u32 %v1825, 7
        %v1827 = vsub.s32 5, %v1826
        %v1828 = vrot.slane %v1770, %v1827
        %v1829 = vlaneseq
        %v1830 = vshrl.u32 %v1829, 7
        %v1831 = vsub.s32 6, %v1830
        %v1832 = vrot.slane %v1770, %v1831
        %v1833 = vlaneseq
        %v1834 = vshrl.u32 %v1833, 7
        %v1835 = vsub.s32 7, %v1834
        %v1836 = vrot.slane %v1770, %v1835
        %v1981 = vunpack.c.l.b16 %v1640
        %v1982 = vunpack.c.h.b16 %v1640
        %v1983 = vunpack.c.l.b16 %v1641
        %v1984 = vunpack.c.h.b16 %v1641
        %v1985 = vunpack.c.l.b16 %v1642
        %v1986 = vunpack.c.h.b16 %v1642
        %v1987 = vunpack.c.l.b16 %v1643
        %v1988 = vunpack.c.h.b16 %v1643
        %v1989 = vunpack.c.l.b16 %v1644
        %v1990 = vunpack.c.h.b16 %v1644
        %v1991 = vunpack.c.l.b16 %v1645
        %v1992 = vunpack.c.h.b16 %v1645
        %v1993 = vunpack.c.l.b16 %v1646
        %v1994 = vunpack.c.h.b16 %v1646
        %v1995 = vunpack.c.l.b16 %v1647
        %v1996 = vunpack.c.h.b16 %v1647
        %v1997 = vunpack.c.l.b16 %v1648
        %v1998 = vunpack.c.h.b16 %v1648
        %v1999 = vunpack.c.l.b16 %v1649
        %v2000 = vunpack.c.h.b16 %v1649
        %v2001 = vunpack.c.l.b16 %v1650
        %v2002 = vunpack.c.h.b16 %v1650
        %v2003 = vunpack.c.l.b16 %v1651
        %v2004 = vunpack.c.h.b16 %v1651
        %v2005 = vunpack.c.l.b16 %v1652
        %v2006 = vunpack.c.h.b16 %v1652
        %v2007 = vunpack.c.l.b16 %v1653
        %v2008 = vunpack.c.h.b16 %v1653
        %v2009 = vunpack.c.l.b16 %v1654
        %v2010 = vunpack.c.h.b16 %v1654
        %v2011 = vunpack.c.l.b16 %v1655
        %v2012 = vunpack.c.h.b16 %v1655
        %v2013 = vunpack.c.l.b16 %v1656
        %v2014 = vunpack.c.h.b16 %v1656
        %v2015 = vunpack.c.l.b16 %v1657
        %v2016 = vunpack.c.h.b16 %v1657
        %v2017 = vunpack.c.l.b16 %v1658
        %v2018 = vunpack.c.h.b16 %v1658
        %v2019 = vunpack.c.l.b16 %v1659
        %v2020 = vunpack.c.h.b16 %v1659
        %v2021 = vunpack.c.l.b16 %v1660
        %v2022 = vunpack.c.h.b16 %v1660
        %v2023 = vunpack.c.l.b16 %v1661
        %v2024 = vunpack.c.h.b16 %v1661
        %v2025 = vunpack.c.l.b16 %v1662
        %v2026 = vunpack.c.h.b16 %v1662
        %v2027 = vunpack.c.l.b16 %v1663
        %v2028 = vunpack.c.h.b16 %v1663
        %v2029 = vunpack.c.l.b16 %v1664
        %v2030 = vunpack.c.h.b16 %v1664
        %v2031 = vunpack.c.l.b16 %v1665
        %v2032 = vunpack.c.h.b16 %v1665
        %v2033 = vunpack.c.l.b16 %v1666
        %v2034 = vunpack.c.h.b16 %v1666
        %v2035 = vunpack.c.l.b16 %v1667
        %v2036 = vunpack.c.h.b16 %v1667
        %v2037 = vunpack.c.l.b16 %v1668
        %v2038 = vunpack.c.h.b16 %v1668
        %v2039 = vunpack.c.l.b16 %v1669
        %v2040 = vunpack.c.h.b16 %v1669
        %v2041 = vunpack.c.l.b16 %v1670
        %v2042 = vunpack.c.h.b16 %v1670
        %v2043 = vunpack.c.l.b16 %v1671
        %v2044 = vunpack.c.h.b16 %v1671
        %v2045 = vunpack.c.l.b16 %v1672
        %v2046 = vunpack.c.h.b16 %v1672
        %v2047 = vunpack.c.l.b16 %v1673
        %v2048 = vunpack.c.h.b16 %v1673
        %v2049 = vunpack.c.l.b16 %v1674
        %v2050 = vunpack.c.h.b16 %v1674
        %v2051 = vunpack.c.l.b16 %v1675
        %v2052 = vunpack.c.h.b16 %v1675
        %v2053 = vunpack.c.l.b16 %v1676
        %v2054 = vunpack.c.h.b16 %v1676
        %v2055 = vunpack.c.l.b16 %v1677
        %v2056 = vunpack.c.h.b16 %v1677
        %v2057 = vunpack.c.l.b16 %v1678
        %v2058 = vunpack.c.h.b16 %v1678
        %v2059 = vunpack.c.l.b16 %v1679
        %v2060 = vunpack.c.h.b16 %v1679
        %v2061 = vunpack.c.l.b16 %v1680
        %v2062 = vunpack.c.h.b16 %v1680
        %v2063 = vunpack.c.l.b16 %v1681
        %v2064 = vunpack.c.h.b16 %v1681
        %v2065 = vunpack.c.l.b16 %v1682
        %v2066 = vunpack.c.h.b16 %v1682
        %v2067 = vunpack.c.l.b16 %v1683
        %v2068 = vunpack.c.h.b16 %v1683
        %v2069 = vunpack.c.l.b16 %v1684
        %v2070 = vunpack.c.h.b16 %v1684
        %v2071 = vunpack.c.l.b16 %v1685
        %v2072 = vunpack.c.h.b16 %v1685
        %v2073 = vunpack.c.l.b16 %v1686
        %v2074 = vunpack.c.h.b16 %v1686
        %v2075 = vunpack.c.l.b16 %v1687
        %v2076 = vunpack.c.h.b16 %v1687
        %v2077 = vunpack.c.l.b16 %v1688
        %v2078 = vunpack.c.h.b16 %v1688
        %v2079 = vunpack.c.l.b16 %v1689
        %v2080 = vunpack.c.h.b16 %v1689
        %v2081 = vunpack.c.l.b16 %v1690
        %v2082 = vunpack.c.h.b16 %v1690
        %v2083 = vunpack.c.l.b16 %v1691
        %v2084 = vunpack.c.h.b16 %v1691
        %v2085 = vunpack.c.l.b16 %v1692
        %v2086 = vunpack.c.h.b16 %v1692
        %v2087 = vunpack.c.l.b16 %v1693
        %v2088 = vunpack.c.h.b16 %v1693
        %v2089 = vunpack.c.l.b16 %v1694
        %v2090 = vunpack.c.h.b16 %v1694
        %v2091 = vunpack.c.l.b16 %v1695
        %v2092 = vunpack.c.h.b16 %v1695
        %v2093 = vunpack.c.l.b16 %v1696
        %v2094 = vunpack.c.h.b16 %v1696
        %v2095 = vunpack.c.l.b16 %v1697
        %v2096 = vunpack.c.h.b16 %v1697
        %v2097 = vunpack.c.l.b16 %v1698
        %v2098 = vunpack.c.h.b16 %v1698
        %v2099 = vunpack.c.l.b16 %v1699
        %v2100 = vunpack.c.h.b16 %v1699
        %v2101 = vunpack.c.l.b16 %v1700
        %v2102 = vunpack.c.h.b16 %v1700
        %v2103 = vunpack.c.l.b16 %v1701
        %v2104 = vunpack.c.h.b16 %v1701
        %v2105 = vunpack.c.l.b16 %v1702
        %v2106 = vunpack.c.h.b16 %v1702
        %v2107 = vunpack.c.l.b16 %v1703
        %v2108 = vunpack.c.h.b16 %v1703
        %v2109 = vunpack.c.l.b16 %v1704
        %v2110 = vunpack.c.h.b16 %v1704
        %v2111 = vunpack.c.l.b16 %v1705
        %v2112 = vunpack.c.h.b16 %v1705
        %v2113 = vunpack.c.l.b16 %v1706
        %v2114 = vunpack.c.h.b16 %v1706
        %v2115 = vunpack.c.l.b16 %v1707
        %v2116 = vunpack.c.h.b16 %v1707
        %v2117 = vunpack.c.l.b16 %v1708
        %v2118 = vunpack.c.h.b16 %v1708
        %v2119 = vunpack.c.l.b16 %v1709
        %v2120 = vunpack.c.h.b16 %v1709
        %v2121 = vunpack.c.l.b16 %v1710
        %v2122 = vunpack.c.h.b16 %v1710
        %v2123 = vunpack.c.l.b16 %v1711
        %v2124 = vunpack.c.h.b16 %v1711
        %v2125 = vunpack.c.l.b16 %v1712
        %v2126 = vunpack.c.h.b16 %v1712
        %v2127 = vunpack.c.l.b16 %v1713
        %v2128 = vunpack.c.h.b16 %v1713
        %v2129 = vunpack.c.l.b16 %v1714
        %v2130 = vunpack.c.h.b16 %v1714
        %v2131 = vunpack.c.l.b16 %v1715
        %v2132 = vunpack.c.h.b16 %v1715
        %v2133 = vunpack.c.l.b16 %v1716
        %v2134 = vunpack.c.h.b16 %v1716
        %v2135 = vunpack.c.l.b16 %v1717
        %v2136 = vunpack.c.h.b16 %v1717
        %v2137 = vunpack.c.l.b16 %v1718
        %v2138 = vunpack.c.h.b16 %v1718
        %v2139 = vunpack.c.l.b16 %v1719
        %v2140 = vunpack.c.h.b16 %v1719
        %v2141 = vunpack.c.l.b16 %v1720
        %v2142 = vunpack.c.h.b16 %v1720
        %v2143 = vunpack.c.l.b16 %v1721
        %v2144 = vunpack.c.h.b16 %v1721
        %v2145 = vunpack.c.l.b16 %v1722
        %v2146 = vunpack.c.h.b16 %v1722
        %v2147 = vunpack.c.l.b16 %v1723
        %v2148 = vunpack.c.h.b16 %v1723
        %v2149 = vunpack.c.l.b16 %v1724
        %v2150 = vunpack.c.h.b16 %v1724
        %v2151 = vunpack.c.l.b16 %v1725
        %v2152 = vunpack.c.h.b16 %v1725
        %v2153 = vunpack.c.l.b16 %v1726
        %v2154 = vunpack.c.h.b16 %v1726
        %v2155 = vunpack.c.l.b16 %v1727
        %v2156 = vunpack.c.h.b16 %v1727
        %v2157 = vunpack.c.l.b16 %v1728
        %v2158 = vunpack.c.h.b16 %v1728
        %v2159 = vunpack.c.l.b16 %v1729
        %v2160 = vunpack.c.h.b16 %v1729
        %v2161 = vunpack.c.l.b16 %v1730
        %v2162 = vunpack.c.h.b16 %v1730
        %v2163 = vunpack.c.l.b16 %v1731
        %v2164 = vunpack.c.h.b16 %v1731
        %v2165 = vunpack.c.l.b16 %v1732
        %v2166 = vunpack.c.h.b16 %v1732
        %v2167 = vunpack.c.l.b16 %v1733
        %v2168 = vunpack.c.h.b16 %v1733
        %v2169 = vunpack.c.l.b16 %v1734
        %v2170 = vunpack.c.h.b16 %v1734
        %v2171 = vunpack.c.l.b16 %v1735
        %v2172 = vunpack.c.h.b16 %v1735
        %v2173 = vunpack.c.l.b16 %v1736
        %v2174 = vunpack.c.h.b16 %v1736
        %v2175 = vunpack.c.l.b16 %v1737
        %v2176 = vunpack.c.h.b16 %v1737
        %v2177 = vunpack.c.l.b16 %v1738
        %v2178 = vunpack.c.h.b16 %v1738
        %v2179 = vunpack.c.l.b16 %v1739
        %v2180 = vunpack.c.h.b16 %v1739
        %v2181 = vunpack.c.l.b16 %v1740
        %v2182 = vunpack.c.h.b16 %v1740
        %v2183 = vunpack.c.l.b16 %v1741
        %v2184 = vunpack.c.h.b16 %v1741
        %v2185 = vunpack.c.l.b16 %v1742
        %v2186 = vunpack.c.h.b16 %v1742
        %v2187 = vunpack.c.l.b16 %v1743
        %v2188 = vunpack.c.h.b16 %v1743
        %v2189 = vunpack.c.l.b16 %v1744
        %v2190 = vunpack.c.h.b16 %v1744
        %v2191 = vunpack.c.l.b16 %v1745
        %v2192 = vunpack.c.h.b16 %v1745
        %v2193 = vunpack.c.l.b16 %v1746
        %v2194 = vunpack.c.h.b16 %v1746
        %v2195 = vunpack.c.l.b16 %v1747
        %v2196 = vunpack.c.h.b16 %v1747
        %v2197 = vunpack.c.l.b16 %v1748
        %v2198 = vunpack.c.h.b16 %v1748
        %v2199 = vunpack.c.l.b16 %v1749
        %v2200 = vunpack.c.h.b16 %v1749
        %v2201 = vunpack.c.l.b16 %v1750
        %v2202 = vunpack.c.h.b16 %v1750
        %v2203 = vunpack.c.l.b16 %v1751
        %v2204 = vunpack.c.h.b16 %v1751
        %v2205 = vunpack.c.l.b16 %v1752
        %v2206 = vunpack.c.h.b16 %v1752
        %v2207 = vunpack.c.l.b16 %v1753
        %v2208 = vunpack.c.h.b16 %v1753
        %v2209 = vunpack.c.l.b16 %v1754
        %v2210 = vunpack.c.h.b16 %v1754
        %v2211 = vunpack.c.l.b16 %v1755
        %v2212 = vunpack.c.h.b16 %v1755
        %v2213 = vunpack.c.l.b16 %v1756
        %v2214 = vunpack.c.h.b16 %v1756
        %v2215 = vunpack.c.l.b16 %v1757
        %v2216 = vunpack.c.h.b16 %v1757
        %v2217 = vunpack.c.l.b16 %v1758
        %v2218 = vunpack.c.h.b16 %v1758
        %v2219 = vunpack.c.l.b16 %v1759
        %v2220 = vunpack.c.h.b16 %v1759
        %v2221 = vunpack.c.l.b16 %v1760
        %v2222 = vunpack.c.h.b16 %v1760
        %v2223 = vunpack.c.l.b16 %v1761
        %v2224 = vunpack.c.h.b16 %v1761
        %v2225 = vunpack.c.l.b16 %v1762
        %v2226 = vunpack.c.h.b16 %v1762
        %v2227 = vunpack.c.l.b16 %v1763
        %v2228 = vunpack.c.h.b16 %v1763
        %v2229 = vunpack.c.l.b16 %v1764
        %v2230 = vunpack.c.h.b16 %v1764
        %v2231 = vunpack.c.l.b16 %v1765
        %v2232 = vunpack.c.h.b16 %v1765
        %v2233 = vunpack.c.l.b16 %v1766
        %v2234 = vunpack.c.h.b16 %v1766
        %v2235 = vunpack.c.l.b16 %v1767
        %v2236 = vunpack.c.h.b16 %v1767
        %v2237 = vpack.c.b16 %v1997, %v1981
        %v2238 = vpack.c.b16 %v1998, %v1982
        %v2239 = vpack.c.b16 %v1999, %v1983
        %v2240 = vpack.c.b16 %v2000, %v1984
        %v2241 = vpack.c.b16 %v2001, %v1985
        %v2242 = vpack.c.b16 %v2002, %v1986
        %v2243 = vpack.c.b16 %v2003, %v1987
        %v2244 = vpack.c.b16 %v2004, %v1988
        %v2245 = vpack.c.b16 %v2005, %v1989
        %v2246 = vpack.c.b16 %v2006, %v1990
        %v2247 = vpack.c.b16 %v2007, %v1991
        %v2248 = vpack.c.b16 %v2008, %v1992
        %v2249 = vpack.c.b16 %v2009, %v1993
        %v2250 = vpack.c.b16 %v2010, %v1994
        %v2251 = vpack.c.b16 %v2011, %v1995
        %v2252 = vpack.c.b16 %v2012, %v1996
        %v2253 = vpack.c.b16 %v2029, %v2013
        %v2254 = vpack.c.b16 %v2030, %v2014
        %v2255 = vpack.c.b16 %v2031, %v2015
        %v2256 = vpack.c.b16 %v2032, %v2016
        %v2257 = vpack.c.b16 %v2033, %v2017
        %v2258 = vpack.c.b16 %v2034, %v2018
        %v2259 = vpack.c.b16 %v2035, %v2019
        %v2260 = vpack.c.b16 %v2036, %v2020
        %v2261 = vpack.c.b16 %v2037, %v2021
        %v2262 = vpack.c.b16 %v2038, %v2022
        %v2263 = vpack.c.b16 %v2039, %v2023
        %v2264 = vpack.c.b16 %v2040, %v2024
        %v2265 = vpack.c.b16 %v2041, %v2025
        %v2266 = vpack.c.b16 %v2042, %v2026
        %v2267 = vpack.c.b16 %v2043, %v2027
        %v2268 = vpack.c.b16 %v2044, %v2028
        %v2269 = vpack.c.b16 %v2061, %v2045
        %v2270 = vpack.c.b16 %v2062, %v2046
        %v2271 = vpack.c.b16 %v2063, %v2047
        %v2272 = vpack.c.b16 %v2064, %v2048
        %v2273 = vpack.c.b16 %v2065, %v2049
        %v2274 = vpack.c.b16 %v2066, %v2050
        %v2275 = vpack.c.b16 %v2067, %v2051
        %v2276 = vpack.c.b16 %v2068, %v2052
        %v2277 = vpack.c.b16 %v2069, %v2053
        %v2278 = vpack.c.b16 %v2070, %v2054
        %v2279 = vpack.c.b16 %v2071, %v2055
        %v2280 = vpack.c.b16 %v2072, %v2056
        %v2281 = vpack.c.b16 %v2073, %v2057
        %v2282 = vpack.c.b16 %v2074, %v2058
        %v2283 = vpack.c.b16 %v2075, %v2059
        %v2284 = vpack.c.b16 %v2076, %v2060
        %v2285 = vpack.c.b16 %v2093, %v2077
        %v2286 = vpack.c.b16 %v2094, %v2078
        %v2287 = vpack.c.b16 %v2095, %v2079
        %v2288 = vpack.c.b16 %v2096, %v2080
        %v2289 = vpack.c.b16 %v2097, %v2081
        %v2290 = vpack.c.b16 %v2098, %v2082
        %v2291 = vpack.c.b16 %v2099, %v2083
        %v2292 = vpack.c.b16 %v2100, %v2084
        %v2293 = vpack.c.b16 %v2101, %v2085
        %v2294 = vpack.c.b16 %v2102, %v2086
        %v2295 = vpack.c.b16 %v2103, %v2087
        %v2296 = vpack.c.b16 %v2104, %v2088
        %v2297 = vpack.c.b16 %v2105, %v2089
        %v2298 = vpack.c.b16 %v2106, %v2090
        %v2299 = vpack.c.b16 %v2107, %v2091
        %v2300 = vpack.c.b16 %v2108, %v2092
        %v2301 = vpack.c.b16 %v2125, %v2109
        %v2302 = vpack.c.b16 %v2126, %v2110
        %v2303 = vpack.c.b16 %v2127, %v2111
        %v2304 = vpack.c.b16 %v2128, %v2112
        %v2305 = vpack.c.b16 %v2129, %v2113
        %v2306 = vpack.c.b16 %v2130, %v2114
        %v2307 = vpack.c.b16 %v2131, %v2115
        %v2308 = vpack.c.b16 %v2132, %v2116
        %v2309 = vpack.c.b16 %v2133, %v2117
        %v2310 = vpack.c.b16 %v2134, %v2118
        %v2311 = vpack.c.b16 %v2135, %v2119
        %v2312 = vpack.c.b16 %v2136, %v2120
        %v2313 = vpack.c.b16 %v2137, %v2121
        %v2314 = vpack.c.b16 %v2138, %v2122
        %v2315 = vpack.c.b16 %v2139, %v2123
        %v2316 = vpack.c.b16 %v2140, %v2124
        %v2317 = vpack.c.b16 %v2157, %v2141
        %v2318 = vpack.c.b16 %v2158, %v2142
        %v2319 = vpack.c.b16 %v2159, %v2143
        %v2320 = vpack.c.b16 %v2160, %v2144
        %v2321 = vpack.c.b16 %v2161, %v2145
        %v2322 = vpack.c.b16 %v2162, %v2146
        %v2323 = vpack.c.b16 %v2163, %v2147
        %v2324 = vpack.c.b16 %v2164, %v2148
        %v2325 = vpack.c.b16 %v2165, %v2149
        %v2326 = vpack.c.b16 %v2166, %v2150
        %v2327 = vpack.c.b16 %v2167, %v2151
        %v2328 = vpack.c.b16 %v2168, %v2152
        %v2329 = vpack.c.b16 %v2169, %v2153
        %v2330 = vpack.c.b16 %v2170, %v2154
        %v2331 = vpack.c.b16 %v2171, %v2155
        %v2332 = vpack.c.b16 %v2172, %v2156
        %v2333 = vpack.c.b16 %v2189, %v2173
        %v2334 = vpack.c.b16 %v2190, %v2174
        %v2335 = vpack.c.b16 %v2191, %v2175
        %v2336 = vpack.c.b16 %v2192, %v2176
        %v2337 = vpack.c.b16 %v2193, %v2177
        %v2338 = vpack.c.b16 %v2194, %v2178
        %v2339 = vpack.c.b16 %v2195, %v2179
        %v2340 = vpack.c.b16 %v2196, %v2180
        %v2341 = vpack.c.b16 %v2197, %v2181
        %v2342 = vpack.c.b16 %v2198, %v2182
        %v2343 = vpack.c.b16 %v2199, %v2183
        %v2344 = vpack.c.b16 %v2200, %v2184
        %v2345 = vpack.c.b16 %v2201, %v2185
        %v2346 = vpack.c.b16 %v2202, %v2186
        %v2347 = vpack.c.b16 %v2203, %v2187
        %v2348 = vpack.c.b16 %v2204, %v2188
        %v2349 = vpack.c.b16 %v2221, %v2205
        %v2350 = vpack.c.b16 %v2222, %v2206
        %v2351 = vpack.c.b16 %v2223, %v2207
        %v2352 = vpack.c.b16 %v2224, %v2208
        %v2353 = vpack.c.b16 %v2225, %v2209
        %v2354 = vpack.c.b16 %v2226, %v2210
        %v2355 = vpack.c.b16 %v2227, %v2211
        %v2356 = vpack.c.b16 %v2228, %v2212
        %v2357 = vpack.c.b16 %v2229, %v2213
        %v2358 = vpack.c.b16 %v2230, %v2214
        %v2359 = vpack.c.b16 %v2231, %v2215
        %v2360 = vpack.c.b16 %v2232, %v2216
        %v2361 = vpack.c.b16 %v2233, %v2217
        %v2362 = vpack.c.b16 %v2234, %v2218
        %v2363 = vpack.c.b16 %v2235, %v2219
        %v2364 = vpack.c.b16 %v2236, %v2220
        %2493 = vmatprep.subr.bf16.mxu0 %v2350
        %2494 = vmatpush1.bf16.msra.mxu0 %v2349
        %2495 = vmatprep.subr.bf16.mxu0 %v2334
        %2496 = vmatpush1.bf16.msra.mxu0 %v2333
        %2497 = vmatprep.subr.bf16.mxu0 %v2318
        %2498 = vmatpush1.bf16.msra.mxu0 %v2317
        %2499 = vmatprep.subr.bf16.mxu0 %v2302
        %2500 = vmatpush1.bf16.msra.mxu0 %v2301
        %2501 = vmatprep.subr.bf16.mxu0 %v2286
        %2502 = vmatpush1.bf16.msra.mxu0 %v2285
        %2503 = vmatprep.subr.bf16.mxu0 %v2270
        %2504 = vmatpush1.bf16.msra.mxu0 %v2269
        %2505 = vmatprep.subr.bf16.mxu0 %v2254
        %2506 = vmatpush1.bf16.msra.mxu0 %v2253
        %2507 = vmatprep.subr.bf16.mxu0 %v2238
        %2508 = vmatpush1.bf16.msra.mxu0 %v2237
        %2509 = vmatprep.subr.bf16.mxu0 0
        %2510 = vmatpush2.bf16.msra.mxu0 0
        %2511 = vmatprep.subr.bf16.mxu0 0
        %2512 = vmatpush2.bf16.msra.mxu0 0
        %2513 = vmatprep.subr.bf16.mxu0 0
        %2514 = vmatpush2.bf16.msra.mxu0 0
        %2515 = vmatprep.subr.bf16.mxu0 0
        %2516 = vmatpush2.bf16.msra.mxu0 0
        %2517 = vmatprep.subr.bf16.mxu0 0
        %2518 = vmatpush2.bf16.msra.mxu0 0
        %2519 = vmatprep.subr.bf16.mxu0 0
        %2520 = vmatpush2.bf16.msra.mxu0 0
        %2521 = vmatprep.subr.bf16.mxu0 0
        %2522 = vmatpush2.bf16.msra.mxu0 0
        %2523 = vmatprep.subr.bf16.mxu0 0
        %2524 = vmatpush2.bf16.msra.mxu0 0
        %2525 = vmatprep.mubr.bf16.mxu0 0
        %2526 = vmatmul.mubr.bf16.gmra.mxu0 %v1768
        %v2527 = vpop.f32.mrf.mxu0
        %v2528 = vadd.f32 %v1776, %v2527
        %v2529 = vpop.f32.mrf.mxu0
        %v2530 = vadd.f32 %v1780, %v2529
        %v2531 = vpop.f32.mrf.mxu0
        %v2532 = vadd.f32 %v1776, %v2531
        %v2533 = vpop.f32.mrf.mxu0
        %v2534 = vadd.f32 %v1780, %v2533
        %2535 = vdwg.mxu0
        %2536 = vmatprep.subr.bf16.mxu0 %v2352
        %2537 = vmatpush1.bf16.msra.mxu0 %v2351
        %2538 = vmatprep.subr.bf16.mxu0 %v2336
        %2539 = vmatpush1.bf16.msra.mxu0 %v2335
        %2540 = vmatprep.subr.bf16.mxu0 %v2320
        %2541 = vmatpush1.bf16.msra.mxu0 %v2319
        %2542 = vmatprep.subr.bf16.mxu0 %v2304
        %2543 = vmatpush1.bf16.msra.mxu0 %v2303
        %2544 = vmatprep.subr.bf16.mxu0 %v2288
        %2545 = vmatpush1.bf16.msra.mxu0 %v2287
        %2546 = vmatprep.subr.bf16.mxu0 %v2272
        %2547 = vmatpush1.bf16.msra.mxu0 %v2271
        %2548 = vmatprep.subr.bf16.mxu0 %v2256
        %2549 = vmatpush1.bf16.msra.mxu0 %v2255
        %2550 = vmatprep.subr.bf16.mxu0 %v2240
        %2551 = vmatpush1.bf16.msra.mxu0 %v2239
        %2552 = vmatprep.subr.bf16.mxu0 0
        %2553 = vmatpush2.bf16.msra.mxu0 0
        %2554 = vmatprep.subr.bf16.mxu0 0
        %2555 = vmatpush2.bf16.msra.mxu0 0
        %2556 = vmatprep.subr.bf16.mxu0 0
        %2557 = vmatpush2.bf16.msra.mxu0 0
        %2558 = vmatprep.subr.bf16.mxu0 0
        %2559 = vmatpush2.bf16.msra.mxu0 0
        %2560 = vmatprep.subr.bf16.mxu0 0
        %2561 = vmatpush2.bf16.msra.mxu0 0
        %2562 = vmatprep.subr.bf16.mxu0 0
        %2563 = vmatpush2.bf16.msra.mxu0 0
        %2564 = vmatprep.subr.bf16.mxu0 0
        %2565 = vmatpush2.bf16.msra.mxu0 0
        %2566 = vmatprep.subr.bf16.mxu0 0
        %2567 = vmatpush2.bf16.msra.mxu0 0
        %2568 = vmatprep.mubr.bf16.mxu0 0
        %2569 = vmatmul.mubr.bf16.gmra.mxu0 %v1768
        %v2570 = vpop.f32.mrf.mxu0
        %v2571 = vadd.f32 %v1784, %v2570
        %v2572 = vpop.f32.mrf.mxu0
        %v2573 = vadd.f32 %v1788, %v2572
        %v2574 = vpop.f32.mrf.mxu0
        %v2575 = vadd.f32 %v1784, %v2574
        %v2576 = vpop.f32.mrf.mxu0
        %v2577 = vadd.f32 %v1788, %v2576
        %2578 = vdwg.mxu0
        %2579 = vmatprep.subr.bf16.mxu0 %v2354
        %2580 = vmatpush1.bf16.msra.mxu0 %v2353
        %2581 = vmatprep.subr.bf16.mxu0 %v2338
        %2582 = vmatpush1.bf16.msra.mxu0 %v2337
        %2583 = vmatprep.subr.bf16.mxu0 %v2322
        %2584 = vmatpush1.bf16.msra.mxu0 %v2321
        %2585 = vmatprep.subr.bf16.mxu0 %v2306
        %2586 = vmatpush1.bf16.msra.mxu0 %v2305
        %2587 = vmatprep.subr.bf16.mxu0 %v2290
        %2588 = vmatpush1.bf16.msra.mxu0 %v2289
        %2589 = vmatprep.subr.bf16.mxu0 %v2274
        %2590 = vmatpush1.bf16.msra.mxu0 %v2273
        %2591 = vmatprep.subr.bf16.mxu0 %v2258
        %2592 = vmatpush1.bf16.msra.mxu0 %v2257
        %2593 = vmatprep.subr.bf16.mxu0 %v2242
        %2594 = vmatpush1.bf16.msra.mxu0 %v2241
        %2595 = vmatprep.subr.bf16.mxu0 0
        %2596 = vmatpush2.bf16.msra.mxu0 0
        %2597 = vmatprep.subr.bf16.mxu0 0
        %2598 = vmatpush2.bf16.msra.mxu0 0
        %2599 = vmatprep.subr.bf16.mxu0 0
        %2600 = vmatpush2.bf16.msra.mxu0 0
        %2601 = vmatprep.subr.bf16.mxu0 0
        %2602 = vmatpush2.bf16.msra.mxu0 0
        %2603 = vmatprep.subr.bf16.mxu0 0
        %2604 = vmatpush2.bf16.msra.mxu0 0
        %2605 = vmatprep.subr.bf16.mxu0 0
        %2606 = vmatpush2.bf16.msra.mxu0 0
        %2607 = vmatprep.subr.bf16.mxu0 0
        %2608 = vmatpush2.bf16.msra.mxu0 0
        %2609 = vmatprep.subr.bf16.mxu0 0
        %2610 = vmatpush2.bf16.msra.mxu0 0
        %2611 = vmatprep.mubr.bf16.mxu0 0
        %2612 = vmatmul.mubr.bf16.gmra.mxu0 %v1768
        %v2613 = vpop.f32.mrf.mxu0
        %v2614 = vadd.f32 %v1792, %v2613
        %v2615 = vpop.f32.mrf.mxu0
        %v2616 = vadd.f32 %v1796, %v2615
        %v2617 = vpop.f32.mrf.mxu0
        %v2618 = vadd.f32 %v1792, %v2617
        %v2619 = vpop.f32.mrf.mxu0
        %v2620 = vadd.f32 %v1796, %v2619
        %2621 = vdwg.mxu0
        %2622 = vmatprep.subr.bf16.mxu0 %v2356
        %2623 = vmatpush1.bf16.msra.mxu0 %v2355
        %2624 = vmatprep.subr.bf16.mxu0 %v2340
        %2625 = vmatpush1.bf16.msra.mxu0 %v2339
        %2626 = vmatprep.subr.bf16.mxu0 %v2324
        %2627 = vmatpush1.bf16.msra.mxu0 %v2323
        %2628 = vmatprep.subr.bf16.mxu0 %v2308
        %2629 = vmatpush1.bf16.msra.mxu0 %v2307
        %2630 = vmatprep.subr.bf16.mxu0 %v2292
        %2631 = vmatpush1.bf16.msra.mxu0 %v2291
        %2632 = vmatprep.subr.bf16.mxu0 %v2276
        %2633 = vmatpush1.bf16.msra.mxu0 %v2275
        %2634 = vmatprep.subr.bf16.mxu0 %v2260
        %2635 = vmatpush1.bf16.msra.mxu0 %v2259
        %2636 = vmatprep.subr.bf16.mxu0 %v2244
        %2637 = vmatpush1.bf16.msra.mxu0 %v2243
        %2638 = vmatprep.subr.bf16.mxu0 0
        %2639 = vmatpush2.bf16.msra.mxu0 0
        %2640 = vmatprep.subr.bf16.mxu0 0
        %2641 = vmatpush2.bf16.msra.mxu0 0
        %2642 = vmatprep.subr.bf16.mxu0 0
        %2643 = vmatpush2.bf16.msra.mxu0 0
        %2644 = vmatprep.subr.bf16.mxu0 0
        %2645 = vmatpush2.bf16.msra.mxu0 0
        %2646 = vmatprep.subr.bf16.mxu0 0
        %2647 = vmatpush2.bf16.msra.mxu0 0
        %2648 = vmatprep.subr.bf16.mxu0 0
        %2649 = vmatpush2.bf16.msra.mxu0 0
        %2650 = vmatprep.subr.bf16.mxu0 0
        %2651 = vmatpush2.bf16.msra.mxu0 0
        %2652 = vmatprep.subr.bf16.mxu0 0
        %2653 = vmatpush2.bf16.msra.mxu0 0
        %2654 = vmatprep.mubr.bf16.mxu0 0
        %2655 = vmatmul.mubr.bf16.gmra.mxu0 %v1768
        %v2656 = vpop.f32.mrf.mxu0
        %v2657 = vadd.f32 %v1800, %v2656
        %v2658 = vpop.f32.mrf.mxu0
        %v2659 = vadd.f32 %v1804, %v2658
        %v2660 = vpop.f32.mrf.mxu0
        %v2661 = vadd.f32 %v1800, %v2660
        %v2662 = vpop.f32.mrf.mxu0
        %v2663 = vadd.f32 %v1804, %v2662
        %2664 = vdwg.mxu0
        %2665 = vmatprep.subr.bf16.mxu0 %v2358
        %2666 = vmatpush1.bf16.msra.mxu0 %v2357
        %2667 = vmatprep.subr.bf16.mxu0 %v2342
        %2668 = vmatpush1.bf16.msra.mxu0 %v2341
        %2669 = vmatprep.subr.bf16.mxu0 %v2326
        %2670 = vmatpush1.bf16.msra.mxu0 %v2325
        %2671 = vmatprep.subr.bf16.mxu0 %v2310
        %2672 = vmatpush1.bf16.msra.mxu0 %v2309
        %2673 = vmatprep.subr.bf16.mxu0 %v2294
        %2674 = vmatpush1.bf16.msra.mxu0 %v2293
        %2675 = vmatprep.subr.bf16.mxu0 %v2278
        %2676 = vmatpush1.bf16.msra.mxu0 %v2277
        %2677 = vmatprep.subr.bf16.mxu0 %v2262
        %2678 = vmatpush1.bf16.msra.mxu0 %v2261
        %2679 = vmatprep.subr.bf16.mxu0 %v2246
        %2680 = vmatpush1.bf16.msra.mxu0 %v2245
        %2681 = vmatprep.subr.bf16.mxu0 0
        %2682 = vmatpush2.bf16.msra.mxu0 0
        %2683 = vmatprep.subr.bf16.mxu0 0
        %2684 = vmatpush2.bf16.msra.mxu0 0
        %2685 = vmatprep.subr.bf16.mxu0 0
        %2686 = vmatpush2.bf16.msra.mxu0 0
        %2687 = vmatprep.subr.bf16.mxu0 0
        %2688 = vmatpush2.bf16.msra.mxu0 0
        %2689 = vmatprep.subr.bf16.mxu0 0
        %2690 = vmatpush2.bf16.msra.mxu0 0
        %2691 = vmatprep.subr.bf16.mxu0 0
        %2692 = vmatpush2.bf16.msra.mxu0 0
        %2693 = vmatprep.subr.bf16.mxu0 0
        %2694 = vmatpush2.bf16.msra.mxu0 0
        %2695 = vmatprep.subr.bf16.mxu0 0
        %2696 = vmatpush2.bf16.msra.mxu0 0
        %2697 = vmatprep.mubr.bf16.mxu0 0
        %2698 = vmatmul.mubr.bf16.gmra.mxu0 %v1768
        %v2699 = vpop.f32.mrf.mxu0
        %v2700 = vadd.f32 %v1808, %v2699
        %v2701 = vpop.f32.mrf.mxu0
        %v2702 = vadd.f32 %v1812, %v2701
        %v2703 = vpop.f32.mrf.mxu0
        %v2704 = vadd.f32 %v1808, %v2703
        %v2705 = vpop.f32.mrf.mxu0
        %v2706 = vadd.f32 %v1812, %v2705
        %2707 = vdwg.mxu0
        %2708 = vmatprep.subr.bf16.mxu0 %v2360
        %2709 = vmatpush1.bf16.msra.mxu0 %v2359
        %2710 = vmatprep.subr.bf16.mxu0 %v2344
        %2711 = vmatpush1.bf16.msra.mxu0 %v2343
        %2712 = vmatprep.subr.bf16.mxu0 %v2328
        %2713 = vmatpush1.bf16.msra.mxu0 %v2327
        %2714 = vmatprep.subr.bf16.mxu0 %v2312
        %2715 = vmatpush1.bf16.msra.mxu0 %v2311
        %2716 = vmatprep.subr.bf16.mxu0 %v2296
        %2717 = vmatpush1.bf16.msra.mxu0 %v2295
        %2718 = vmatprep.subr.bf16.mxu0 %v2280
        %2719 = vmatpush1.bf16.msra.mxu0 %v2279
        %2720 = vmatprep.subr.bf16.mxu0 %v2264
        %2721 = vmatpush1.bf16.msra.mxu0 %v2263
        %2722 = vmatprep.subr.bf16.mxu0 %v2248
        %2723 = vmatpush1.bf16.msra.mxu0 %v2247
        %2724 = vmatprep.subr.bf16.mxu0 0
        %2725 = vmatpush2.bf16.msra.mxu0 0
        %2726 = vmatprep.subr.bf16.mxu0 0
        %2727 = vmatpush2.bf16.msra.mxu0 0
        %2728 = vmatprep.subr.bf16.mxu0 0
        %2729 = vmatpush2.bf16.msra.mxu0 0
        %2730 = vmatprep.subr.bf16.mxu0 0
        %2731 = vmatpush2.bf16.msra.mxu0 0
        %2732 = vmatprep.subr.bf16.mxu0 0
        %2733 = vmatpush2.bf16.msra.mxu0 0
        %2734 = vmatprep.subr.bf16.mxu0 0
        %2735 = vmatpush2.bf16.msra.mxu0 0
        %2736 = vmatprep.subr.bf16.mxu0 0
        %2737 = vmatpush2.bf16.msra.mxu0 0
        %2738 = vmatprep.subr.bf16.mxu0 0
        %2739 = vmatpush2.bf16.msra.mxu0 0
        %2740 = vmatprep.mubr.bf16.mxu0 0
        %2741 = vmatmul.mubr.bf16.gmra.mxu0 %v1768
        %v2742 = vpop.f32.mrf.mxu0
        %v2743 = vadd.f32 %v1816, %v2742
        %v2744 = vpop.f32.mrf.mxu0
        %v2745 = vadd.f32 %v1820, %v2744
        %v2746 = vpop.f32.mrf.mxu0
        %v2747 = vadd.f32 %v1816, %v2746
        %v2748 = vpop.f32.mrf.mxu0
        %v2749 = vadd.f32 %v1820, %v2748
        %2750 = vdwg.mxu0
        %2751 = vmatprep.subr.bf16.mxu0 %v2362
        %2752 = vmatpush1.bf16.msra.mxu0 %v2361
        %2753 = vmatprep.subr.bf16.mxu0 %v2346
        %2754 = vmatpush1.bf16.msra.mxu0 %v2345
        %2755 = vmatprep.subr.bf16.mxu0 %v2330
        %2756 = vmatpush1.bf16.msra.mxu0 %v2329
        %2757 = vmatprep.subr.bf16.mxu0 %v2314
        %2758 = vmatpush1.bf16.msra.mxu0 %v2313
        %2759 = vmatprep.subr.bf16.mxu0 %v2298
        %2760 = vmatpush1.bf16.msra.mxu0 %v2297
        %2761 = vmatprep.subr.bf16.mxu0 %v2282
        %2762 = vmatpush1.bf16.msra.mxu0 %v2281
        %2763 = vmatprep.subr.bf16.mxu0 %v2266
        %2764 = vmatpush1.bf16.msra.mxu0 %v2265
        %2765 = vmatprep.subr.bf16.mxu0 %v2250
        %2766 = vmatpush1.bf16.msra.mxu0 %v2249
        %2767 = vmatprep.subr.bf16.mxu0 0
        %2768 = vmatpush2.bf16.msra.mxu0 0
        %2769 = vmatprep.subr.bf16.mxu0 0
        %2770 = vmatpush2.bf16.msra.mxu0 0
        %2771 = vmatprep.subr.bf16.mxu0 0
        %2772 = vmatpush2.bf16.msra.mxu0 0
        %2773 = vmatprep.subr.bf16.mxu0 0
        %2774 = vmatpush2.bf16.msra.mxu0 0
        %2775 = vmatprep.subr.bf16.mxu0 0
        %2776 = vmatpush2.bf16.msra.mxu0 0
        %2777 = vmatprep.subr.bf16.mxu0 0
        %2778 = vmatpush2.bf16.msra.mxu0 0
        %2779 = vmatprep.subr.bf16.mxu0 0
        %2780 = vmatpush2.bf16.msra.mxu0 0
        %2781 = vmatprep.subr.bf16.mxu0 0
        %2782 = vmatpush2.bf16.msra.mxu0 0
        %2783 = vmatprep.mubr.bf16.mxu0 0
        %2784 = vmatmul.mubr.bf16.gmra.mxu0 %v1768
        %v2785 = vpop.f32.mrf.mxu0
        %v2786 = vadd.f32 %v1824, %v2785
        %v2787 = vpop.f32.mrf.mxu0
        %v2788 = vadd.f32 %v1828, %v2787
        %v2789 = vpop.f32.mrf.mxu0
        %v2790 = vadd.f32 %v1824, %v2789
        %v2791 = vpop.f32.mrf.mxu0
        %v2792 = vadd.f32 %v1828, %v2791
        %2793 = vdwg.mxu0
        %2794 = vmatprep.subr.bf16.mxu0 %v2364
        %2795 = vmatpush1.bf16.msra.mxu0 %v2363
        %2796 = vmatprep.subr.bf16.mxu0 %v2348
        %2797 = vmatpush1.bf16.msra.mxu0 %v2347
        %2798 = vmatprep.subr.bf16.mxu0 %v2332
        %2799 = vmatpush1.bf16.msra.mxu0 %v2331
        %2800 = vmatprep.subr.bf16.mxu0 %v2316
        %2801 = vmatpush1.bf16.msra.mxu0 %v2315
        %2802 = vmatprep.subr.bf16.mxu0 %v2300
        %2803 = vmatpush1.bf16.msra.mxu0 %v2299
        %2804 = vmatprep.subr.bf16.mxu0 %v2284
        %2805 = vmatpush1.bf16.msra.mxu0 %v2283
        %2806 = vmatprep.subr.bf16.mxu0 %v2268
        %2807 = vmatpush1.bf16.msra.mxu0 %v2267
        %2808 = vmatprep.subr.bf16.mxu0 %v2252
        %2809 = vmatpush1.bf16.msra.mxu0 %v2251
        %2810 = vmatprep.subr.bf16.mxu0 0
        %2811 = vmatpush2.bf16.msra.mxu0 0
        %2812 = vmatprep.subr.bf16.mxu0 0
        %2813 = vmatpush2.bf16.msra.mxu0 0
        %2814 = vmatprep.subr.bf16.mxu0 0
        %2815 = vmatpush2.bf16.msra.mxu0 0
        %2816 = vmatprep.subr.bf16.mxu0 0
        %2817 = vmatpush2.bf16.msra.mxu0 0
        %2818 = vmatprep.subr.bf16.mxu0 0
        %2819 = vmatpush2.bf16.msra.mxu0 0
        %2820 = vmatprep.subr.bf16.mxu0 0
        %2821 = vmatpush2.bf16.msra.mxu0 0
        %2822 = vmatprep.subr.bf16.mxu0 0
        %2823 = vmatpush2.bf16.msra.mxu0 0
        %2824 = vmatprep.subr.bf16.mxu0 0
        %2825 = vmatpush2.bf16.msra.mxu0 0
        %2826 = vmatprep.mubr.bf16.mxu0 0
        %2827 = vmatmul.mubr.bf16.gmra.mxu0 %v1768
        %v2828 = vpop.f32.mrf.mxu0
        %v2829 = vadd.f32 %v1832, %v2828
        %v2830 = vpop.f32.mrf.mxu0
        %v2831 = vadd.f32 %v1836, %v2830
        %v2832 = vpop.f32.mrf.mxu0
        %v2833 = vadd.f32 %v1832, %v2832
        %v2834 = vpop.f32.mrf.mxu0
        %v2835 = vadd.f32 %v1836, %v2834
        %2836 = vdwg.mxu0
        %v2837 = vmax.f32 %v2528, 0.0
        %v2838 = vmax.f32 %v2530, 0.0
        %v2839 = vmax.f32 %v2571, 0.0
        %v2840 = vmax.f32 %v2573, 0.0
        %v2841 = vmax.f32 %v2614, 0.0
        %v2842 = vmax.f32 %v2616, 0.0
        %v2843 = vmax.f32 %v2657, 0.0
        %v2844 = vmax.f32 %v2659, 0.0
        %v2845 = vmax.f32 %v2700, 0.0
        %v2846 = vmax.f32 %v2702, 0.0
        %v2847 = vmax.f32 %v2743, 0.0
        %v2848 = vmax.f32 %v2745, 0.0
        %v2849 = vmax.f32 %v2786, 0.0
        %v2850 = vmax.f32 %v2788, 0.0
        %v2851 = vmax.f32 %v2829, 0.0
        %v2852 = vmax.f32 %v2831, 0.0
        %v2853 = vmax.f32 %v2532, 0.0
        %v2854 = vmax.f32 %v2534, 0.0
        %v2855 = vmax.f32 %v2575, 0.0
        %v2856 = vmax.f32 %v2577, 0.0
        %v2857 = vmax.f32 %v2618, 0.0
        %v2858 = vmax.f32 %v2620, 0.0
        %v2859 = vmax.f32 %v2661, 0.0
        %v2860 = vmax.f32 %v2663, 0.0
        %v2861 = vmax.f32 %v2704, 0.0
        %v2862 = vmax.f32 %v2706, 0.0
        %v2863 = vmax.f32 %v2747, 0.0
        %v2864 = vmax.f32 %v2749, 0.0
        %v2865 = vmax.f32 %v2790, 0.0
        %v2866 = vmax.f32 %v2792, 0.0
        %v2867 = vmax.f32 %v2833, 0.0
        %v2868 = vmax.f32 %v2835, 0.0
        %v2869 = vld [vmem:[%s739] sm:$0xf]
        %v2870 = vld [vmem:[%s739 + $0x4] sm:$0xf]
        %v2871 = vld [vmem:[%s739 + $0x8] sm:$0xf]
        %v2872 = vld [vmem:[%s739 + $0xc] sm:$0xf]
        %v2873 = vld [vmem:[%s739 + $0x10] sm:$0xf]
        %v2874 = vld [vmem:[%s739 + $0x14] sm:$0xf]
        %v2875 = vld [vmem:[%s739 + $0x18] sm:$0xf]
        %v2876 = vld [vmem:[%s739 + $0x1c] sm:$0xf]
        %v2877 = vld [vmem:[%s739 + $0x20] sm:$0xf]
        %v2878 = vld [vmem:[%s739 + $0x24] sm:$0xf]
        %v2879 = vld [vmem:[%s739 + $0x28] sm:$0xf]
        %v2880 = vld [vmem:[%s739 + $0x2c] sm:$0xf]
        %v2881 = vld [vmem:[%s739 + $0x30] sm:$0xf]
        %v2882 = vld [vmem:[%s739 + $0x34] sm:$0xf]
        %v2883 = vld [vmem:[%s739 + $0x38] sm:$0xf]
        %v2884 = vld [vmem:[%s739 + $0x3c] sm:$0xf]
        %v2885 = vld [vmem:[%s739 + $0x40] sm:$0xf]
        %v2886 = vld [vmem:[%s739 + $0x44] sm:$0xf]
        %v2887 = vld [vmem:[%s739 + $0x48] sm:$0xf]
        %v2888 = vld [vmem:[%s739 + $0x4c] sm:$0xf]
        %v2889 = vld [vmem:[%s739 + $0x50] sm:$0xf]
        %v2890 = vld [vmem:[%s739 + $0x54] sm:$0xf]
        %v2891 = vld [vmem:[%s739 + $0x58] sm:$0xf]
        %v2892 = vld [vmem:[%s739 + $0x5c] sm:$0xf]
        %v2893 = vld [vmem:[%s739 + $0x60] sm:$0xf]
        %v2894 = vld [vmem:[%s739 + $0x64] sm:$0xf]
        %v2895 = vld [vmem:[%s739 + $0x68] sm:$0xf]
        %v2896 = vld [vmem:[%s739 + $0x6c] sm:$0xf]
        %v2897 = vld [vmem:[%s739 + $0x70] sm:$0xf]
        %v2898 = vld [vmem:[%s739 + $0x74] sm:$0xf]
        %v2899 = vld [vmem:[%s739 + $0x78] sm:$0xf]
        %v2900 = vld [vmem:[%s739 + $0x7c] sm:$0xf]
        %v2901 = vld [vmem:[%s739 + $0x80] sm:$0xf]
        %v2902 = vld [vmem:[%s739 + $0x84] sm:$0xf]
        %v2903 = vld [vmem:[%s739 + $0x88] sm:$0xf]
        %v2904 = vld [vmem:[%s739 + $0x8c] sm:$0xf]
        %v2905 = vld [vmem:[%s739 + $0x90] sm:$0xf]
        %v2906 = vld [vmem:[%s739 + $0x94] sm:$0xf]
        %v2907 = vld [vmem:[%s739 + $0x98] sm:$0xf]
        %v2908 = vld [vmem:[%s739 + $0x9c] sm:$0xf]
        %v2909 = vld [vmem:[%s739 + $0xa0] sm:$0xf]
        %v2910 = vld [vmem:[%s739 + $0xa4] sm:$0xf]
        %v2911 = vld [vmem:[%s739 + $0xa8] sm:$0xf]
        %v2912 = vld [vmem:[%s739 + $0xac] sm:$0xf]
        %v2913 = vld [vmem:[%s739 + $0xb0] sm:$0xf]
        %v2914 = vld [vmem:[%s739 + $0xb4] sm:$0xf]
        %v2915 = vld [vmem:[%s739 + $0xb8] sm:$0xf]
        %v2916 = vld [vmem:[%s739 + $0xbc] sm:$0xf]
        %v2917 = vld [vmem:[%s739 + $0xc0] sm:$0xf]
        %v2918 = vld [vmem:[%s739 + $0xc4] sm:$0xf]
        %v2919 = vld [vmem:[%s739 + $0xc8] sm:$0xf]
        %v2920 = vld [vmem:[%s739 + $0xcc] sm:$0xf]
        %v2921 = vld [vmem:[%s739 + $0xd0] sm:$0xf]
        %v2922 = vld [vmem:[%s739 + $0xd4] sm:$0xf]
        %v2923 = vld [vmem:[%s739 + $0xd8] sm:$0xf]
        %v2924 = vld [vmem:[%s739 + $0xdc] sm:$0xf]
        %v2925 = vld [vmem:[%s739 + $0xe0] sm:$0xf]
        %v2926 = vld [vmem:[%s739 + $0xe4] sm:$0xf]
        %v2927 = vld [vmem:[%s739 + $0xe8] sm:$0xf]
        %v2928 = vld [vmem:[%s739 + $0xec] sm:$0xf]
        %v2929 = vld [vmem:[%s739 + $0xf0] sm:$0xf]
        %v2930 = vld [vmem:[%s739 + $0xf4] sm:$0xf]
        %v2931 = vld [vmem:[%s739 + $0xf8] sm:$0xf]
        %v2932 = vld [vmem:[%s739 + $0xfc] sm:$0xf]
        %v2933 = vld [vmem:[%s739 + $0x100] sm:$0xf]
        %v2934 = vld [vmem:[%s739 + $0x104] sm:$0xf]
        %v2935 = vld [vmem:[%s739 + $0x108] sm:$0xf]
        %v2936 = vld [vmem:[%s739 + $0x10c] sm:$0xf]
        %v2937 = vld [vmem:[%s739 + $0x110] sm:$0xf]
        %v2938 = vld [vmem:[%s739 + $0x114] sm:$0xf]
        %v2939 = vld [vmem:[%s739 + $0x118] sm:$0xf]
        %v2940 = vld [vmem:[%s739 + $0x11c] sm:$0xf]
        %v2941 = vld [vmem:[%s739 + $0x120] sm:$0xf]
        %v2942 = vld [vmem:[%s739 + $0x124] sm:$0xf]
        %v2943 = vld [vmem:[%s739 + $0x128] sm:$0xf]
        %v2944 = vld [vmem:[%s739 + $0x12c] sm:$0xf]
        %v2945 = vld [vmem:[%s739 + $0x130] sm:$0xf]
        %v2946 = vld [vmem:[%s739 + $0x134] sm:$0xf]
        %v2947 = vld [vmem:[%s739 + $0x138] sm:$0xf]
        %v2948 = vld [vmem:[%s739 + $0x13c] sm:$0xf]
        %v2949 = vld [vmem:[%s739 + $0x140] sm:$0xf]
        %v2950 = vld [vmem:[%s739 + $0x144] sm:$0xf]
        %v2951 = vld [vmem:[%s739 + $0x148] sm:$0xf]
        %v2952 = vld [vmem:[%s739 + $0x14c] sm:$0xf]
        %v2953 = vld [vmem:[%s739 + $0x150] sm:$0xf]
        %v2954 = vld [vmem:[%s739 + $0x154] sm:$0xf]
        %v2955 = vld [vmem:[%s739 + $0x158] sm:$0xf]
        %v2956 = vld [vmem:[%s739 + $0x15c] sm:$0xf]
        %v2957 = vld [vmem:[%s739 + $0x160] sm:$0xf]
        %v2958 = vld [vmem:[%s739 + $0x164] sm:$0xf]
        %v2959 = vld [vmem:[%s739 + $0x168] sm:$0xf]
        %v2960 = vld [vmem:[%s739 + $0x16c] sm:$0xf]
        %v2961 = vld [vmem:[%s739 + $0x170] sm:$0xf]
        %v2962 = vld [vmem:[%s739 + $0x174] sm:$0xf]
        %v2963 = vld [vmem:[%s739 + $0x178] sm:$0xf]
        %v2964 = vld [vmem:[%s739 + $0x17c] sm:$0xf]
        %v2965 = vld [vmem:[%s739 + $0x180] sm:$0xf]
        %v2966 = vld [vmem:[%s739 + $0x184] sm:$0xf]
        %v2967 = vld [vmem:[%s739 + $0x188] sm:$0xf]
        %v2968 = vld [vmem:[%s739 + $0x18c] sm:$0xf]
        %v2969 = vld [vmem:[%s739 + $0x190] sm:$0xf]
        %v2970 = vld [vmem:[%s739 + $0x194] sm:$0xf]
        %v2971 = vld [vmem:[%s739 + $0x198] sm:$0xf]
        %v2972 = vld [vmem:[%s739 + $0x19c] sm:$0xf]
        %v2973 = vld [vmem:[%s739 + $0x1a0] sm:$0xf]
        %v2974 = vld [vmem:[%s739 + $0x1a4] sm:$0xf]
        %v2975 = vld [vmem:[%s739 + $0x1a8] sm:$0xf]
        %v2976 = vld [vmem:[%s739 + $0x1ac] sm:$0xf]
        %v2977 = vld [vmem:[%s739 + $0x1b0] sm:$0xf]
        %v2978 = vld [vmem:[%s739 + $0x1b4] sm:$0xf]
        %v2979 = vld [vmem:[%s739 + $0x1b8] sm:$0xf]
        %v2980 = vld [vmem:[%s739 + $0x1bc] sm:$0xf]
        %v2981 = vld [vmem:[%s739 + $0x1c0] sm:$0xf]
        %v2982 = vld [vmem:[%s739 + $0x1c4] sm:$0xf]
        %v2983 = vld [vmem:[%s739 + $0x1c8] sm:$0xf]
        %v2984 = vld [vmem:[%s739 + $0x1cc] sm:$0xf]
        %v2985 = vld [vmem:[%s739 + $0x1d0] sm:$0xf]
        %v2986 = vld [vmem:[%s739 + $0x1d4] sm:$0xf]
        %v2987 = vld [vmem:[%s739 + $0x1d8] sm:$0xf]
        %v2988 = vld [vmem:[%s739 + $0x1dc] sm:$0xf]
        %v2989 = vld [vmem:[%s739 + $0x1e0] sm:$0xf]
        %v2990 = vld [vmem:[%s739 + $0x1e4] sm:$0xf]
        %v2991 = vld [vmem:[%s739 + $0x1e8] sm:$0xf]
        %v2992 = vld [vmem:[%s739 + $0x1ec] sm:$0xf]
        %v2993 = vld [vmem:[%s739 + $0x1f0] sm:$0xf]
        %v2994 = vld [vmem:[%s739 + $0x1f4] sm:$0xf]
        %v2995 = vld [vmem:[%s739 + $0x1f8] sm:$0xf]
        %v2996 = vld [vmem:[%s739 + $0x1fc] sm:$0xf]
        %v2997 = vld [vmem:[%s739 + $0x200] sm:$0xf]
        %v2998 = vld [vmem:[%s739 + $0x204] sm:$0xf]
        %v2999 = vld [vmem:[%s739 + $0x208] sm:$0xf]
        %v3000 = vld [vmem:[%s739 + $0x20c] sm:$0xf]
        %v3001 = vld [vmem:[%s739 + $0x210] sm:$0xf]
        %v3002 = vld [vmem:[%s739 + $0x214] sm:$0xf]
        %v3003 = vld [vmem:[%s739 + $0x218] sm:$0xf]
        %v3004 = vld [vmem:[%s739 + $0x21c] sm:$0xf]
        %v3005 = vld [vmem:[%s739 + $0x220] sm:$0xf]
        %v3006 = vld [vmem:[%s739 + $0x224] sm:$0xf]
        %v3007 = vld [vmem:[%s739 + $0x228] sm:$0xf]
        %v3008 = vld [vmem:[%s739 + $0x22c] sm:$0xf]
        %v3009 = vld [vmem:[%s739 + $0x230] sm:$0xf]
        %v3010 = vld [vmem:[%s739 + $0x234] sm:$0xf]
        %v3011 = vld [vmem:[%s739 + $0x238] sm:$0xf]
        %v3012 = vld [vmem:[%s739 + $0x23c] sm:$0xf]
        %v3013 = vld [vmem:[%s739 + $0x240] sm:$0xf]
        %v3014 = vld [vmem:[%s739 + $0x244] sm:$0xf]
        %v3015 = vld [vmem:[%s739 + $0x248] sm:$0xf]
        %v3016 = vld [vmem:[%s739 + $0x24c] sm:$0xf]
        %v3017 = vld [vmem:[%s739 + $0x250] sm:$0xf]
        %v3018 = vld [vmem:[%s739 + $0x254] sm:$0xf]
        %v3019 = vld [vmem:[%s739 + $0x258] sm:$0xf]
        %v3020 = vld [vmem:[%s739 + $0x25c] sm:$0xf]
        %v3021 = vld [vmem:[%s739 + $0x260] sm:$0xf]
        %v3022 = vld [vmem:[%s739 + $0x264] sm:$0xf]
        %v3023 = vld [vmem:[%s739 + $0x268] sm:$0xf]
        %v3024 = vld [vmem:[%s739 + $0x26c] sm:$0xf]
        %v3025 = vld [vmem:[%s739 + $0x270] sm:$0xf]
        %v3026 = vld [vmem:[%s739 + $0x274] sm:$0xf]
        %v3027 = vld [vmem:[%s739 + $0x278] sm:$0xf]
        %v3028 = vld [vmem:[%s739 + $0x27c] sm:$0xf]
        %v3029 = vld [vmem:[%s739 + $0x280] sm:$0xf]
        %v3030 = vld [vmem:[%s739 + $0x284] sm:$0xf]
        %v3031 = vld [vmem:[%s739 + $0x288] sm:$0xf]
        %v3032 = vld [vmem:[%s739 + $0x28c] sm:$0xf]
        %v3033 = vld [vmem:[%s739 + $0x290] sm:$0xf]
        %v3034 = vld [vmem:[%s739 + $0x294] sm:$0xf]
        %v3035 = vld [vmem:[%s739 + $0x298] sm:$0xf]
        %v3036 = vld [vmem:[%s739 + $0x29c] sm:$0xf]
        %v3037 = vld [vmem:[%s739 + $0x2a0] sm:$0xf]
        %v3038 = vld [vmem:[%s739 + $0x2a4] sm:$0xf]
        %v3039 = vld [vmem:[%s739 + $0x2a8] sm:$0xf]
        %v3040 = vld [vmem:[%s739 + $0x2ac] sm:$0xf]
        %v3041 = vld [vmem:[%s739 + $0x2b0] sm:$0xf]
        %v3042 = vld [vmem:[%s739 + $0x2b4] sm:$0xf]
        %v3043 = vld [vmem:[%s739 + $0x2b8] sm:$0xf]
        %v3044 = vld [vmem:[%s739 + $0x2bc] sm:$0xf]
        %v3045 = vld [vmem:[%s739 + $0x2c0] sm:$0xf]
        %v3046 = vld [vmem:[%s739 + $0x2c4] sm:$0xf]
        %v3047 = vld [vmem:[%s739 + $0x2c8] sm:$0xf]
        %v3048 = vld [vmem:[%s739 + $0x2cc] sm:$0xf]
        %v3049 = vld [vmem:[%s739 + $0x2d0] sm:$0xf]
        %v3050 = vld [vmem:[%s739 + $0x2d4] sm:$0xf]
        %v3051 = vld [vmem:[%s739 + $0x2d8] sm:$0xf]
        %v3052 = vld [vmem:[%s739 + $0x2dc] sm:$0xf]
        %v3053 = vld [vmem:[%s739 + $0x2e0] sm:$0xf]
        %v3054 = vld [vmem:[%s739 + $0x2e4] sm:$0xf]
        %v3055 = vld [vmem:[%s739 + $0x2e8] sm:$0xf]
        %v3056 = vld [vmem:[%s739 + $0x2ec] sm:$0xf]
        %v3057 = vld [vmem:[%s739 + $0x2f0] sm:$0xf]
        %v3058 = vld [vmem:[%s739 + $0x2f4] sm:$0xf]
        %v3059 = vld [vmem:[%s739 + $0x2f8] sm:$0xf]
        %v3060 = vld [vmem:[%s739 + $0x2fc] sm:$0xf]
        %v3061 = vld [vmem:[%s739 + $0x300] sm:$0xf]
        %v3062 = vld [vmem:[%s739 + $0x304] sm:$0xf]
        %v3063 = vld [vmem:[%s739 + $0x308] sm:$0xf]
        %v3064 = vld [vmem:[%s739 + $0x30c] sm:$0xf]
        %v3065 = vld [vmem:[%s739 + $0x310] sm:$0xf]
        %v3066 = vld [vmem:[%s739 + $0x314] sm:$0xf]
        %v3067 = vld [vmem:[%s739 + $0x318] sm:$0xf]
        %v3068 = vld [vmem:[%s739 + $0x31c] sm:$0xf]
        %v3069 = vld [vmem:[%s739 + $0x320] sm:$0xf]
        %v3070 = vld [vmem:[%s739 + $0x324] sm:$0xf]
        %v3071 = vld [vmem:[%s739 + $0x328] sm:$0xf]
        %v3072 = vld [vmem:[%s739 + $0x32c] sm:$0xf]
        %v3073 = vld [vmem:[%s739 + $0x330] sm:$0xf]
        %v3074 = vld [vmem:[%s739 + $0x334] sm:$0xf]
        %v3075 = vld [vmem:[%s739 + $0x338] sm:$0xf]
        %v3076 = vld [vmem:[%s739 + $0x33c] sm:$0xf]
        %v3077 = vld [vmem:[%s739 + $0x340] sm:$0xf]
        %v3078 = vld [vmem:[%s739 + $0x344] sm:$0xf]
        %v3079 = vld [vmem:[%s739 + $0x348] sm:$0xf]
        %v3080 = vld [vmem:[%s739 + $0x34c] sm:$0xf]
        %v3081 = vld [vmem:[%s739 + $0x350] sm:$0xf]
        %v3082 = vld [vmem:[%s739 + $0x354] sm:$0xf]
        %v3083 = vld [vmem:[%s739 + $0x358] sm:$0xf]
        %v3084 = vld [vmem:[%s739 + $0x35c] sm:$0xf]
        %v3085 = vld [vmem:[%s739 + $0x360] sm:$0xf]
        %v3086 = vld [vmem:[%s739 + $0x364] sm:$0xf]
        %v3087 = vld [vmem:[%s739 + $0x368] sm:$0xf]
        %v3088 = vld [vmem:[%s739 + $0x36c] sm:$0xf]
        %v3089 = vld [vmem:[%s739 + $0x370] sm:$0xf]
        %v3090 = vld [vmem:[%s739 + $0x374] sm:$0xf]
        %v3091 = vld [vmem:[%s739 + $0x378] sm:$0xf]
        %v3092 = vld [vmem:[%s739 + $0x37c] sm:$0xf]
        %v3093 = vld [vmem:[%s739 + $0x380] sm:$0xf]
        %v3094 = vld [vmem:[%s739 + $0x384] sm:$0xf]
        %v3095 = vld [vmem:[%s739 + $0x388] sm:$0xf]
        %v3096 = vld [vmem:[%s739 + $0x38c] sm:$0xf]
        %v3097 = vld [vmem:[%s739 + $0x390] sm:$0xf]
        %v3098 = vld [vmem:[%s739 + $0x394] sm:$0xf]
        %v3099 = vld [vmem:[%s739 + $0x398] sm:$0xf]
        %v3100 = vld [vmem:[%s739 + $0x39c] sm:$0xf]
        %v3101 = vld [vmem:[%s739 + $0x3a0] sm:$0xf]
        %v3102 = vld [vmem:[%s739 + $0x3a4] sm:$0xf]
        %v3103 = vld [vmem:[%s739 + $0x3a8] sm:$0xf]
        %v3104 = vld [vmem:[%s739 + $0x3ac] sm:$0xf]
        %v3105 = vld [vmem:[%s739 + $0x3b0] sm:$0xf]
        %v3106 = vld [vmem:[%s739 + $0x3b4] sm:$0xf]
        %v3107 = vld [vmem:[%s739 + $0x3b8] sm:$0xf]
        %v3108 = vld [vmem:[%s739 + $0x3bc] sm:$0xf]
        %v3109 = vld [vmem:[%s739 + $0x3c0] sm:$0xf]
        %v3110 = vld [vmem:[%s739 + $0x3c4] sm:$0xf]
        %v3111 = vld [vmem:[%s739 + $0x3c8] sm:$0xf]
        %v3112 = vld [vmem:[%s739 + $0x3cc] sm:$0xf]
        %v3113 = vld [vmem:[%s739 + $0x3d0] sm:$0xf]
        %v3114 = vld [vmem:[%s739 + $0x3d4] sm:$0xf]
        %v3115 = vld [vmem:[%s739 + $0x3d8] sm:$0xf]
        %v3116 = vld [vmem:[%s739 + $0x3dc] sm:$0xf]
        %v3117 = vld [vmem:[%s739 + $0x3e0] sm:$0xf]
        %v3118 = vld [vmem:[%s739 + $0x3e4] sm:$0xf]
        %v3119 = vld [vmem:[%s739 + $0x3e8] sm:$0xf]
        %v3120 = vld [vmem:[%s739 + $0x3ec] sm:$0xf]
        %v3121 = vld [vmem:[%s739 + $0x3f0] sm:$0xf]
        %v3122 = vld [vmem:[%s739 + $0x3f4] sm:$0xf]
        %v3123 = vld [vmem:[%s739 + $0x3f8] sm:$0xf]
        %v3124 = vld [vmem:[%s739 + $0x3fc] sm:$0xf]
        %v3125 = vpack.c.bf16 %v2853, %v2837
        %v3126 = vpack.c.bf16 %v2854, %v2838
        %v3127 = vpack.c.bf16 %v2855, %v2839
        %v3128 = vpack.c.bf16 %v2856, %v2840
        %v3129 = vpack.c.bf16 %v2857, %v2841
        %v3130 = vpack.c.bf16 %v2858, %v2842
        %v3131 = vpack.c.bf16 %v2859, %v2843
        %v3132 = vpack.c.bf16 %v2860, %v2844
        %v3133 = vpack.c.bf16 %v2861, %v2845
        %v3134 = vpack.c.bf16 %v2862, %v2846
        %v3135 = vpack.c.bf16 %v2863, %v2847
        %v3136 = vpack.c.bf16 %v2864, %v2848
        %v3137 = vpack.c.bf16 %v2865, %v2849
        %v3138 = vpack.c.bf16 %v2866, %v2850
        %v3139 = vpack.c.bf16 %v2867, %v2851
        %v3140 = vpack.c.bf16 %v2868, %v2852
        %v3141 = vld [vmem:[%s747] sm:$0x1]
        %v3143 = vlaneseq
        %v3144 = vshrl.u32 %v3143, 7
        %v3145 = vsub.s32 0, %v3144
        %v3146 = vrot.slane %v3141, %v3145
        %v3404 = vunpack.c.l.b16 %v2869
        %v3405 = vunpack.c.l.b16 %v2870
        %v3406 = vunpack.c.l.b16 %v2871
        %v3407 = vunpack.c.l.b16 %v2872
        %v3408 = vunpack.c.l.b16 %v2873
        %v3409 = vunpack.c.l.b16 %v2874
        %v3410 = vunpack.c.l.b16 %v2875
        %v3411 = vunpack.c.l.b16 %v2876
        %v3412 = vunpack.c.l.b16 %v2877
        %v3413 = vunpack.c.l.b16 %v2878
        %v3414 = vunpack.c.l.b16 %v2879
        %v3415 = vunpack.c.l.b16 %v2880
        %v3416 = vunpack.c.l.b16 %v2881
        %v3417 = vunpack.c.l.b16 %v2882
        %v3418 = vunpack.c.l.b16 %v2883
        %v3419 = vunpack.c.l.b16 %v2884
        %v3420 = vunpack.c.l.b16 %v2885
        %v3421 = vunpack.c.l.b16 %v2886
        %v3422 = vunpack.c.l.b16 %v2887
        %v3423 = vunpack.c.l.b16 %v2888
        %v3424 = vunpack.c.l.b16 %v2889
        %v3425 = vunpack.c.l.b16 %v2890
        %v3426 = vunpack.c.l.b16 %v2891
        %v3427 = vunpack.c.l.b16 %v2892
        %v3428 = vunpack.c.l.b16 %v2893
        %v3429 = vunpack.c.l.b16 %v2894
        %v3430 = vunpack.c.l.b16 %v2895
        %v3431 = vunpack.c.l.b16 %v2896
        %v3432 = vunpack.c.l.b16 %v2897
        %v3433 = vunpack.c.l.b16 %v2898
        %v3434 = vunpack.c.l.b16 %v2899
        %v3435 = vunpack.c.l.b16 %v2900
        %v3436 = vunpack.c.l.b16 %v2901
        %v3437 = vunpack.c.l.b16 %v2902
        %v3438 = vunpack.c.l.b16 %v2903
        %v3439 = vunpack.c.l.b16 %v2904
        %v3440 = vunpack.c.l.b16 %v2905
        %v3441 = vunpack.c.l.b16 %v2906
        %v3442 = vunpack.c.l.b16 %v2907
        %v3443 = vunpack.c.l.b16 %v2908
        %v3444 = vunpack.c.l.b16 %v2909
        %v3445 = vunpack.c.l.b16 %v2910
        %v3446 = vunpack.c.l.b16 %v2911
        %v3447 = vunpack.c.l.b16 %v2912
        %v3448 = vunpack.c.l.b16 %v2913
        %v3449 = vunpack.c.l.b16 %v2914
        %v3450 = vunpack.c.l.b16 %v2915
        %v3451 = vunpack.c.l.b16 %v2916
        %v3452 = vunpack.c.l.b16 %v2917
        %v3453 = vunpack.c.l.b16 %v2918
        %v3454 = vunpack.c.l.b16 %v2919
        %v3455 = vunpack.c.l.b16 %v2920
        %v3456 = vunpack.c.l.b16 %v2921
        %v3457 = vunpack.c.l.b16 %v2922
        %v3458 = vunpack.c.l.b16 %v2923
        %v3459 = vunpack.c.l.b16 %v2924
        %v3460 = vunpack.c.l.b16 %v2925
        %v3461 = vunpack.c.l.b16 %v2926
        %v3462 = vunpack.c.l.b16 %v2927
        %v3463 = vunpack.c.l.b16 %v2928
        %v3464 = vunpack.c.l.b16 %v2929
        %v3465 = vunpack.c.l.b16 %v2930
        %v3466 = vunpack.c.l.b16 %v2931
        %v3467 = vunpack.c.l.b16 %v2932
        %v3468 = vunpack.c.l.b16 %v2933
        %v3469 = vunpack.c.l.b16 %v2934
        %v3470 = vunpack.c.l.b16 %v2935
        %v3471 = vunpack.c.l.b16 %v2936
        %v3472 = vunpack.c.l.b16 %v2937
        %v3473 = vunpack.c.l.b16 %v2938
        %v3474 = vunpack.c.l.b16 %v2939
        %v3475 = vunpack.c.l.b16 %v2940
        %v3476 = vunpack.c.l.b16 %v2941
        %v3477 = vunpack.c.l.b16 %v2942
        %v3478 = vunpack.c.l.b16 %v2943
        %v3479 = vunpack.c.l.b16 %v2944
        %v3480 = vunpack.c.l.b16 %v2945
        %v3481 = vunpack.c.l.b16 %v2946
        %v3482 = vunpack.c.l.b16 %v2947
        %v3483 = vunpack.c.l.b16 %v2948
        %v3484 = vunpack.c.l.b16 %v2949
        %v3485 = vunpack.c.l.b16 %v2950
        %v3486 = vunpack.c.l.b16 %v2951
        %v3487 = vunpack.c.l.b16 %v2952
        %v3488 = vunpack.c.l.b16 %v2953
        %v3489 = vunpack.c.l.b16 %v2954
        %v3490 = vunpack.c.l.b16 %v2955
        %v3491 = vunpack.c.l.b16 %v2956
        %v3492 = vunpack.c.l.b16 %v2957
        %v3493 = vunpack.c.l.b16 %v2958
        %v3494 = vunpack.c.l.b16 %v2959
        %v3495 = vunpack.c.l.b16 %v2960
        %v3496 = vunpack.c.l.b16 %v2961
        %v3497 = vunpack.c.l.b16 %v2962
        %v3498 = vunpack.c.l.b16 %v2963
        %v3499 = vunpack.c.l.b16 %v2964
        %v3500 = vunpack.c.l.b16 %v2965
        %v3501 = vunpack.c.l.b16 %v2966
        %v3502 = vunpack.c.l.b16 %v2967
        %v3503 = vunpack.c.l.b16 %v2968
        %v3504 = vunpack.c.l.b16 %v2969
        %v3505 = vunpack.c.l.b16 %v2970
        %v3506 = vunpack.c.l.b16 %v2971
        %v3507 = vunpack.c.l.b16 %v2972
        %v3508 = vunpack.c.l.b16 %v2973
        %v3509 = vunpack.c.l.b16 %v2974
        %v3510 = vunpack.c.l.b16 %v2975
        %v3511 = vunpack.c.l.b16 %v2976
        %v3512 = vunpack.c.l.b16 %v2977
        %v3513 = vunpack.c.l.b16 %v2978
        %v3514 = vunpack.c.l.b16 %v2979
        %v3515 = vunpack.c.l.b16 %v2980
        %v3516 = vunpack.c.l.b16 %v2981
        %v3517 = vunpack.c.l.b16 %v2982
        %v3518 = vunpack.c.l.b16 %v2983
        %v3519 = vunpack.c.l.b16 %v2984
        %v3520 = vunpack.c.l.b16 %v2985
        %v3521 = vunpack.c.l.b16 %v2986
        %v3522 = vunpack.c.l.b16 %v2987
        %v3523 = vunpack.c.l.b16 %v2988
        %v3524 = vunpack.c.l.b16 %v2989
        %v3525 = vunpack.c.l.b16 %v2990
        %v3526 = vunpack.c.l.b16 %v2991
        %v3527 = vunpack.c.l.b16 %v2992
        %v3528 = vunpack.c.l.b16 %v2993
        %v3529 = vunpack.c.l.b16 %v2994
        %v3530 = vunpack.c.l.b16 %v2995
        %v3531 = vunpack.c.l.b16 %v2996
        %v3532 = vunpack.c.l.b16 %v2997
        %v3533 = vunpack.c.l.b16 %v2998
        %v3534 = vunpack.c.l.b16 %v2999
        %v3535 = vunpack.c.l.b16 %v3000
        %v3536 = vunpack.c.l.b16 %v3001
        %v3537 = vunpack.c.l.b16 %v3002
        %v3538 = vunpack.c.l.b16 %v3003
        %v3539 = vunpack.c.l.b16 %v3004
        %v3540 = vunpack.c.l.b16 %v3005
        %v3541 = vunpack.c.l.b16 %v3006
        %v3542 = vunpack.c.l.b16 %v3007
        %v3543 = vunpack.c.l.b16 %v3008
        %v3544 = vunpack.c.l.b16 %v3009
        %v3545 = vunpack.c.l.b16 %v3010
        %v3546 = vunpack.c.l.b16 %v3011
        %v3547 = vunpack.c.l.b16 %v3012
        %v3548 = vunpack.c.l.b16 %v3013
        %v3549 = vunpack.c.l.b16 %v3014
        %v3550 = vunpack.c.l.b16 %v3015
        %v3551 = vunpack.c.l.b16 %v3016
        %v3552 = vunpack.c.l.b16 %v3017
        %v3553 = vunpack.c.l.b16 %v3018
        %v3554 = vunpack.c.l.b16 %v3019
        %v3555 = vunpack.c.l.b16 %v3020
        %v3556 = vunpack.c.l.b16 %v3021
        %v3557 = vunpack.c.l.b16 %v3022
        %v3558 = vunpack.c.l.b16 %v3023
        %v3559 = vunpack.c.l.b16 %v3024
        %v3560 = vunpack.c.l.b16 %v3025
        %v3561 = vunpack.c.l.b16 %v3026
        %v3562 = vunpack.c.l.b16 %v3027
        %v3563 = vunpack.c.l.b16 %v3028
        %v3564 = vunpack.c.l.b16 %v3029
        %v3565 = vunpack.c.l.b16 %v3030
        %v3566 = vunpack.c.l.b16 %v3031
        %v3567 = vunpack.c.l.b16 %v3032
        %v3568 = vunpack.c.l.b16 %v3033
        %v3569 = vunpack.c.l.b16 %v3034
        %v3570 = vunpack.c.l.b16 %v3035
        %v3571 = vunpack.c.l.b16 %v3036
        %v3572 = vunpack.c.l.b16 %v3037
        %v3573 = vunpack.c.l.b16 %v3038
        %v3574 = vunpack.c.l.b16 %v3039
        %v3575 = vunpack.c.l.b16 %v3040
        %v3576 = vunpack.c.l.b16 %v3041
        %v3577 = vunpack.c.l.b16 %v3042
        %v3578 = vunpack.c.l.b16 %v3043
        %v3579 = vunpack.c.l.b16 %v3044
        %v3580 = vunpack.c.l.b16 %v3045
        %v3581 = vunpack.c.l.b16 %v3046
        %v3582 = vunpack.c.l.b16 %v3047
        %v3583 = vunpack.c.l.b16 %v3048
        %v3584 = vunpack.c.l.b16 %v3049
        %v3585 = vunpack.c.l.b16 %v3050
        %v3586 = vunpack.c.l.b16 %v3051
        %v3587 = vunpack.c.l.b16 %v3052
        %v3588 = vunpack.c.l.b16 %v3053
        %v3589 = vunpack.c.l.b16 %v3054
        %v3590 = vunpack.c.l.b16 %v3055
        %v3591 = vunpack.c.l.b16 %v3056
        %v3592 = vunpack.c.l.b16 %v3057
        %v3593 = vunpack.c.l.b16 %v3058
        %v3594 = vunpack.c.l.b16 %v3059
        %v3595 = vunpack.c.l.b16 %v3060
        %v3596 = vunpack.c.l.b16 %v3061
        %v3597 = vunpack.c.l.b16 %v3062
        %v3598 = vunpack.c.l.b16 %v3063
        %v3599 = vunpack.c.l.b16 %v3064
        %v3600 = vunpack.c.l.b16 %v3065
        %v3601 = vunpack.c.l.b16 %v3066
        %v3602 = vunpack.c.l.b16 %v3067
        %v3603 = vunpack.c.l.b16 %v3068
        %v3604 = vunpack.c.l.b16 %v3069
        %v3605 = vunpack.c.l.b16 %v3070
        %v3606 = vunpack.c.l.b16 %v3071
        %v3607 = vunpack.c.l.b16 %v3072
        %v3608 = vunpack.c.l.b16 %v3073
        %v3609 = vunpack.c.l.b16 %v3074
        %v3610 = vunpack.c.l.b16 %v3075
        %v3611 = vunpack.c.l.b16 %v3076
        %v3612 = vunpack.c.l.b16 %v3077
        %v3613 = vunpack.c.l.b16 %v3078
        %v3614 = vunpack.c.l.b16 %v3079
        %v3615 = vunpack.c.l.b16 %v3080
        %v3616 = vunpack.c.l.b16 %v3081
        %v3617 = vunpack.c.l.b16 %v3082
        %v3618 = vunpack.c.l.b16 %v3083
        %v3619 = vunpack.c.l.b16 %v3084
        %v3620 = vunpack.c.l.b16 %v3085
        %v3621 = vunpack.c.l.b16 %v3086
        %v3622 = vunpack.c.l.b16 %v3087
        %v3623 = vunpack.c.l.b16 %v3088
        %v3624 = vunpack.c.l.b16 %v3089
        %v3625 = vunpack.c.l.b16 %v3090
        %v3626 = vunpack.c.l.b16 %v3091
        %v3627 = vunpack.c.l.b16 %v3092
        %v3628 = vunpack.c.l.b16 %v3093
        %v3629 = vunpack.c.l.b16 %v3094
        %v3630 = vunpack.c.l.b16 %v3095
        %v3631 = vunpack.c.l.b16 %v3096
        %v3632 = vunpack.c.l.b16 %v3097
        %v3633 = vunpack.c.l.b16 %v3098
        %v3634 = vunpack.c.l.b16 %v3099
        %v3635 = vunpack.c.l.b16 %v3100
        %v3636 = vunpack.c.l.b16 %v3101
        %v3637 = vunpack.c.l.b16 %v3102
        %v3638 = vunpack.c.l.b16 %v3103
        %v3639 = vunpack.c.l.b16 %v3104
        %v3640 = vunpack.c.l.b16 %v3105
        %v3641 = vunpack.c.l.b16 %v3106
        %v3642 = vunpack.c.l.b16 %v3107
        %v3643 = vunpack.c.l.b16 %v3108
        %v3644 = vunpack.c.l.b16 %v3109
        %v3645 = vunpack.c.l.b16 %v3110
        %v3646 = vunpack.c.l.b16 %v3111
        %v3647 = vunpack.c.l.b16 %v3112
        %v3648 = vunpack.c.l.b16 %v3113
        %v3649 = vunpack.c.l.b16 %v3114
        %v3650 = vunpack.c.l.b16 %v3115
        %v3651 = vunpack.c.l.b16 %v3116
        %v3652 = vunpack.c.l.b16 %v3117
        %v3653 = vunpack.c.l.b16 %v3118
        %v3654 = vunpack.c.l.b16 %v3119
        %v3655 = vunpack.c.l.b16 %v3120
        %v3656 = vunpack.c.l.b16 %v3121
        %v3657 = vunpack.c.l.b16 %v3122
        %v3658 = vunpack.c.l.b16 %v3123
        %v3659 = vunpack.c.l.b16 %v3124
        %v3660 = vpack.c.b16 %v3405, %v3404
        %v3661 = vpack.c.b16 %v3407, %v3406
        %v3662 = vpack.c.b16 %v3409, %v3408
        %v3663 = vpack.c.b16 %v3411, %v3410
        %v3664 = vpack.c.b16 %v3413, %v3412
        %v3665 = vpack.c.b16 %v3415, %v3414
        %v3666 = vpack.c.b16 %v3417, %v3416
        %v3667 = vpack.c.b16 %v3419, %v3418
        %v3668 = vpack.c.b16 %v3421, %v3420
        %v3669 = vpack.c.b16 %v3423, %v3422
        %v3670 = vpack.c.b16 %v3425, %v3424
        %v3671 = vpack.c.b16 %v3427, %v3426
        %v3672 = vpack.c.b16 %v3429, %v3428
        %v3673 = vpack.c.b16 %v3431, %v3430
        %v3674 = vpack.c.b16 %v3433, %v3432
        %v3675 = vpack.c.b16 %v3435, %v3434
        %v3676 = vpack.c.b16 %v3437, %v3436
        %v3677 = vpack.c.b16 %v3439, %v3438
        %v3678 = vpack.c.b16 %v3441, %v3440
        %v3679 = vpack.c.b16 %v3443, %v3442
        %v3680 = vpack.c.b16 %v3445, %v3444
        %v3681 = vpack.c.b16 %v3447, %v3446
        %v3682 = vpack.c.b16 %v3449, %v3448
        %v3683 = vpack.c.b16 %v3451, %v3450
        %v3684 = vpack.c.b16 %v3453, %v3452
        %v3685 = vpack.c.b16 %v3455, %v3454
        %v3686 = vpack.c.b16 %v3457, %v3456
        %v3687 = vpack.c.b16 %v3459, %v3458
        %v3688 = vpack.c.b16 %v3461, %v3460
        %v3689 = vpack.c.b16 %v3463, %v3462
        %v3690 = vpack.c.b16 %v3465, %v3464
        %v3691 = vpack.c.b16 %v3467, %v3466
        %v3692 = vpack.c.b16 %v3469, %v3468
        %v3693 = vpack.c.b16 %v3471, %v3470
        %v3694 = vpack.c.b16 %v3473, %v3472
        %v3695 = vpack.c.b16 %v3475, %v3474
        %v3696 = vpack.c.b16 %v3477, %v3476
        %v3697 = vpack.c.b16 %v3479, %v3478
        %v3698 = vpack.c.b16 %v3481, %v3480
        %v3699 = vpack.c.b16 %v3483, %v3482
        %v3700 = vpack.c.b16 %v3485, %v3484
        %v3701 = vpack.c.b16 %v3487, %v3486
        %v3702 = vpack.c.b16 %v3489, %v3488
        %v3703 = vpack.c.b16 %v3491, %v3490
        %v3704 = vpack.c.b16 %v3493, %v3492
        %v3705 = vpack.c.b16 %v3495, %v3494
        %v3706 = vpack.c.b16 %v3497, %v3496
        %v3707 = vpack.c.b16 %v3499, %v3498
        %v3708 = vpack.c.b16 %v3501, %v3500
        %v3709 = vpack.c.b16 %v3503, %v3502
        %v3710 = vpack.c.b16 %v3505, %v3504
        %v3711 = vpack.c.b16 %v3507, %v3506
        %v3712 = vpack.c.b16 %v3509, %v3508
        %v3713 = vpack.c.b16 %v3511, %v3510
        %v3714 = vpack.c.b16 %v3513, %v3512
        %v3715 = vpack.c.b16 %v3515, %v3514
        %v3716 = vpack.c.b16 %v3517, %v3516
        %v3717 = vpack.c.b16 %v3519, %v3518
        %v3718 = vpack.c.b16 %v3521, %v3520
        %v3719 = vpack.c.b16 %v3523, %v3522
        %v3720 = vpack.c.b16 %v3525, %v3524
        %v3721 = vpack.c.b16 %v3527, %v3526
        %v3722 = vpack.c.b16 %v3529, %v3528
        %v3723 = vpack.c.b16 %v3531, %v3530
        %v3724 = vpack.c.b16 %v3533, %v3532
        %v3725 = vpack.c.b16 %v3535, %v3534
        %v3726 = vpack.c.b16 %v3537, %v3536
        %v3727 = vpack.c.b16 %v3539, %v3538
        %v3728 = vpack.c.b16 %v3541, %v3540
        %v3729 = vpack.c.b16 %v3543, %v3542
        %v3730 = vpack.c.b16 %v3545, %v3544
        %v3731 = vpack.c.b16 %v3547, %v3546
        %v3732 = vpack.c.b16 %v3549, %v3548
        %v3733 = vpack.c.b16 %v3551, %v3550
        %v3734 = vpack.c.b16 %v3553, %v3552
        %v3735 = vpack.c.b16 %v3555, %v3554
        %v3736 = vpack.c.b16 %v3557, %v3556
        %v3737 = vpack.c.b16 %v3559, %v3558
        %v3738 = vpack.c.b16 %v3561, %v3560
        %v3739 = vpack.c.b16 %v3563, %v3562
        %v3740 = vpack.c.b16 %v3565, %v3564
        %v3741 = vpack.c.b16 %v3567, %v3566
        %v3742 = vpack.c.b16 %v3569, %v3568
        %v3743 = vpack.c.b16 %v3571, %v3570
        %v3744 = vpack.c.b16 %v3573, %v3572
        %v3745 = vpack.c.b16 %v3575, %v3574
        %v3746 = vpack.c.b16 %v3577, %v3576
        %v3747 = vpack.c.b16 %v3579, %v3578
        %v3748 = vpack.c.b16 %v3581, %v3580
        %v3749 = vpack.c.b16 %v3583, %v3582
        %v3750 = vpack.c.b16 %v3585, %v3584
        %v3751 = vpack.c.b16 %v3587, %v3586
        %v3752 = vpack.c.b16 %v3589, %v3588
        %v3753 = vpack.c.b16 %v3591, %v3590
        %v3754 = vpack.c.b16 %v3593, %v3592
        %v3755 = vpack.c.b16 %v3595, %v3594
        %v3756 = vpack.c.b16 %v3597, %v3596
        %v3757 = vpack.c.b16 %v3599, %v3598
        %v3758 = vpack.c.b16 %v3601, %v3600
        %v3759 = vpack.c.b16 %v3603, %v3602
        %v3760 = vpack.c.b16 %v3605, %v3604
        %v3761 = vpack.c.b16 %v3607, %v3606
        %v3762 = vpack.c.b16 %v3609, %v3608
        %v3763 = vpack.c.b16 %v3611, %v3610
        %v3764 = vpack.c.b16 %v3613, %v3612
        %v3765 = vpack.c.b16 %v3615, %v3614
        %v3766 = vpack.c.b16 %v3617, %v3616
        %v3767 = vpack.c.b16 %v3619, %v3618
        %v3768 = vpack.c.b16 %v3621, %v3620
        %v3769 = vpack.c.b16 %v3623, %v3622
        %v3770 = vpack.c.b16 %v3625, %v3624
        %v3771 = vpack.c.b16 %v3627, %v3626
        %v3772 = vpack.c.b16 %v3629, %v3628
        %v3773 = vpack.c.b16 %v3631, %v3630
        %v3774 = vpack.c.b16 %v3633, %v3632
        %v3775 = vpack.c.b16 %v3635, %v3634
        %v3776 = vpack.c.b16 %v3637, %v3636
        %v3777 = vpack.c.b16 %v3639, %v3638
        %v3778 = vpack.c.b16 %v3641, %v3640
        %v3779 = vpack.c.b16 %v3643, %v3642
        %v3780 = vpack.c.b16 %v3645, %v3644
        %v3781 = vpack.c.b16 %v3647, %v3646
        %v3782 = vpack.c.b16 %v3649, %v3648
        %v3783 = vpack.c.b16 %v3651, %v3650
        %v3784 = vpack.c.b16 %v3653, %v3652
        %v3785 = vpack.c.b16 %v3655, %v3654
        %v3786 = vpack.c.b16 %v3657, %v3656
        %v3787 = vpack.c.b16 %v3659, %v3658
        %3916 = vmatprep.subr.bf16.mxu0 0
        %3917 = vmatpush1.bf16.msra.mxu0 %v3667
        %3918 = vmatprep.subr.bf16.mxu0 0
        %3919 = vmatpush1.bf16.msra.mxu0 %v3666
        %3920 = vmatprep.subr.bf16.mxu0 0
        %3921 = vmatpush1.bf16.msra.mxu0 %v3665
        %3922 = vmatprep.subr.bf16.mxu0 0
        %3923 = vmatpush1.bf16.msra.mxu0 %v3664
        %3924 = vmatprep.subr.bf16.mxu0 0
        %3925 = vmatpush1.bf16.msra.mxu0 %v3663
        %3926 = vmatprep.subr.bf16.mxu0 0
        %3927 = vmatpush1.bf16.msra.mxu0 %v3662
        %3928 = vmatprep.subr.bf16.mxu0 0
        %3929 = vmatpush1.bf16.msra.mxu0 %v3661
        %3930 = vmatprep.subr.bf16.mxu0 0
        %3931 = vmatpush1.bf16.msra.mxu0 %v3660
        %3932 = vmatprep.subr.bf16.mxu0 0
        %3933 = vmatpush2.bf16.msra.mxu0 %v3675
        %3934 = vmatprep.subr.bf16.mxu0 0
        %3935 = vmatpush2.bf16.msra.mxu0 %v3674
        %3936 = vmatprep.subr.bf16.mxu0 0
        %3937 = vmatpush2.bf16.msra.mxu0 %v3673
        %3938 = vmatprep.subr.bf16.mxu0 0
        %3939 = vmatpush2.bf16.msra.mxu0 %v3672
        %3940 = vmatprep.subr.bf16.mxu0 0
        %3941 = vmatpush2.bf16.msra.mxu0 %v3671
        %3942 = vmatprep.subr.bf16.mxu0 0
        %3943 = vmatpush2.bf16.msra.mxu0 %v3670
        %3944 = vmatprep.subr.bf16.mxu0 0
        %3945 = vmatpush2.bf16.msra.mxu0 %v3669
        %3946 = vmatprep.subr.bf16.mxu0 0
        %3947 = vmatpush2.bf16.msra.mxu0 %v3668
        %3948 = vmatprep.mubr.bf16.mxu0 %v3126
        %3949 = vmatmul.mubr.bf16.gmra.mxu0 %v3125
        %v3950 = vpop.f32.mrf.mxu0
        %v3951 = vadd.f32 %v3146, %v3950
        %v3952 = vpop.f32.mrf.mxu0
        %v3953 = vpop.f32.mrf.mxu0
        %v3954 = vadd.f32 %v3146, %v3953
        %v3955 = vpop.f32.mrf.mxu0
        %3956 = vdwg.mxu0
        %3957 = vmatprep.subr.bf16.mxu0 0
        %3958 = vmatpush1.bf16.msra.mxu0 %v3683
        %3959 = vmatprep.subr.bf16.mxu0 0
        %3960 = vmatpush1.bf16.msra.mxu0 %v3682
        %3961 = vmatprep.subr.bf16.mxu0 0
        %3962 = vmatpush1.bf16.msra.mxu0 %v3681
        %3963 = vmatprep.subr.bf16.mxu0 0
        %3964 = vmatpush1.bf16.msra.mxu0 %v3680
        %3965 = vmatprep.subr.bf16.mxu0 0
        %3966 = vmatpush1.bf16.msra.mxu0 %v3679
        %3967 = vmatprep.subr.bf16.mxu0 0
        %3968 = vmatpush1.bf16.msra.mxu0 %v3678
        %3969 = vmatprep.subr.bf16.mxu0 0
        %3970 = vmatpush1.bf16.msra.mxu0 %v3677
        %3971 = vmatprep.subr.bf16.mxu0 0
        %3972 = vmatpush1.bf16.msra.mxu0 %v3676
        %3973 = vmatprep.subr.bf16.mxu0 0
        %3974 = vmatpush2.bf16.msra.mxu0 %v3691
        %3975 = vmatprep.subr.bf16.mxu0 0
        %3976 = vmatpush2.bf16.msra.mxu0 %v3690
        %3977 = vmatprep.subr.bf16.mxu0 0
        %3978 = vmatpush2.bf16.msra.mxu0 %v3689
        %3979 = vmatprep.subr.bf16.mxu0 0
        %3980 = vmatpush2.bf16.msra.mxu0 %v3688
        %3981 = vmatprep.subr.bf16.mxu0 0
        %3982 = vmatpush2.bf16.msra.mxu0 %v3687
        %3983 = vmatprep.subr.bf16.mxu0 0
        %3984 = vmatpush2.bf16.msra.mxu0 %v3686
        %3985 = vmatprep.subr.bf16.mxu0 0
        %3986 = vmatpush2.bf16.msra.mxu0 %v3685
        %3987 = vmatprep.subr.bf16.mxu0 0
        %3988 = vmatpush2.bf16.msra.mxu0 %v3684
        %3989 = vmatprep.mubr.bf16.mxu0 %v3128
        %3990 = vmatmul.mubr.bf16.gmra.mxu0 %v3127
        %v3991 = vpop.f32.mrf.mxu0
        %v3992 = vadd.f32 %v3951, %v3991
        %v3993 = vpop.f32.mrf.mxu0
        %v3994 = vpop.f32.mrf.mxu0
        %v3995 = vadd.f32 %v3954, %v3994
        %v3996 = vpop.f32.mrf.mxu0
        %3997 = vdwg.mxu0
        %3998 = vmatprep.subr.bf16.mxu0 0
        %3999 = vmatpush1.bf16.msra.mxu0 %v3699
        %4000 = vmatprep.subr.bf16.mxu0 0
        %4001 = vmatpush1.bf16.msra.mxu0 %v3698
        %4002 = vmatprep.subr.bf16.mxu0 0
        %4003 = vmatpush1.bf16.msra.mxu0 %v3697
        %4004 = vmatprep.subr.bf16.mxu0 0
        %4005 = vmatpush1.bf16.msra.mxu0 %v3696
        %4006 = vmatprep.subr.bf16.mxu0 0
        %4007 = vmatpush1.bf16.msra.mxu0 %v3695
        %4008 = vmatprep.subr.bf16.mxu0 0
        %4009 = vmatpush1.bf16.msra.mxu0 %v3694
        %4010 = vmatprep.subr.bf16.mxu0 0
        %4011 = vmatpush1.bf16.msra.mxu0 %v3693
        %4012 = vmatprep.subr.bf16.mxu0 0
        %4013 = vmatpush1.bf16.msra.mxu0 %v3692
        %4014 = vmatprep.subr.bf16.mxu0 0
        %4015 = vmatpush2.bf16.msra.mxu0 %v3707
        %4016 = vmatprep.subr.bf16.mxu0 0
        %4017 = vmatpush2.bf16.msra.mxu0 %v3706
        %4018 = vmatprep.subr.bf16.mxu0 0
        %4019 = vmatpush2.bf16.msra.mxu0 %v3705
        %4020 = vmatprep.subr.bf16.mxu0 0
        %4021 = vmatpush2.bf16.msra.mxu0 %v3704
        %4022 = vmatprep.subr.bf16.mxu0 0
        %4023 = vmatpush2.bf16.msra.mxu0 %v3703
        %4024 = vmatprep.subr.bf16.mxu0 0
        %4025 = vmatpush2.bf16.msra.mxu0 %v3702
        %4026 = vmatprep.subr.bf16.mxu0 0
        %4027 = vmatpush2.bf16.msra.mxu0 %v3701
        %4028 = vmatprep.subr.bf16.mxu0 0
        %4029 = vmatpush2.bf16.msra.mxu0 %v3700
        %4030 = vmatprep.mubr.bf16.mxu0 %v3130
        %4031 = vmatmul.mubr.bf16.gmra.mxu0 %v3129
        %v4032 = vpop.f32.mrf.mxu0
        %v4033 = vadd.f32 %v3992, %v4032
        %v4034 = vpop.f32.mrf.mxu0
        %v4035 = vpop.f32.mrf.mxu0
        %v4036 = vadd.f32 %v3995, %v4035
        %v4037 = vpop.f32.mrf.mxu0
        %4038 = vdwg.mxu0
        %4039 = vmatprep.subr.bf16.mxu0 0
        %4040 = vmatpush1.bf16.msra.mxu0 %v3715
        %4041 = vmatprep.subr.bf16.mxu0 0
        %4042 = vmatpush1.bf16.msra.mxu0 %v3714
        %4043 = vmatprep.subr.bf16.mxu0 0
        %4044 = vmatpush1.bf16.msra.mxu0 %v3713
        %4045 = vmatprep.subr.bf16.mxu0 0
        %4046 = vmatpush1.bf16.msra.mxu0 %v3712
        %4047 = vmatprep.subr.bf16.mxu0 0
        %4048 = vmatpush1.bf16.msra.mxu0 %v3711
        %4049 = vmatprep.subr.bf16.mxu0 0
        %4050 = vmatpush1.bf16.msra.mxu0 %v3710
        %4051 = vmatprep.subr.bf16.mxu0 0
        %4052 = vmatpush1.bf16.msra.mxu0 %v3709
        %4053 = vmatprep.subr.bf16.mxu0 0
        %4054 = vmatpush1.bf16.msra.mxu0 %v3708
        %4055 = vmatprep.subr.bf16.mxu0 0
        %4056 = vmatpush2.bf16.msra.mxu0 %v3723
        %4057 = vmatprep.subr.bf16.mxu0 0
        %4058 = vmatpush2.bf16.msra.mxu0 %v3722
        %4059 = vmatprep.subr.bf16.mxu0 0
        %4060 = vmatpush2.bf16.msra.mxu0 %v3721
        %4061 = vmatprep.subr.bf16.mxu0 0
        %4062 = vmatpush2.bf16.msra.mxu0 %v3720
        %4063 = vmatprep.subr.bf16.mxu0 0
        %4064 = vmatpush2.bf16.msra.mxu0 %v3719
        %4065 = vmatprep.subr.bf16.mxu0 0
        %4066 = vmatpush2.bf16.msra.mxu0 %v3718
        %4067 = vmatprep.subr.bf16.mxu0 0
        %4068 = vmatpush2.bf16.msra.mxu0 %v3717
        %4069 = vmatprep.subr.bf16.mxu0 0
        %4070 = vmatpush2.bf16.msra.mxu0 %v3716
        %4071 = vmatprep.mubr.bf16.mxu0 %v3132
        %4072 = vmatmul.mubr.bf16.gmra.mxu0 %v3131
        %v4073 = vpop.f32.mrf.mxu0
        %v4074 = vadd.f32 %v4033, %v4073
        %v4075 = vpop.f32.mrf.mxu0
        %v4076 = vpop.f32.mrf.mxu0
        %v4077 = vadd.f32 %v4036, %v4076
        %v4078 = vpop.f32.mrf.mxu0
        %4079 = vdwg.mxu0
        %4080 = vmatprep.subr.bf16.mxu0 0
        %4081 = vmatpush1.bf16.msra.mxu0 %v3731
        %4082 = vmatprep.subr.bf16.mxu0 0
        %4083 = vmatpush1.bf16.msra.mxu0 %v3730
        %4084 = vmatprep.subr.bf16.mxu0 0
        %4085 = vmatpush1.bf16.msra.mxu0 %v3729
        %4086 = vmatprep.subr.bf16.mxu0 0
        %4087 = vmatpush1.bf16.msra.mxu0 %v3728
        %4088 = vmatprep.subr.bf16.mxu0 0
        %4089 = vmatpush1.bf16.msra.mxu0 %v3727
        %4090 = vmatprep.subr.bf16.mxu0 0
        %4091 = vmatpush1.bf16.msra.mxu0 %v3726
        %4092 = vmatprep.subr.bf16.mxu0 0
        %4093 = vmatpush1.bf16.msra.mxu0 %v3725
        %4094 = vmatprep.subr.bf16.mxu0 0
        %4095 = vmatpush1.bf16.msra.mxu0 %v3724
        %4096 = vmatprep.subr.bf16.mxu0 0
        %4097 = vmatpush2.bf16.msra.mxu0 %v3739
        %4098 = vmatprep.subr.bf16.mxu0 0
        %4099 = vmatpush2.bf16.msra.mxu0 %v3738
        %4100 = vmatprep.subr.bf16.mxu0 0
        %4101 = vmatpush2.bf16.msra.mxu0 %v3737
        %4102 = vmatprep.subr.bf16.mxu0 0
        %4103 = vmatpush2.bf16.msra.mxu0 %v3736
        %4104 = vmatprep.subr.bf16.mxu0 0
        %4105 = vmatpush2.bf16.msra.mxu0 %v3735
        %4106 = vmatprep.subr.bf16.mxu0 0
        %4107 = vmatpush2.bf16.msra.mxu0 %v3734
        %4108 = vmatprep.subr.bf16.mxu0 0
        %4109 = vmatpush2.bf16.msra.mxu0 %v3733
        %4110 = vmatprep.subr.bf16.mxu0 0
        %4111 = vmatpush2.bf16.msra.mxu0 %v3732
        %4112 = vmatprep.mubr.bf16.mxu0 %v3134
        %4113 = vmatmul.mubr.bf16.gmra.mxu0 %v3133
        %v4114 = vpop.f32.mrf.mxu0
        %v4115 = vadd.f32 %v4074, %v4114
        %v4116 = vpop.f32.mrf.mxu0
        %v4117 = vpop.f32.mrf.mxu0
        %v4118 = vadd.f32 %v4077, %v4117
        %v4119 = vpop.f32.mrf.mxu0
        %4120 = vdwg.mxu0
        %4121 = vmatprep.subr.bf16.mxu0 0
        %4122 = vmatpush1.bf16.msra.mxu0 %v3747
        %4123 = vmatprep.subr.bf16.mxu0 0
        %4124 = vmatpush1.bf16.msra.mxu0 %v3746
        %4125 = vmatprep.subr.bf16.mxu0 0
        %4126 = vmatpush1.bf16.msra.mxu0 %v3745
        %4127 = vmatprep.subr.bf16.mxu0 0
        %4128 = vmatpush1.bf16.msra.mxu0 %v3744
        %4129 = vmatprep.subr.bf16.mxu0 0
        %4130 = vmatpush1.bf16.msra.mxu0 %v3743
        %4131 = vmatprep.subr.bf16.mxu0 0
        %4132 = vmatpush1.bf16.msra.mxu0 %v3742
        %4133 = vmatprep.subr.bf16.mxu0 0
        %4134 = vmatpush1.bf16.msra.mxu0 %v3741
        %4135 = vmatprep.subr.bf16.mxu0 0
        %4136 = vmatpush1.bf16.msra.mxu0 %v3740
        %4137 = vmatprep.subr.bf16.mxu0 0
        %4138 = vmatpush2.bf16.msra.mxu0 %v3755
        %4139 = vmatprep.subr.bf16.mxu0 0
        %4140 = vmatpush2.bf16.msra.mxu0 %v3754
        %4141 = vmatprep.subr.bf16.mxu0 0
        %4142 = vmatpush2.bf16.msra.mxu0 %v3753
        %4143 = vmatprep.subr.bf16.mxu0 0
        %4144 = vmatpush2.bf16.msra.mxu0 %v3752
        %4145 = vmatprep.subr.bf16.mxu0 0
        %4146 = vmatpush2.bf16.msra.mxu0 %v3751
        %4147 = vmatprep.subr.bf16.mxu0 0
        %4148 = vmatpush2.bf16.msra.mxu0 %v3750
        %4149 = vmatprep.subr.bf16.mxu0 0
        %4150 = vmatpush2.bf16.msra.mxu0 %v3749
        %4151 = vmatprep.subr.bf16.mxu0 0
        %4152 = vmatpush2.bf16.msra.mxu0 %v3748
        %4153 = vmatprep.mubr.bf16.mxu0 %v3136
        %4154 = vmatmul.mubr.bf16.gmra.mxu0 %v3135
        %v4155 = vpop.f32.mrf.mxu0
        %v4156 = vadd.f32 %v4115, %v4155
        %v4157 = vpop.f32.mrf.mxu0
        %v4158 = vpop.f32.mrf.mxu0
        %v4159 = vadd.f32 %v4118, %v4158
        %v4160 = vpop.f32.mrf.mxu0
        %4161 = vdwg.mxu0
        %4162 = vmatprep.subr.bf16.mxu0 0
        %4163 = vmatpush1.bf16.msra.mxu0 %v3763
        %4164 = vmatprep.subr.bf16.mxu0 0
        %4165 = vmatpush1.bf16.msra.mxu0 %v3762
        %4166 = vmatprep.subr.bf16.mxu0 0
        %4167 = vmatpush1.bf16.msra.mxu0 %v3761
        %4168 = vmatprep.subr.bf16.mxu0 0
        %4169 = vmatpush1.bf16.msra.mxu0 %v3760
        %4170 = vmatprep.subr.bf16.mxu0 0
        %4171 = vmatpush1.bf16.msra.mxu0 %v3759
        %4172 = vmatprep.subr.bf16.mxu0 0
        %4173 = vmatpush1.bf16.msra.mxu0 %v3758
        %4174 = vmatprep.subr.bf16.mxu0 0
        %4175 = vmatpush1.bf16.msra.mxu0 %v3757
        %4176 = vmatprep.subr.bf16.mxu0 0
        %4177 = vmatpush1.bf16.msra.mxu0 %v3756
        %4178 = vmatprep.subr.bf16.mxu0 0
        %4179 = vmatpush2.bf16.msra.mxu0 %v3771
        %4180 = vmatprep.subr.bf16.mxu0 0
        %4181 = vmatpush2.bf16.msra.mxu0 %v3770
        %4182 = vmatprep.subr.bf16.mxu0 0
        %4183 = vmatpush2.bf16.msra.mxu0 %v3769
        %4184 = vmatprep.subr.bf16.mxu0 0
        %4185 = vmatpush2.bf16.msra.mxu0 %v3768
        %4186 = vmatprep.subr.bf16.mxu0 0
        %4187 = vmatpush2.bf16.msra.mxu0 %v3767
        %4188 = vmatprep.subr.bf16.mxu0 0
        %4189 = vmatpush2.bf16.msra.mxu0 %v3766
        %4190 = vmatprep.subr.bf16.mxu0 0
        %4191 = vmatpush2.bf16.msra.mxu0 %v3765
        %4192 = vmatprep.subr.bf16.mxu0 0
        %4193 = vmatpush2.bf16.msra.mxu0 %v3764
        %4194 = vmatprep.mubr.bf16.mxu0 %v3138
        %4195 = vmatmul.mubr.bf16.gmra.mxu0 %v3137
        %v4196 = vpop.f32.mrf.mxu0
        %v4197 = vadd.f32 %v4156, %v4196
        %v4198 = vpop.f32.mrf.mxu0
        %v4199 = vpop.f32.mrf.mxu0
        %v4200 = vadd.f32 %v4159, %v4199
        %v4201 = vpop.f32.mrf.mxu0
        %4202 = vdwg.mxu0
        %4203 = vmatprep.subr.bf16.mxu0 0
        %4204 = vmatpush1.bf16.msra.mxu0 %v3779
        %4205 = vmatprep.subr.bf16.mxu0 0
        %4206 = vmatpush1.bf16.msra.mxu0 %v3778
        %4207 = vmatprep.subr.bf16.mxu0 0
        %4208 = vmatpush1.bf16.msra.mxu0 %v3777
        %4209 = vmatprep.subr.bf16.mxu0 0
        %4210 = vmatpush1.bf16.msra.mxu0 %v3776
        %4211 = vmatprep.subr.bf16.mxu0 0
        %4212 = vmatpush1.bf16.msra.mxu0 %v3775
        %4213 = vmatprep.subr.bf16.mxu0 0
        %4214 = vmatpush1.bf16.msra.mxu0 %v3774
        %4215 = vmatprep.subr.bf16.mxu0 0
        %4216 = vmatpush1.bf16.msra.mxu0 %v3773
        %4217 = vmatprep.subr.bf16.mxu0 0
        %4218 = vmatpush1.bf16.msra.mxu0 %v3772
        %4219 = vmatprep.subr.bf16.mxu0 0
        %4220 = vmatpush2.bf16.msra.mxu0 %v3787
        %4221 = vmatprep.subr.bf16.mxu0 0
        %4222 = vmatpush2.bf16.msra.mxu0 %v3786
        %4223 = vmatprep.subr.bf16.mxu0 0
        %4224 = vmatpush2.bf16.msra.mxu0 %v3785
        %4225 = vmatprep.subr.bf16.mxu0 0
        %4226 = vmatpush2.bf16.msra.mxu0 %v3784
        %4227 = vmatprep.subr.bf16.mxu0 0
        %4228 = vmatpush2.bf16.msra.mxu0 %v3783
        %4229 = vmatprep.subr.bf16.mxu0 0
        %4230 = vmatpush2.bf16.msra.mxu0 %v3782
        %4231 = vmatprep.subr.bf16.mxu0 0
        %4232 = vmatpush2.bf16.msra.mxu0 %v3781
        %4233 = vmatprep.subr.bf16.mxu0 0
        %4234 = vmatpush2.bf16.msra.mxu0 %v3780
        %4235 = vmatprep.mubr.bf16.mxu0 %v3140
        %4236 = vmatmul.mubr.bf16.gmra.mxu0 %v3139
        %v4237 = vpop.f32.mrf.mxu0
        %v4238 = vadd.f32 %v4197, %v4237
        %v4239 = vpop.f32.mrf.mxu0
        %v4240 = vpop.f32.mrf.mxu0
        %v4241 = vadd.f32 %v4200, %v4240
        %v4242 = vpop.f32.mrf.mxu0
        %4243 = vdwg.mxu0
        %v4244 = vadd.f32 %v1638, %v4238
        %v4245 = vadd.f32 %v1639, %v4241
        %4246 = vadd.xlane.f32.xlu0 %v4244
        %v4247 = vpop.xlane.xlu0 %4246
        %4248 = vadd.xlane.f32.xlu0 %v4245
        %v4249 = vpop.xlane.xlu0 %4248
        %v4250 = vmul.f32 %v4247, %v1605
        %v4251 = vmul.f32 %v4249, %v1605
        %v4252 = vsub.f32 %v4244, %v4250
        %v4253 = vsub.f32 %v4245, %v4251
        %v4254 = vmul.f32 %v4252, %v4252
        %v4255 = vmul.f32 %v4253, %v4253
        %4256 = vadd.xlane.f32.xlu0 %v4254
        %v4257 = vpop.xlane.xlu0 %4256
        %4258 = vadd.xlane.f32.xlu0 %v4255
        %v4259 = vpop.xlane.xlu0 %4258
        %v4260 = vmul.f32 %v4257, %v1605
        %v4261 = vmul.f32 %v4259, %v1605
        %v4262 = vadd.f32 %v4260, 1e-05
        %v4263 = vadd.f32 %v4261, 1e-05
        %v4264 = vrsqrt.pop %v4262
        %v4265 = vrsqrt.pop %v4263
        %v4266 = vmul.f32 %v4252, %v4264
        %v4267 = vmul.f32 %v4253, %v4265
        %v4268 = vmul.f32 %v4266, %v1628
        %v4269 = vmul.f32 %v4267, %v1628
        %v4270 = vadd.f32 %v4268, %v1636
        %v4271 = vadd.f32 %v4269, %v1636
        %4272 = vst [vmem:[#allocation2] sm:$0xff] %v4270
        %4273 = vst [vmem:[#allocation2 + $0x8] sm:$0xff] %v4271
        %p4274 = scmp.eq.s32.totalorder %s46, 2
        // Predicated region
        $region129: #{encoder_forward.1} parent=83 // pred_check
          %p4275 = pneg %p4274
        $region130: #{encoder_forward.1} parent=83 // pred_check_branch
          %4277 = sbr.rel (%p4275) target = $region132
        $region131: #{encoder_forward.1} parent=83 // pred_region
          %4278 = vst [vmem:[#allocation20] sm:$0xff] %v4270
          %4279 = vst [vmem:[#allocation20 + $0x8] sm:$0xff] %v4271
        $region132: #{encoder_forward.1} parent=83 // pred_fallthru
          _
        // Predicated region
        $region133: #{encoder_forward.1} parent=83 // pred_check
          %p4280 = pneg %p445
        $region134: #{encoder_forward.1} parent=83 // pred_check_branch
          %4282 = sbr.rel (%p4280) target = $region136
        $region135: #{encoder_forward.1} parent=83 // pred_region
          %s4284 = ssub.s32 256, 256
          %4285 = vsyncadd [#allocation5], %s4284
          %s4286 = sshll.u32 [#allocation20], 4
          %s4287 = int_to_ptr.vmem [resolvable:$true] %s4286
          %4292 = dma.vmem_to_hbm [thread:$0]  %s4287, 256, %s16, [#allocation5], 128, 128, 8
        $region136: #{encoder_forward.1} parent=83 // pred_fallthru
          _
        // Predicated region
        $region137: #{encoder_forward.1} parent=83 // pred_check
          %p4293 = pneg %p445
        $region138: #{encoder_forward.1} parent=83 // pred_check_branch
          %4295 = sbr.rel (%p4293) target = $region140
        $region139: #{encoder_forward.1} parent=83 // pred_region
          %4296 = dma.done [#allocation5], 256
        $region140: #{encoder_forward.1} parent=83 // pred_fallthru
          _
      $region84: #{encoder_forward.1} parent=5 // pred_fallthru
        _
      %p4297 = scmp.le.s32.totalorder 2, %s41
      // Predicated region
      $region141: #{encoder_forward.1} parent=5 // pred_check
        %p4298 = pneg %p4297
      $region142: #{encoder_forward.1} parent=5 // pred_check_branch
        %4300 = sbr.rel (%p4298) target = $region144
      $region143: #{encoder_forward.1} parent=5 // pred_region
        %s4301 = ssub.s32 %s41, 2
      $region144: #{encoder_forward.1} parent=5 // pred_fallthru
        _
    $region6: #{encoder_forward.1} parent=1 // loop_footer
      %s45 = sadd.s32 1, %s41
    $region7: #{encoder_forward.1} parent=1 // loop_footer_branch
      %40 = sbr.rel target = $region3
    $region8: #{encoder_forward.1} parent=1 // loop_exit
      _
    %4302 = vsyncpa [#allocation4], 1
    %s4303 = scalar_lea.sflag [#allocation4], 1
    %4304 = vsyncpa %s4303, 1
    %4305 = vsyncpa [#allocation7], 1
    %s4306 = scalar_lea.sflag [#allocation7], 1
    %4307 = vsyncpa %s4306, 1
    %4308 = vsyncpa [#allocation10], 1
    %s4309 = scalar_lea.sflag [#allocation10], 1
    %4310 = vsyncpa %s4309, 1
    %4311 = vsyncpa [#allocation13], 1
    %s4312 = scalar_lea.sflag [#allocation13], 1
    %4313 = vsyncpa %s4312, 1
    %4314 = vsyncpa [#allocation16], 1
    %s4315 = scalar_lea.sflag [#allocation16], 1
    %4316 = vsyncpa %s4315, 1
    %4317 = vsyncpa [#allocation19], 1
    %s4318 = scalar_lea.sflag [#allocation19], 1
    %4319 = vsyncpa %s4318, 1
    %4320 = vsyncpa [#allocation5], 1
    %s4321 = scalar_lea.sflag [#allocation5], 1
    %4322 = vsyncpa %s4321, 1

</llo_original>
